<compile_context>
chip_gen: v7x
topology: tpu7x:2x2x1
jax: 0.10.0
libtpu: 0.0.40
codegen_flags: <defaults>
</compile_context>

<pallas_src>
import functools

import jax
import jax.numpy as jnp
from jax.experimental import pallas as pl
from jax.experimental.pallas import tpu as pltpu

# ---------------------------------------------------------------------------
# Layer geometry (logical and padded).
# ---------------------------------------------------------------------------
IMG_FEATS = 784            # 1 * 28 * 28
EMB_SIZE = 32
H1, H1_PAD = 784, 896      # 784 -> padded to multiple of 128
H2 = 512
H3 = 256
OUT_PAD = 128              # logical out dim is 1 -> padded to a lane-dense 128


def _round_up(x, m):
    return ((x + m - 1) // m) * m


def _leaky_relu(x, slope=0.1):
    return jnp.where(x > 0, x, slope * x)


# ---------------------------------------------------------------------------
# Kernel: fused 4-layer MLP on one (TB, .) batch tile.
# ---------------------------------------------------------------------------
def cdisc_kernel(ximg_ref, xemb_ref,
                 w1i_ref, w1e_ref, b1_ref,
                 w2_ref, b2_ref,
                 w3_ref, b3_ref,
                 w4_ref, b4_ref,
                 out_ref):
    # bf16 inputs to the MXU, f32 accumulation; elementwise math in f32 (v5e-safe).
    ximg = ximg_ref[...].astype(jnp.bfloat16)
    xemb = xemb_ref[...].astype(jnp.bfloat16)

    # linear_1 split as img@W1_img + emb@W1_emb (removes wrapper-side concat).
    h = (jnp.dot(ximg, w1i_ref[...], preferred_element_type=jnp.float32)
         + jnp.dot(xemb, w1e_ref[...], preferred_element_type=jnp.float32)
         + b1_ref[...])
    h = _leaky_relu(h).astype(jnp.bfloat16)          # dropout == identity (eval)

    h = jnp.dot(h, w2_ref[...], preferred_element_type=jnp.float32) + b2_ref[...]
    h = _leaky_relu(h).astype(jnp.bfloat16)

    h = jnp.dot(h, w3_ref[...], preferred_element_type=jnp.float32) + b3_ref[...]
    h = _leaky_relu(h).astype(jnp.bfloat16)

    # out layer: raw logits; columns 1..127 are zero padding (sliced in wrapper).
    logits = jnp.dot(h, w4_ref[...], preferred_element_type=jnp.float32) + b4_ref[...]
    out_ref[...] = logits.astype(out_ref.dtype)


# ---------------------------------------------------------------------------
# Parameters: torch-Linear-style init (logical shapes), then pack (pad + bf16).
# ---------------------------------------------------------------------------
def init_params(key, in_features, emb_size=32, num_classes=10):
    dims = [in_features + emb_size, H1, H2, H3, 1]
    keys = jax.random.split(key, 2 * (len(dims) - 1) + 1)
    params = {}
    for i in range(len(dims) - 1):
        bound = 1.0 / float(dims[i]) ** 0.5
        # stored as (in, out) so the kernel computes x @ W (== torch x @ W.T)
        params[f"w{i + 1}"] = jax.random.uniform(
            keys[2 * i], (dims[i], dims[i + 1]), jnp.float32, -bound, bound)
        params[f"b{i + 1}"] = jax.random.uniform(
            keys[2 * i + 1], (1, dims[i + 1]), jnp.float32, -bound, bound)
    # nn.Embedding default init: N(0, 1)
    params["emb"] = jax.random.normal(keys[-1], (num_classes, emb_size), jnp.float32)
    return params


def pack_params(params):
    """Pad to MXU/lane-friendly shapes and cast weights to bf16 (biases stay f32)."""
    def pad_cols(a, n):
        return jnp.pad(a, ((0, 0), (0, n - a.shape[1])))

    def pad_rows(a, n):
        return jnp.pad(a, ((0, n - a.shape[0]), (0, 0)))

    w1 = params["w1"]                       # (816, 784)
    w1_img, w1_emb = w1[:IMG_FEATS], w1[IMG_FEATS:]
    return {
        "w1_img": pad_cols(w1_img, H1_PAD).astype(jnp.bfloat16),   # (784, 896)
        "w1_emb": pad_cols(w1_emb, H1_PAD).astype(jnp.bfloat16),   # (32, 896)
        "b1": pad_cols(params["b1"], H1_PAD),                      # (1, 896) f32
        "w2": pad_rows(params["w2"], H1_PAD).astype(jnp.bfloat16), # (896, 512)
        "b2": params["b2"],                                        # (1, 512) f32
        "w3": params["w3"].astype(jnp.bfloat16),                   # (512, 256)
        "b3": params["b3"],                                        # (1, 256) f32
        "w4": pad_cols(params["w4"], OUT_PAD).astype(jnp.bfloat16),# (256, 128)
        "b4": pad_cols(params["b4"], OUT_PAD),                     # (1, 128) f32
        "emb": params["emb"],                                      # (10, 32) f32
    }


# ---------------------------------------------------------------------------
# Wrapper: batch-tiled pallas_call with VMEM-resident weights.
# ---------------------------------------------------------------------------
def cdiscriminator_forward(imgs, cond_class, kparams, tile_b=512):
    """imgs: (B, C, H, W) f32; cond_class: (B,) int32 -> (B, 1) logits."""
    B = imgs.shape[0]
    x_img = imgs.reshape(B, -1).astype(jnp.float32)                 # (B, 784)
    x_emb = jnp.take(kparams["emb"], cond_class, axis=0)            # (B, 32)

    # Round batch up so the tile divides it exactly (>= 8 sublanes).
    tb = min(tile_b, max(8, _round_up(B, 8)))
    bp = _round_up(B, tb)
    if bp != B:
        x_img = jnp.pad(x_img, ((0, bp - B), (0, 0)))
        x_emb = jnp.pad(x_emb, ((0, bp - B), (0, 0)))

    resident = lambda shape: pl.BlockSpec(shape, lambda i: (0, 0))  # weights: stay put

    out = pl.pallas_call(
        cdisc_kernel,
        out_shape=jax.ShapeDtypeStruct((bp, OUT_PAD), jnp.float32),
        grid=(bp // tb,),
        in_specs=[
            pl.BlockSpec((tb, IMG_FEATS), lambda i: (i, 0)),        # image tile
            pl.BlockSpec((tb, EMB_SIZE), lambda i: (i, 0)),         # embedding tile
            resident((IMG_FEATS, H1_PAD)),
            resident((EMB_SIZE, H1_PAD)),
            resident((1, H1_PAD)),
            resident((H1_PAD, H2)),
            resident((1, H2)),
            resident((H2, H3)),
            resident((1, H3)),
            resident((H3, OUT_PAD)),
            resident((1, OUT_PAD)),
        ],
        out_specs=pl.BlockSpec((tb, OUT_PAD), lambda i: (i, 0)),    # lane-dense output
        compiler_params=pltpu.CompilerParams(
            dimension_semantics=("parallel",),        # megacore sharding on v7x
            vmem_limit_bytes=32 * 1024 * 1024,
        ),
    )(x_img, x_emb,
      kparams["w1_img"], kparams["w1_emb"], kparams["b1"],
      kparams["w2"], kparams["b2"],
      kparams["w3"], kparams["b3"],
      kparams["w4"], kparams["b4"])

    return out[:B, :1]


# ---------------------------------------------------------------------------
# Pure-JAX reference (mirrors the kernel's bf16-weight / f32-accum numerics).
# ---------------------------------------------------------------------------
def reference_forward(imgs, cond_class, params):
    B = imgs.shape[0]
    x = imgs.reshape(B, -1)
    x = jnp.concatenate([x, jnp.take(params["emb"], cond_class, axis=0)], axis=1)

    def lin(h, w, b):
        return jnp.dot(h.astype(jnp.bfloat16), w.astype(jnp.bfloat16),
                       preferred_element_type=jnp.float32) + b

    h = _leaky_relu(lin(x, params["w1"], params["b1"]))
    h = _leaky_relu(lin(h, params["w2"], params["b2"]))
    h = _leaky_relu(lin(h, params["w3"], params["b3"]))
    return lin(h, params["w4"], params["b4"])


if __name__ == "__main__":
    key = jax.random.PRNGKey(0)
    k_img, k_cls, k_par = jax.random.split(key, 3)

    B, C, H, W = 2, 1, 28, 28
    num_classes, emb_size = 10, 32

    imgs = jax.random.normal(k_img, (B, C, H, W), jnp.float32)
    cond_class = jax.random.randint(k_cls, (B,), 0, num_classes, jnp.int32)

    params = init_params(k_par, C * H * W, emb_size=emb_size, num_classes=num_classes)
    kparams = pack_params(params)

    logits = cdiscriminator_forward(imgs, cond_class, kparams)
    logits = jax.block_until_ready(logits)

    ref = reference_forward(imgs, cond_class, params)
    assert logits.shape == (B, 1)
    assert jnp.allclose(logits, ref, atol=1e-2, rtol=1e-2), (logits, ref)

    print("KERNEL_OK")
</pallas_src>

<mosaic_0001>
module attributes {stable_mosaic.version = 11 : i64} {
  func.func @cdisc_kernel(%arg0: i32, %arg1: memref<8x784xf32, #tpu.memory_space<vmem>>, %arg2: memref<8x32xf32, #tpu.memory_space<vmem>>, %arg3: memref<784x896xbf16, #tpu.memory_space<vmem>>, %arg4: memref<32x896xbf16, #tpu.memory_space<vmem>>, %arg5: memref<1x896xf32, #tpu.memory_space<vmem>>, %arg6: memref<896x512xbf16, #tpu.memory_space<vmem>>, %arg7: memref<1x512xf32, #tpu.memory_space<vmem>>, %arg8: memref<512x256xbf16, #tpu.memory_space<vmem>>, %arg9: memref<1x256xf32, #tpu.memory_space<vmem>>, %arg10: memref<256x128xbf16, #tpu.memory_space<vmem>>, %arg11: memref<1x128xf32, #tpu.memory_space<vmem>>, %arg12: memref<8x128xf32, #tpu.memory_space<vmem>>) attributes {dimension_semantics = [#tpu.dimension_semantics<parallel>], iteration_bounds = array<i64: 1>, scalar_prefetch = 0 : i64, scratch_operands = 0 : i64, tpu.core_type = #tpu.core_type<tc>, window_params = [{transform_indices = @transform_0, window_bounds = array<i64: 8, 784>}, {transform_indices = @transform_1, window_bounds = array<i64: 8, 32>}, {pipeline_mode = #tpu.pipeline_mode<synchronous>, transform_indices = @transform_2, window_bounds = array<i64: 784, 896>}, {pipeline_mode = #tpu.pipeline_mode<synchronous>, transform_indices = @transform_3, window_bounds = array<i64: 32, 896>}, {pipeline_mode = #tpu.pipeline_mode<synchronous>, transform_indices = @transform_4, window_bounds = array<i64: 1, 896>}, {pipeline_mode = #tpu.pipeline_mode<synchronous>, transform_indices = @transform_5, window_bounds = array<i64: 896, 512>}, {pipeline_mode = #tpu.pipeline_mode<synchronous>, transform_indices = @transform_6, window_bounds = array<i64: 1, 512>}, {pipeline_mode = #tpu.pipeline_mode<synchronous>, transform_indices = @transform_7, window_bounds = array<i64: 512, 256>}, {pipeline_mode = #tpu.pipeline_mode<synchronous>, transform_indices = @transform_8, window_bounds = array<i64: 1, 256>}, {pipeline_mode = #tpu.pipeline_mode<synchronous>, transform_indices = @transform_9, window_bounds = array<i64: 256, 128>}, {pipeline_mode = #tpu.pipeline_mode<synchronous>, transform_indices = @transform_10, window_bounds = array<i64: 1, 128>}, {transform_indices = @transform_11, window_bounds = array<i64: 8, 128>}]} {
    %c0 = arith.constant 0 : index
    %c0_0 = arith.constant 0 : index
    %0 = vector.load %arg1[%c0, %c0_0] : memref<8x784xf32, #tpu.memory_space<vmem>>, vector<8x784xf32>
    %1 = arith.truncf %0 : vector<8x784xf32> to vector<8x784xbf16>
    %c0_1 = arith.constant 0 : index
    %c0_2 = arith.constant 0 : index
    %2 = vector.load %arg2[%c0_1, %c0_2] : memref<8x32xf32, #tpu.memory_space<vmem>>, vector<8x32xf32>
    %3 = arith.truncf %2 : vector<8x32xf32> to vector<8x32xbf16>
    %c0_3 = arith.constant 0 : index
    %c0_4 = arith.constant 0 : index
    %4 = vector.load %arg3[%c0_3, %c0_4] : memref<784x896xbf16, #tpu.memory_space<vmem>>, vector<784x896xbf16>
    %cst = arith.constant dense<0.000000e+00> : vector<8x896xf32>
    %5 = tpu.matmul %1, %4, %cst {dimension_numbers = #tpu.dot_dimension_numbers<[1], [0], [0], [1], [0, 0, 1, 1], [], []>} : vector<8x784xbf16>, vector<784x896xbf16>, vector<8x896xf32> -> vector<8x896xf32>
    %c0_5 = arith.constant 0 : index
    %c0_6 = arith.constant 0 : index
    %6 = vector.load %arg4[%c0_5, %c0_6] : memref<32x896xbf16, #tpu.memory_space<vmem>>, vector<32x896xbf16>
    %cst_7 = arith.constant dense<0.000000e+00> : vector<8x896xf32>
    %7 = tpu.matmul %3, %6, %cst_7 {dimension_numbers = #tpu.dot_dimension_numbers<[1], [0], [0], [1], [0, 0, 1, 1], [], []>} : vector<8x32xbf16>, vector<32x896xbf16>, vector<8x896xf32> -> vector<8x896xf32>
    %8 = arith.addf %5, %7 : vector<8x896xf32>
    %c0_8 = arith.constant 0 : index
    %c0_9 = arith.constant 0 : index
    %9 = vector.load %arg5[%c0_8, %c0_9] : memref<1x896xf32, #tpu.memory_space<vmem>>, vector<1x896xf32>
    %10 = vector.broadcast %9 : vector<1x896xf32> to vector<8x896xf32>
    %11 = arith.addf %8, %10 : vector<8x896xf32>
    %cst_10 = arith.constant 0.000000e+00 : f32
    %12 = vector.broadcast %cst_10 : f32 to vector<8x896xf32>
    %13 = arith.cmpf ogt, %11, %12 : vector<8x896xf32>
    %cst_11 = arith.constant 1.000000e-01 : f32
    %14 = vector.broadcast %cst_11 : f32 to vector<8x896xf32>
    %15 = arith.mulf %14, %11 : vector<8x896xf32>
    %16 = arith.select %13, %11, %15 : vector<8x896xi1>, vector<8x896xf32>
    %17 = arith.truncf %16 : vector<8x896xf32> to vector<8x896xbf16>
    %c0_12 = arith.constant 0 : index
    %c0_13 = arith.constant 0 : index
    %18 = vector.load %arg6[%c0_12, %c0_13] : memref<896x512xbf16, #tpu.memory_space<vmem>>, vector<896x512xbf16>
    %cst_14 = arith.constant dense<0.000000e+00> : vector<8x512xf32>
    %19 = tpu.matmul %17, %18, %cst_14 {dimension_numbers = #tpu.dot_dimension_numbers<[1], [0], [0], [1], [0, 0, 1, 1], [], []>} : vector<8x896xbf16>, vector<896x512xbf16>, vector<8x512xf32> -> vector<8x512xf32>
    %c0_15 = arith.constant 0 : index
    %c0_16 = arith.constant 0 : index
    %20 = vector.load %arg7[%c0_15, %c0_16] : memref<1x512xf32, #tpu.memory_space<vmem>>, vector<1x512xf32>
    %21 = vector.broadcast %20 : vector<1x512xf32> to vector<8x512xf32>
    %22 = arith.addf %19, %21 : vector<8x512xf32>
    %cst_17 = arith.constant 0.000000e+00 : f32
    %23 = vector.broadcast %cst_17 : f32 to vector<8x512xf32>
    %24 = arith.cmpf ogt, %22, %23 : vector<8x512xf32>
    %cst_18 = arith.constant 1.000000e-01 : f32
    %25 = vector.broadcast %cst_18 : f32 to vector<8x512xf32>
    %26 = arith.mulf %25, %22 : vector<8x512xf32>
    %27 = arith.select %24, %22, %26 : vector<8x512xi1>, vector<8x512xf32>
    %28 = arith.truncf %27 : vector<8x512xf32> to vector<8x512xbf16>
    %c0_19 = arith.constant 0 : index
    %c0_20 = arith.constant 0 : index
    %29 = vector.load %arg8[%c0_19, %c0_20] : memref<512x256xbf16, #tpu.memory_space<vmem>>, vector<512x256xbf16>
    %cst_21 = arith.constant dense<0.000000e+00> : vector<8x256xf32>
    %30 = tpu.matmul %28, %29, %cst_21 {dimension_numbers = #tpu.dot_dimension_numbers<[1], [0], [0], [1], [0, 0, 1, 1], [], []>} : vector<8x512xbf16>, vector<512x256xbf16>, vector<8x256xf32> -> vector<8x256xf32>
    %c0_22 = arith.constant 0 : index
    %c0_23 = arith.constant 0 : index
    %31 = vector.load %arg9[%c0_22, %c0_23] : memref<1x256xf32, #tpu.memory_space<vmem>>, vector<1x256xf32>
    %32 = vector.broadcast %31 : vector<1x256xf32> to vector<8x256xf32>
    %33 = arith.addf %30, %32 : vector<8x256xf32>
    %cst_24 = arith.constant 0.000000e+00 : f32
    %34 = vector.broadcast %cst_24 : f32 to vector<8x256xf32>
    %35 = arith.cmpf ogt, %33, %34 : vector<8x256xf32>
    %cst_25 = arith.constant 1.000000e-01 : f32
    %36 = vector.broadcast %cst_25 : f32 to vector<8x256xf32>
    %37 = arith.mulf %36, %33 : vector<8x256xf32>
    %38 = arith.select %35, %33, %37 : vector<8x256xi1>, vector<8x256xf32>
    %39 = arith.truncf %38 : vector<8x256xf32> to vector<8x256xbf16>
    %c0_26 = arith.constant 0 : index
    %c0_27 = arith.constant 0 : index
    %40 = vector.load %arg10[%c0_26, %c0_27] : memref<256x128xbf16, #tpu.memory_space<vmem>>, vector<256x128xbf16>
    %cst_28 = arith.constant dense<0.000000e+00> : vector<8x128xf32>
    %41 = tpu.matmul %39, %40, %cst_28 {dimension_numbers = #tpu.dot_dimension_numbers<[1], [0], [0], [1], [0, 0, 1, 1], [], []>} : vector<8x256xbf16>, vector<256x128xbf16>, vector<8x128xf32> -> vector<8x128xf32>
    %c0_29 = arith.constant 0 : index
    %c0_30 = arith.constant 0 : index
    %42 = vector.load %arg11[%c0_29, %c0_30] : memref<1x128xf32, #tpu.memory_space<vmem>>, vector<1x128xf32>
    %43 = vector.broadcast %42 : vector<1x128xf32> to vector<8x128xf32>
    %44 = arith.addf %41, %43 : vector<8x128xf32>
    %c0_31 = arith.constant 0 : index
    %c0_32 = arith.constant 0 : index
    %45 = vector.load %arg12[%c0_31, %c0_32] : memref<8x128xf32, #tpu.memory_space<vmem>>, vector<8x128xf32>
    tpu.vector_store %arg12[%c0_31, %c0_32], %44 {strides = array<i32>} : memref<8x128xf32, #tpu.memory_space<vmem>>, vector<8x128xf32>,
    return
  }
  func.func @transform_0(%arg0: i32) -> (i32, i32) {
    %c0_i32 = arith.constant 0 : i32
    %c0_i32_0 = arith.constant 0 : i32
    return %arg0, %c0_i32 : i32, i32
  }
  func.func @transform_1(%arg0: i32) -> (i32, i32) {
    %c0_i32 = arith.constant 0 : i32
    %c0_i32_0 = arith.constant 0 : i32
    return %arg0, %c0_i32 : i32, i32
  }
  func.func @transform_2(%arg0: i32) -> (i32, i32) {
    %c0_i32 = arith.constant 0 : i32
    %c0_i32_0 = arith.constant 0 : i32
    %c0_i32_1 = arith.constant 0 : i32
    return %c0_i32, %c0_i32_0 : i32, i32
  }
  func.func @transform_3(%arg0: i32) -> (i32, i32) {
    %c0_i32 = arith.constant 0 : i32
    %c0_i32_0 = arith.constant 0 : i32
    %c0_i32_1 = arith.constant 0 : i32
    return %c0_i32, %c0_i32_0 : i32, i32
  }
  func.func @transform_4(%arg0: i32) -> (i32, i32) {
    %c0_i32 = arith.constant 0 : i32
    %c0_i32_0 = arith.constant 0 : i32
    %c0_i32_1 = arith.constant 0 : i32
    return %c0_i32, %c0_i32_0 : i32, i32
  }
  func.func @transform_5(%arg0: i32) -> (i32, i32) {
    %c0_i32 = arith.constant 0 : i32
    %c0_i32_0 = arith.constant 0 : i32
    %c0_i32_1 = arith.constant 0 : i32
    return %c0_i32, %c0_i32_0 : i32, i32
  }
  func.func @transform_6(%arg0: i32) -> (i32, i32) {
    %c0_i32 = arith.constant 0 : i32
    %c0_i32_0 = arith.constant 0 : i32
    %c0_i32_1 = arith.constant 0 : i32
    return %c0_i32, %c0_i32_0 : i32, i32
  }
  func.func @transform_7(%arg0: i32) -> (i32, i32) {
    %c0_i32 = arith.constant 0 : i32
    %c0_i32_0 = arith.constant 0 : i32
    %c0_i32_1 = arith.constant 0 : i32
    return %c0_i32, %c0_i32_0 : i32, i32
  }
  func.func @transform_8(%arg0: i32) -> (i32, i32) {
    %c0_i32 = arith.constant 0 : i32
    %c0_i32_0 = arith.constant 0 : i32
    %c0_i32_1 = arith.constant 0 : i32
    return %c0_i32, %c0_i32_0 : i32, i32
  }
  func.func @transform_9(%arg0: i32) -> (i32, i32) {
    %c0_i32 = arith.constant 0 : i32
    %c0_i32_0 = arith.constant 0 : i32
    %c0_i32_1 = arith.constant 0 : i32
    return %c0_i32, %c0_i32_0 : i32, i32
  }
  func.func @transform_10(%arg0: i32) -> (i32, i32) {
    %c0_i32 = arith.constant 0 : i32
    %c0_i32_0 = arith.constant 0 : i32
    %c0_i32_1 = arith.constant 0 : i32
    return %c0_i32, %c0_i32_0 : i32, i32
  }
  func.func @transform_11(%arg0: i32) -> (i32, i32) {
    %c0_i32 = arith.constant 0 : i32
    %c0_i32_0 = arith.constant 0 : i32
    return %arg0, %c0_i32 : i32, i32
  }
}

</mosaic_0001>

<llo_original>
// kernel: tpu_custom_call.1
$region0: #{tpu_custom_call.1}
  #allocation0 [shape = 'u32[]', space=smem, size = 0x4, offset = 0x4, fixed_abs, tag = 'smem constant byte address 0x4 - core index']
  #allocation1 [shape = 'u32[144,128]{1,0:T(1,128)}', space=vmem, size = 0x12000, scoped, tag = 'internal scratch']
  %s0 = inlined_call_operand.hbm [shape: f32[8,784], index: 0, kind: input, shape index: {}]
  %s1 = inlined_call_operand.hbm [shape: f32[8,32], index: 1, kind: input, shape index: {}]
  %s2 = inlined_call_operand.hbm [shape: bf16[784,896], index: 2, kind: input, shape index: {}]
  %s3 = inlined_call_operand.hbm [shape: bf16[32,896], index: 3, kind: input, shape index: {}]
  %s4 = inlined_call_operand.hbm [shape: f32[1,896], index: 4, kind: input, shape index: {}]
  %s5 = inlined_call_operand.hbm [shape: bf16[896,512], index: 5, kind: input, shape index: {}]
  %s6 = inlined_call_operand.hbm [shape: f32[1,512], index: 6, kind: input, shape index: {}]
  %s7 = inlined_call_operand.hbm [shape: bf16[512,256], index: 7, kind: input, shape index: {}]
  %s8 = inlined_call_operand.hbm [shape: f32[1,256], index: 8, kind: input, shape index: {}]
  %s9 = inlined_call_operand.hbm [shape: bf16[256,128], index: 9, kind: input, shape index: {}]
  %s10 = inlined_call_operand.hbm [shape: f32[1,128], index: 10, kind: input, shape index: {}]
  %s11 = inlined_call_operand.hbm [shape: f32[8,128], index: 11, kind: output, shape index: {}]
  %s12 = sld [smem:[#allocation0]]
  $region98: #{tpu_custom_call.1} parent=0
    _
  %s14 = ssub.s32 1, %s12
  %s15 = scalar_select 0, %s14, %s12
  $region1: #{tpu_custom_call.1} parent=0
    #allocation2 [shape = 'u8[28672]{0}', space=vmem, size = 0x7000, scoped, tag = 'input window, operand 0, single buffered']
    #allocation3 [shape = 's32[1]{0}', space=sflag, size = 0x4, scoped, tag = 'scoped memory for tpu_custom_call.1']
    #allocation4 [shape = 's32[1]{0}', space=sflag, size = 0x4, scoped, tag = 'scoped memory for tpu_custom_call.1']
    #allocation5 [shape = 'u8[4096]{0}', space=vmem, size = 0x1000, scoped, tag = 'input window, operand 1, single buffered']
    #allocation6 [shape = 's32[1]{0}', space=sflag, size = 0x4, scoped, tag = 'scoped memory for tpu_custom_call.1']
    #allocation7 [shape = 'u8[1404928]{0}', space=vmem, size = 0x157000, scoped, tag = 'input window, operand 2, single buffered']
    #allocation8 [shape = 'u8[57344]{0}', space=vmem, size = 0xe000, scoped, tag = 'input window, operand 3, single buffered']
    #allocation9 [shape = 's32[1]{0}', space=sflag, size = 0x4, scoped, tag = 'scoped memory for tpu_custom_call.1']
    #allocation10 [shape = 'u8[3584]{0}', space=vmem, size = 0x1000, scoped, tag = 'input window, operand 4, single buffered']
    #allocation11 [shape = 'u8[917504]{0}', space=vmem, size = 0xe0000, scoped, tag = 'input window, operand 5, single buffered']
    #allocation12 [shape = 's32[1]{0}', space=sflag, size = 0x4, scoped, tag = 'scoped memory for tpu_custom_call.1']
    #allocation13 [shape = 'u8[2048]{0}', space=vmem, size = 0x800, scoped, tag = 'input window, operand 6, single buffered']
    #allocation14 [shape = 'u8[262144]{0}', space=vmem, size = 0x40000, scoped, tag = 'input window, operand 7, single buffered']
    #allocation15 [shape = 's32[1]{0}', space=sflag, size = 0x4, scoped, tag = 'scoped memory for tpu_custom_call.1']
    #allocation16 [shape = 'u8[1024]{0}', space=vmem, size = 0x400, scoped, tag = 'input window, operand 8, single buffered']
    #allocation17 [shape = 'u8[65536]{0}', space=vmem, size = 0x10000, scoped, tag = 'input window, operand 9, single buffered']
    #allocation18 [shape = 's32[1]{0}', space=sflag, size = 0x4, scoped, tag = 'scoped memory for tpu_custom_call.1']
    #allocation19 [shape = 'u8[512]{0}', space=vmem, size = 0x400, scoped, tag = 'input window, operand 10, single buffered']
    #allocation20 [shape = 'u8[4096]{0}', space=vmem, size = 0x1000, scoped, tag = 'output window, operand 0, single buffered']
    %16 = vsyncpa [#allocation3], 0
    %17 = vsyncpa [#allocation6], 0
    %18 = vsyncpa [#allocation9], 0
    %19 = vsyncpa [#allocation12], 0
    %20 = vsyncpa [#allocation15], 0
    %21 = vsyncpa [#allocation18], 0
    %22 = vsyncpa [#allocation4], 0
    // Predicated region
    $region2: #{tpu_custom_call.1} parent=1 // pred_check
      _
    $region3: #{tpu_custom_call.1} parent=1 // pred_check_branch
      %24 = sbr.rel (0) target = $region5
    $region4: #{tpu_custom_call.1} parent=1 // pred_region
      %s26 = ssub.s32 896, 896
      %27 = vsyncadd [#allocation3], %s26
      %s29 = sshll.u32 [#allocation2], 4
      %s30 = int_to_ptr.vmem [resolvable:$true] %s29
      %32 = dma.hbm_to_vmem [thread:$0]  %s0, 896, %s30, [#allocation3]
    $region5: #{tpu_custom_call.1} parent=1 // pred_fallthru
      _
    // Predicated region
    $region6: #{tpu_custom_call.1} parent=1 // pred_check
      _
    $region7: #{tpu_custom_call.1} parent=1 // pred_check_branch
      %34 = sbr.rel (0) target = $region9
    $region8: #{tpu_custom_call.1} parent=1 // pred_region
      %s36 = ssub.s32 128, 128
      %37 = vsyncadd [#allocation6], %s36
      %s39 = sshll.u32 [#allocation5], 4
      %s40 = int_to_ptr.vmem [resolvable:$true] %s39
      %42 = dma.hbm_to_vmem [thread:$0]  %s1, 128, %s40, [#allocation6]
    $region9: #{tpu_custom_call.1} parent=1 // pred_fallthru
      _
    // Predicated region
    $region10: #{tpu_custom_call.1} parent=1 // pred_check
      _
    $region11: #{tpu_custom_call.1} parent=1 // pred_check_branch
      %44 = sbr.rel (0) target = $region13
    $region12: #{tpu_custom_call.1} parent=1 // pred_region
      %s46 = ssub.s32 43904, 43904
      %47 = vsyncadd [#allocation6], %s46
      %s48 = sshll.u32 [#allocation7], 4
      %s49 = int_to_ptr.vmem [resolvable:$true] %s48
      %54 = dma.hbm_to_vmem [thread:$0]  %s2, 43904, %s49, [#allocation6], 448, 448, 28
    $region13: #{tpu_custom_call.1} parent=1 // pred_fallthru
      _
    // Predicated region
    $region14: #{tpu_custom_call.1} parent=1 // pred_check
      _
    $region15: #{tpu_custom_call.1} parent=1 // pred_check_branch
      %56 = sbr.rel (0) target = $region17
    $region16: #{tpu_custom_call.1} parent=1 // pred_region
      %s58 = ssub.s32 1792, 1792
      %59 = vsyncadd [#allocation9], %s58
      %s60 = sshll.u32 [#allocation8], 4
      %s61 = int_to_ptr.vmem [resolvable:$true] %s60
      %66 = dma.hbm_to_vmem [thread:$0]  %s3, 1792, %s61, [#allocation9], 448, 448, 28
    $region17: #{tpu_custom_call.1} parent=1 // pred_fallthru
      _
    // Predicated region
    $region18: #{tpu_custom_call.1} parent=1 // pred_check
      _
    $region19: #{tpu_custom_call.1} parent=1 // pred_check_branch
      %68 = sbr.rel (0) target = $region21
    $region20: #{tpu_custom_call.1} parent=1 // pred_region
      %s70 = ssub.s32 112, 112
      %71 = vsyncadd [#allocation9], %s70
      %s73 = sshll.u32 [#allocation10], 4
      %s74 = int_to_ptr.vmem [resolvable:$true] %s73
      %76 = dma.hbm_to_vmem [thread:$0]  %s4, 112, %s74, [#allocation9]
    $region21: #{tpu_custom_call.1} parent=1 // pred_fallthru
      _
    // Predicated region
    $region22: #{tpu_custom_call.1} parent=1 // pred_check
      _
    $region23: #{tpu_custom_call.1} parent=1 // pred_check_branch
      %78 = sbr.rel (0) target = $region25
    $region24: #{tpu_custom_call.1} parent=1 // pred_region
      %s80 = ssub.s32 28672, 28672
      %81 = vsyncadd [#allocation12], %s80
      %s82 = sshll.u32 [#allocation11], 4
      %s83 = int_to_ptr.vmem [resolvable:$true] %s82
      %88 = dma.hbm_to_vmem [thread:$0]  %s5, 28672, %s83, [#allocation12], 256, 256, 16
    $region25: #{tpu_custom_call.1} parent=1 // pred_fallthru
      _
    // Predicated region
    $region26: #{tpu_custom_call.1} parent=1 // pred_check
      _
    $region27: #{tpu_custom_call.1} parent=1 // pred_check_branch
      %90 = sbr.rel (0) target = $region29
    $region28: #{tpu_custom_call.1} parent=1 // pred_region
      %s92 = ssub.s32 64, 64
      %93 = vsyncadd [#allocation12], %s92
      %s95 = sshll.u32 [#allocation13], 4
      %s96 = int_to_ptr.vmem [resolvable:$true] %s95
      %98 = dma.hbm_to_vmem [thread:$0]  %s6, 64, %s96, [#allocation12]
    $region29: #{tpu_custom_call.1} parent=1 // pred_fallthru
      _
    // Predicated region
    $region30: #{tpu_custom_call.1} parent=1 // pred_check
      _
    $region31: #{tpu_custom_call.1} parent=1 // pred_check_branch
      %100 = sbr.rel (0) target = $region33
    $region32: #{tpu_custom_call.1} parent=1 // pred_region
      %s102 = ssub.s32 8192, 8192
      %103 = vsyncadd [#allocation15], %s102
      %s104 = sshll.u32 [#allocation14], 4
      %s105 = int_to_ptr.vmem [resolvable:$true] %s104
      %110 = dma.hbm_to_vmem [thread:$0]  %s7, 8192, %s105, [#allocation15], 128, 128, 8
    $region33: #{tpu_custom_call.1} parent=1 // pred_fallthru
      _
    // Predicated region
    $region34: #{tpu_custom_call.1} parent=1 // pred_check
      _
    $region35: #{tpu_custom_call.1} parent=1 // pred_check_branch
      %112 = sbr.rel (0) target = $region37
    $region36: #{tpu_custom_call.1} parent=1 // pred_region
      %s114 = ssub.s32 32, 32
      %115 = vsyncadd [#allocation15], %s114
      %s117 = sshll.u32 [#allocation16], 4
      %s118 = int_to_ptr.vmem [resolvable:$true] %s117
      %120 = dma.hbm_to_vmem [thread:$0]  %s8, 32, %s118, [#allocation15]
    $region37: #{tpu_custom_call.1} parent=1 // pred_fallthru
      _
    // Predicated region
    $region38: #{tpu_custom_call.1} parent=1 // pred_check
      _
    $region39: #{tpu_custom_call.1} parent=1 // pred_check_branch
      %122 = sbr.rel (0) target = $region41
    $region40: #{tpu_custom_call.1} parent=1 // pred_region
      %s124 = ssub.s32 2048, 2048
      %125 = vsyncadd [#allocation18], %s124
      %s126 = sshll.u32 [#allocation17], 4
      %s127 = int_to_ptr.vmem [resolvable:$true] %s126
      %132 = dma.hbm_to_vmem [thread:$0]  %s9, 2048, %s127, [#allocation18], 64, 64, 4
    $region41: #{tpu_custom_call.1} parent=1 // pred_fallthru
      _
    // Predicated region
    $region42: #{tpu_custom_call.1} parent=1 // pred_check
      _
    $region43: #{tpu_custom_call.1} parent=1 // pred_check_branch
      %134 = sbr.rel (0) target = $region45
    $region44: #{tpu_custom_call.1} parent=1 // pred_region
      %s136 = ssub.s32 16, 16
      %137 = vsyncadd [#allocation18], %s136
      %s139 = sshll.u32 [#allocation19], 4
      %s140 = int_to_ptr.vmem [resolvable:$true] %s139
      %142 = dma.hbm_to_vmem [thread:$0]  %s10, 16, %s140, [#allocation18]
    $region45: #{tpu_custom_call.1} parent=1 // pred_fallthru
      _
    // Predicated region
    $region46: #{tpu_custom_call.1} parent=1 // pred_check
      _
    $region47: #{tpu_custom_call.1} parent=1 // pred_check_branch
      %144 = sbr.rel (0) target = $region49
    $region48: #{tpu_custom_call.1} parent=1 // pred_region
      %145 = dma.done [#allocation3], 896
    $region49: #{tpu_custom_call.1} parent=1 // pred_fallthru
      _
    // Predicated region
    $region50: #{tpu_custom_call.1} parent=1 // pred_check
      _
    $region51: #{tpu_custom_call.1} parent=1 // pred_check_branch
      %147 = sbr.rel (0) target = $region53
    $region52: #{tpu_custom_call.1} parent=1 // pred_region
      %148 = dma.done [#allocation6], 128
    $region53: #{tpu_custom_call.1} parent=1 // pred_fallthru
      _
    // Predicated region
    $region54: #{tpu_custom_call.1} parent=1 // pred_check
      _
    $region55: #{tpu_custom_call.1} parent=1 // pred_check_branch
      %150 = sbr.rel (0) target = $region57
    $region56: #{tpu_custom_call.1} parent=1 // pred_region
      %151 = dma.done [#allocation6], 43904
    $region57: #{tpu_custom_call.1} parent=1 // pred_fallthru
      _
    // Predicated region
    $region58: #{tpu_custom_call.1} parent=1 // pred_check
      _
    $region59: #{tpu_custom_call.1} parent=1 // pred_check_branch
      %153 = sbr.rel (0) target = $region61
    $region60: #{tpu_custom_call.1} parent=1 // pred_region
      %154 = dma.done [#allocation9], 1792
    $region61: #{tpu_custom_call.1} parent=1 // pred_fallthru
      _
    // Predicated region
    $region62: #{tpu_custom_call.1} parent=1 // pred_check
      _
    $region63: #{tpu_custom_call.1} parent=1 // pred_check_branch
      %156 = sbr.rel (0) target = $region65
    $region64: #{tpu_custom_call.1} parent=1 // pred_region
      %157 = dma.done [#allocation9], 112
    $region65: #{tpu_custom_call.1} parent=1 // pred_fallthru
      _
    // Predicated region
    $region66: #{tpu_custom_call.1} parent=1 // pred_check
      _
    $region67: #{tpu_custom_call.1} parent=1 // pred_check_branch
      %159 = sbr.rel (0) target = $region69
    $region68: #{tpu_custom_call.1} parent=1 // pred_region
      %160 = dma.done [#allocation12], 28672
    $region69: #{tpu_custom_call.1} parent=1 // pred_fallthru
      _
    // Predicated region
    $region70: #{tpu_custom_call.1} parent=1 // pred_check
      _
    $region71: #{tpu_custom_call.1} parent=1 // pred_check_branch
      %162 = sbr.rel (0) target = $region73
    $region72: #{tpu_custom_call.1} parent=1 // pred_region
      %163 = dma.done [#allocation12], 64
    $region73: #{tpu_custom_call.1} parent=1 // pred_fallthru
      _
    // Predicated region
    $region74: #{tpu_custom_call.1} parent=1 // pred_check
      _
    $region75: #{tpu_custom_call.1} parent=1 // pred_check_branch
      %165 = sbr.rel (0) target = $region77
    $region76: #{tpu_custom_call.1} parent=1 // pred_region
      %166 = dma.done [#allocation15], 8192
    $region77: #{tpu_custom_call.1} parent=1 // pred_fallthru
      _
    // Predicated region
    $region78: #{tpu_custom_call.1} parent=1 // pred_check
      _
    $region79: #{tpu_custom_call.1} parent=1 // pred_check_branch
      %168 = sbr.rel (0) target = $region81
    $region80: #{tpu_custom_call.1} parent=1 // pred_region
      %169 = dma.done [#allocation15], 32
    $region81: #{tpu_custom_call.1} parent=1 // pred_fallthru
      _
    // Predicated region
    $region82: #{tpu_custom_call.1} parent=1 // pred_check
      _
    $region83: #{tpu_custom_call.1} parent=1 // pred_check_branch
      %171 = sbr.rel (0) target = $region85
    $region84: #{tpu_custom_call.1} parent=1 // pred_region
      %172 = dma.done [#allocation18], 2048
    $region85: #{tpu_custom_call.1} parent=1 // pred_fallthru
      _
    // Predicated region
    $region86: #{tpu_custom_call.1} parent=1 // pred_check
      _
    $region87: #{tpu_custom_call.1} parent=1 // pred_check_branch
      %174 = sbr.rel (0) target = $region89
    $region88: #{tpu_custom_call.1} parent=1 // pred_region
      %175 = dma.done [#allocation18], 16
    $region89: #{tpu_custom_call.1} parent=1 // pred_fallthru
      _
    %v177 = vld [vmem:[#allocation2] sm:$0xff]
    %v178 = vld [vmem:[#allocation2 + $0x8] sm:$0xff]
    %v179 = vld [vmem:[#allocation2 + $0x10] sm:$0xff]
    %v180 = vld [vmem:[#allocation2 + $0x18] sm:$0xff]
    %v181 = vld [vmem:[#allocation2 + $0x20] sm:$0xff]
    %v182 = vld [vmem:[#allocation2 + $0x28] sm:$0xff]
    %v183 = vld [vmem:[#allocation2 + $0x30] sm:$0xff]
    %v184 = vpack.c.bf16 %v177, %v177
    %v185 = vpack.c.bf16 %v178, %v178
    %v186 = vpack.c.bf16 %v179, %v179
    %v187 = vpack.c.bf16 %v180, %v180
    %v188 = vpack.c.bf16 %v181, %v181
    %v189 = vpack.c.bf16 %v182, %v182
    %v190 = vpack.c.bf16 %v183, %v183
    %v191 = vld [vmem:[#allocation5] sm:$0xff]
    %v192 = vpack.c.bf16 %v191, %v191
    %v193 = vld [vmem:[#allocation7] sm:$0xff]
    %v194 = vld [vmem:[#allocation7 + $0x8] sm:$0xff]
    %v195 = vld [vmem:[#allocation7 + $0x10] sm:$0xff]
    %v196 = vld [vmem:[#allocation7 + $0x18] sm:$0xf]
    %v197 = vld [vmem:[#allocation7 + $0x1c] sm:$0xff]
    %v198 = vld [vmem:[#allocation7 + $0x24] sm:$0xff]
    %v199 = vld [vmem:[#allocation7 + $0x2c] sm:$0xff]
    %v200 = vld [vmem:[#allocation7 + $0x34] sm:$0xf]
    %v201 = vld [vmem:[#allocation7 + $0x38] sm:$0xff]
    %v202 = vld [vmem:[#allocation7 + $0x40] sm:$0xff]
    %v203 = vld [vmem:[#allocation7 + $0x48] sm:$0xff]
    %v204 = vld [vmem:[#allocation7 + $0x50] sm:$0xf]
    %v205 = vld [vmem:[#allocation7 + $0x54] sm:$0xff]
    %v206 = vld [vmem:[#allocation7 + $0x5c] sm:$0xff]
    %v207 = vld [vmem:[#allocation7 + $0x64] sm:$0xff]
    %v208 = vld [vmem:[#allocation7 + $0x6c] sm:$0xf]
    %v209 = vld [vmem:[#allocation7 + $0x70] sm:$0xff]
    %v210 = vld [vmem:[#allocation7 + $0x78] sm:$0xff]
    %v211 = vld [vmem:[#allocation7 + $0x80] sm:$0xff]
    %v212 = vld [vmem:[#allocation7 + $0x88] sm:$0xf]
    %v213 = vld [vmem:[#allocation7 + $0x8c] sm:$0xff]
    %v214 = vld [vmem:[#allocation7 + $0x94] sm:$0xff]
    %v215 = vld [vmem:[#allocation7 + $0x9c] sm:$0xff]
    %v216 = vld [vmem:[#allocation7 + $0xa4] sm:$0xf]
    %v217 = vld [vmem:[#allocation7 + $0xa8] sm:$0xff]
    %v218 = vld [vmem:[#allocation7 + $0xb0] sm:$0xff]
    %v219 = vld [vmem:[#allocation7 + $0xb8] sm:$0xff]
    %v220 = vld [vmem:[#allocation7 + $0xc0] sm:$0xf]
    %v221 = vld [vmem:[#allocation7 + $0xc4] sm:$0xff]
    %v222 = vld [vmem:[#allocation7 + $0xcc] sm:$0xff]
    %v223 = vld [vmem:[#allocation7 + $0xd4] sm:$0xff]
    %v224 = vld [vmem:[#allocation7 + $0xdc] sm:$0xf]
    %v225 = vld [vmem:[#allocation7 + $0xe0] sm:$0xff]
    %v226 = vld [vmem:[#allocation7 + $0xe8] sm:$0xff]
    %v227 = vld [vmem:[#allocation7 + $0xf0] sm:$0xff]
    %v228 = vld [vmem:[#allocation7 + $0xf8] sm:$0xf]
    %v229 = vld [vmem:[#allocation7 + $0xfc] sm:$0xff]
    %v230 = vld [vmem:[#allocation7 + $0x104] sm:$0xff]
    %v231 = vld [vmem:[#allocation7 + $0x10c] sm:$0xff]
    %v232 = vld [vmem:[#allocation7 + $0x114] sm:$0xf]
    %v233 = vld [vmem:[#allocation7 + $0x118] sm:$0xff]
    %v234 = vld [vmem:[#allocation7 + $0x120] sm:$0xff]
    %v235 = vld [vmem:[#allocation7 + $0x128] sm:$0xff]
    %v236 = vld [vmem:[#allocation7 + $0x130] sm:$0xf]
    %v237 = vld [vmem:[#allocation7 + $0x134] sm:$0xff]
    %v238 = vld [vmem:[#allocation7 + $0x13c] sm:$0xff]
    %v239 = vld [vmem:[#allocation7 + $0x144] sm:$0xff]
    %v240 = vld [vmem:[#allocation7 + $0x14c] sm:$0xf]
    %v241 = vld [vmem:[#allocation7 + $0x150] sm:$0xff]
    %v242 = vld [vmem:[#allocation7 + $0x158] sm:$0xff]
    %v243 = vld [vmem:[#allocation7 + $0x160] sm:$0xff]
    %v244 = vld [vmem:[#allocation7 + $0x168] sm:$0xf]
    %v245 = vld [vmem:[#allocation7 + $0x16c] sm:$0xff]
    %v246 = vld [vmem:[#allocation7 + $0x174] sm:$0xff]
    %v247 = vld [vmem:[#allocation7 + $0x17c] sm:$0xff]
    %v248 = vld [vmem:[#allocation7 + $0x184] sm:$0xf]
    %v249 = vld [vmem:[#allocation7 + $0x188] sm:$0xff]
    %v250 = vld [vmem:[#allocation7 + $0x190] sm:$0xff]
    %v251 = vld [vmem:[#allocation7 + $0x198] sm:$0xff]
    %v252 = vld [vmem:[#allocation7 + $0x1a0] sm:$0xf]
    %v253 = vld [vmem:[#allocation7 + $0x1a4] sm:$0xff]
    %v254 = vld [vmem:[#allocation7 + $0x1ac] sm:$0xff]
    %v255 = vld [vmem:[#allocation7 + $0x1b4] sm:$0xff]
    %v256 = vld [vmem:[#allocation7 + $0x1bc] sm:$0xf]
    %v257 = vld [vmem:[#allocation7 + $0x1c0] sm:$0xff]
    %v258 = vld [vmem:[#allocation7 + $0x1c8] sm:$0xff]
    %v259 = vld [vmem:[#allocation7 + $0x1d0] sm:$0xff]
    %v260 = vld [vmem:[#allocation7 + $0x1d8] sm:$0xf]
    %v261 = vld [vmem:[#allocation7 + $0x1dc] sm:$0xff]
    %v262 = vld [vmem:[#allocation7 + $0x1e4] sm:$0xff]
    %v263 = vld [vmem:[#allocation7 + $0x1ec] sm:$0xff]
    %v264 = vld [vmem:[#allocation7 + $0x1f4] sm:$0xf]
    %v265 = vld [vmem:[#allocation7 + $0x1f8] sm:$0xff]
    %v266 = vld [vmem:[#allocation7 + $0x200] sm:$0xff]
    %v267 = vld [vmem:[#allocation7 + $0x208] sm:$0xff]
    %v268 = vld [vmem:[#allocation7 + $0x210] sm:$0xf]
    %v269 = vld [vmem:[#allocation7 + $0x214] sm:$0xff]
    %v270 = vld [vmem:[#allocation7 + $0x21c] sm:$0xff]
    %v271 = vld [vmem:[#allocation7 + $0x224] sm:$0xff]
    %v272 = vld [vmem:[#allocation7 + $0x22c] sm:$0xf]
    %v273 = vld [vmem:[#allocation7 + $0x230] sm:$0xff]
    %v274 = vld [vmem:[#allocation7 + $0x238] sm:$0xff]
    %v275 = vld [vmem:[#allocation7 + $0x240] sm:$0xff]
    %v276 = vld [vmem:[#allocation7 + $0x248] sm:$0xf]
    %v277 = vld [vmem:[#allocation7 + $0x24c] sm:$0xff]
    %v278 = vld [vmem:[#allocation7 + $0x254] sm:$0xff]
    %v279 = vld [vmem:[#allocation7 + $0x25c] sm:$0xff]
    %v280 = vld [vmem:[#allocation7 + $0x264] sm:$0xf]
    %v281 = vld [vmem:[#allocation7 + $0x268] sm:$0xff]
    %v282 = vld [vmem:[#allocation7 + $0x270] sm:$0xff]
    %v283 = vld [vmem:[#allocation7 + $0x278] sm:$0xff]
    %v284 = vld [vmem:[#allocation7 + $0x280] sm:$0xf]
    %v285 = vld [vmem:[#allocation7 + $0x284] sm:$0xff]
    %v286 = vld [vmem:[#allocation7 + $0x28c] sm:$0xff]
    %v287 = vld [vmem:[#allocation7 + $0x294] sm:$0xff]
    %v288 = vld [vmem:[#allocation7 + $0x29c] sm:$0xf]
    %v289 = vld [vmem:[#allocation7 + $0x2a0] sm:$0xff]
    %v290 = vld [vmem:[#allocation7 + $0x2a8] sm:$0xff]
    %v291 = vld [vmem:[#allocation7 + $0x2b0] sm:$0xff]
    %v292 = vld [vmem:[#allocation7 + $0x2b8] sm:$0xf]
    %v293 = vld [vmem:[#allocation7 + $0x2bc] sm:$0xff]
    %v294 = vld [vmem:[#allocation7 + $0x2c4] sm:$0xff]
    %v295 = vld [vmem:[#allocation7 + $0x2cc] sm:$0xff]
    %v296 = vld [vmem:[#allocation7 + $0x2d4] sm:$0xf]
    %v297 = vld [vmem:[#allocation7 + $0x2d8] sm:$0xff]
    %v298 = vld [vmem:[#allocation7 + $0x2e0] sm:$0xff]
    %v299 = vld [vmem:[#allocation7 + $0x2e8] sm:$0xff]
    %v300 = vld [vmem:[#allocation7 + $0x2f0] sm:$0xf]
    %v301 = vld [vmem:[#allocation7 + $0x2f4] sm:$0xff]
    %v302 = vld [vmem:[#allocation7 + $0x2fc] sm:$0xff]
    %v303 = vld [vmem:[#allocation7 + $0x304] sm:$0xff]
    %v304 = vld [vmem:[#allocation7 + $0x30c] sm:$0xf]
    %v305 = vld [vmem:[#allocation7 + $0x310] sm:$0xff]
    %v306 = vld [vmem:[#allocation7 + $0x318] sm:$0xff]
    %v307 = vld [vmem:[#allocation7 + $0x320] sm:$0xff]
    %v308 = vld [vmem:[#allocation7 + $0x328] sm:$0xf]
    %v309 = vld [vmem:[#allocation7 + $0x32c] sm:$0xff]
    %v310 = vld [vmem:[#allocation7 + $0x334] sm:$0xff]
    %v311 = vld [vmem:[#allocation7 + $0x33c] sm:$0xff]
    %v312 = vld [vmem:[#allocation7 + $0x344] sm:$0xf]
    %v313 = vld [vmem:[#allocation7 + $0x348] sm:$0xff]
    %v314 = vld [vmem:[#allocation7 + $0x350] sm:$0xff]
    %v315 = vld [vmem:[#allocation7 + $0x358] sm:$0xff]
    %v316 = vld [vmem:[#allocation7 + $0x360] sm:$0xf]
    %v317 = vld [vmem:[#allocation7 + $0x364] sm:$0xff]
    %v318 = vld [vmem:[#allocation7 + $0x36c] sm:$0xff]
    %v319 = vld [vmem:[#allocation7 + $0x374] sm:$0xff]
    %v320 = vld [vmem:[#allocation7 + $0x37c] sm:$0xf]
    %v321 = vld [vmem:[#allocation7 + $0x380] sm:$0xff]
    %v322 = vld [vmem:[#allocation7 + $0x388] sm:$0xff]
    %v323 = vld [vmem:[#allocation7 + $0x390] sm:$0xff]
    %v324 = vld [vmem:[#allocation7 + $0x398] sm:$0xf]
    %v325 = vld [vmem:[#allocation7 + $0x39c] sm:$0xff]
    %v326 = vld [vmem:[#allocation7 + $0x3a4] sm:$0xff]
    %v327 = vld [vmem:[#allocation7 + $0x3ac] sm:$0xff]
    %v328 = vld [vmem:[#allocation7 + $0x3b4] sm:$0xf]
    %v329 = vld [vmem:[#allocation7 + $0x3b8] sm:$0xff]
    %v330 = vld [vmem:[#allocation7 + $0x3c0] sm:$0xff]
    %v331 = vld [vmem:[#allocation7 + $0x3c8] sm:$0xff]
    %v332 = vld [vmem:[#allocation7 + $0x3d0] sm:$0xf]
    %v333 = vld [vmem:[#allocation7 + $0x3d4] sm:$0xff]
    %v334 = vld [vmem:[#allocation7 + $0x3dc] sm:$0xff]
    %v335 = vld [vmem:[#allocation7 + $0x3e4] sm:$0xff]
    %v336 = vld [vmem:[#allocation7 + $0x3ec] sm:$0xf]
    %v337 = vld [vmem:[#allocation7 + $0x3f0] sm:$0xff]
    %v338 = vld [vmem:[#allocation7 + $0x3f8] sm:$0xff]
    %v339 = vld [vmem:[#allocation7 + $0x400] sm:$0xff]
    %v340 = vld [vmem:[#allocation7 + $0x408] sm:$0xf]
    %v341 = vld [vmem:[#allocation7 + $0x40c] sm:$0xff]
    %v342 = vld [vmem:[#allocation7 + $0x414] sm:$0xff]
    %v343 = vld [vmem:[#allocation7 + $0x41c] sm:$0xff]
    %v344 = vld [vmem:[#allocation7 + $0x424] sm:$0xf]
    %v345 = vld [vmem:[#allocation7 + $0x428] sm:$0xff]
    %v346 = vld [vmem:[#allocation7 + $0x430] sm:$0xff]
    %v347 = vld [vmem:[#allocation7 + $0x438] sm:$0xff]
    %v348 = vld [vmem:[#allocation7 + $0x440] sm:$0xf]
    %v349 = vld [vmem:[#allocation7 + $0x444] sm:$0xff]
    %v350 = vld [vmem:[#allocation7 + $0x44c] sm:$0xff]
    %v351 = vld [vmem:[#allocation7 + $0x454] sm:$0xff]
    %v352 = vld [vmem:[#allocation7 + $0x45c] sm:$0xf]
    %v353 = vld [vmem:[#allocation7 + $0x460] sm:$0xff]
    %v354 = vld [vmem:[#allocation7 + $0x468] sm:$0xff]
    %v355 = vld [vmem:[#allocation7 + $0x470] sm:$0xff]
    %v356 = vld [vmem:[#allocation7 + $0x478] sm:$0xf]
    %v357 = vld [vmem:[#allocation7 + $0x47c] sm:$0xff]
    %v358 = vld [vmem:[#allocation7 + $0x484] sm:$0xff]
    %v359 = vld [vmem:[#allocation7 + $0x48c] sm:$0xff]
    %v360 = vld [vmem:[#allocation7 + $0x494] sm:$0xf]
    %v361 = vld [vmem:[#allocation7 + $0x498] sm:$0xff]
    %v362 = vld [vmem:[#allocation7 + $0x4a0] sm:$0xff]
    %v363 = vld [vmem:[#allocation7 + $0x4a8] sm:$0xff]
    %v364 = vld [vmem:[#allocation7 + $0x4b0] sm:$0xf]
    %v365 = vld [vmem:[#allocation7 + $0x4b4] sm:$0xff]
    %v366 = vld [vmem:[#allocation7 + $0x4bc] sm:$0xff]
    %v367 = vld [vmem:[#allocation7 + $0x4c4] sm:$0xff]
    %v368 = vld [vmem:[#allocation7 + $0x4cc] sm:$0xf]
    %v369 = vld [vmem:[#allocation7 + $0x4d0] sm:$0xff]
    %v370 = vld [vmem:[#allocation7 + $0x4d8] sm:$0xff]
    %v371 = vld [vmem:[#allocation7 + $0x4e0] sm:$0xff]
    %v372 = vld [vmem:[#allocation7 + $0x4e8] sm:$0xf]
    %v373 = vld [vmem:[#allocation7 + $0x4ec] sm:$0xff]
    %v374 = vld [vmem:[#allocation7 + $0x4f4] sm:$0xff]
    %v375 = vld [vmem:[#allocation7 + $0x4fc] sm:$0xff]
    %v376 = vld [vmem:[#allocation7 + $0x504] sm:$0xf]
    %v377 = vld [vmem:[#allocation7 + $0x508] sm:$0xff]
    %v378 = vld [vmem:[#allocation7 + $0x510] sm:$0xff]
    %v379 = vld [vmem:[#allocation7 + $0x518] sm:$0xff]
    %v380 = vld [vmem:[#allocation7 + $0x520] sm:$0xf]
    %v381 = vld [vmem:[#allocation7 + $0x524] sm:$0xff]
    %v382 = vld [vmem:[#allocation7 + $0x52c] sm:$0xff]
    %v383 = vld [vmem:[#allocation7 + $0x534] sm:$0xff]
    %v384 = vld [vmem:[#allocation7 + $0x53c] sm:$0xf]
    %v385 = vld [vmem:[#allocation7 + $0x540] sm:$0xff]
    %v386 = vld [vmem:[#allocation7 + $0x548] sm:$0xff]
    %v387 = vld [vmem:[#allocation7 + $0x550] sm:$0xff]
    %v388 = vld [vmem:[#allocation7 + $0x558] sm:$0xf]
    %v389 = vld [vmem:[#allocation7 + $0x55c] sm:$0xff]
    %v390 = vld [vmem:[#allocation7 + $0x564] sm:$0xff]
    %v391 = vld [vmem:[#allocation7 + $0x56c] sm:$0xff]
    %v392 = vld [vmem:[#allocation7 + $0x574] sm:$0xf]
    %v393 = vld [vmem:[#allocation7 + $0x578] sm:$0xff]
    %v394 = vld [vmem:[#allocation7 + $0x580] sm:$0xff]
    %v395 = vld [vmem:[#allocation7 + $0x588] sm:$0xff]
    %v396 = vld [vmem:[#allocation7 + $0x590] sm:$0xf]
    %v397 = vld [vmem:[#allocation7 + $0x594] sm:$0xff]
    %v398 = vld [vmem:[#allocation7 + $0x59c] sm:$0xff]
    %v399 = vld [vmem:[#allocation7 + $0x5a4] sm:$0xff]
    %v400 = vld [vmem:[#allocation7 + $0x5ac] sm:$0xf]
    %v401 = vld [vmem:[#allocation7 + $0x5b0] sm:$0xff]
    %v402 = vld [vmem:[#allocation7 + $0x5b8] sm:$0xff]
    %v403 = vld [vmem:[#allocation7 + $0x5c0] sm:$0xff]
    %v404 = vld [vmem:[#allocation7 + $0x5c8] sm:$0xf]
    %v405 = vld [vmem:[#allocation7 + $0x5cc] sm:$0xff]
    %v406 = vld [vmem:[#allocation7 + $0x5d4] sm:$0xff]
    %v407 = vld [vmem:[#allocation7 + $0x5dc] sm:$0xff]
    %v408 = vld [vmem:[#allocation7 + $0x5e4] sm:$0xf]
    %v409 = vld [vmem:[#allocation7 + $0x5e8] sm:$0xff]
    %v410 = vld [vmem:[#allocation7 + $0x5f0] sm:$0xff]
    %v411 = vld [vmem:[#allocation7 + $0x5f8] sm:$0xff]
    %v412 = vld [vmem:[#allocation7 + $0x600] sm:$0xf]
    %v413 = vld [vmem:[#allocation7 + $0x604] sm:$0xff]
    %v414 = vld [vmem:[#allocation7 + $0x60c] sm:$0xff]
    %v415 = vld [vmem:[#allocation7 + $0x614] sm:$0xff]
    %v416 = vld [vmem:[#allocation7 + $0x61c] sm:$0xf]
    %v417 = vld [vmem:[#allocation7 + $0x620] sm:$0xff]
    %v418 = vld [vmem:[#allocation7 + $0x628] sm:$0xff]
    %v419 = vld [vmem:[#allocation7 + $0x630] sm:$0xff]
    %v420 = vld [vmem:[#allocation7 + $0x638] sm:$0xf]
    %v421 = vld [vmem:[#allocation7 + $0x63c] sm:$0xff]
    %v422 = vld [vmem:[#allocation7 + $0x644] sm:$0xff]
    %v423 = vld [vmem:[#allocation7 + $0x64c] sm:$0xff]
    %v424 = vld [vmem:[#allocation7 + $0x654] sm:$0xf]
    %v425 = vld [vmem:[#allocation7 + $0x658] sm:$0xff]
    %v426 = vld [vmem:[#allocation7 + $0x660] sm:$0xff]
    %v427 = vld [vmem:[#allocation7 + $0x668] sm:$0xff]
    %v428 = vld [vmem:[#allocation7 + $0x670] sm:$0xf]
    %v429 = vld [vmem:[#allocation7 + $0x674] sm:$0xff]
    %v430 = vld [vmem:[#allocation7 + $0x67c] sm:$0xff]
    %v431 = vld [vmem:[#allocation7 + $0x684] sm:$0xff]
    %v432 = vld [vmem:[#allocation7 + $0x68c] sm:$0xf]
    %v433 = vld [vmem:[#allocation7 + $0x690] sm:$0xff]
    %v434 = vld [vmem:[#allocation7 + $0x698] sm:$0xff]
    %v435 = vld [vmem:[#allocation7 + $0x6a0] sm:$0xff]
    %v436 = vld [vmem:[#allocation7 + $0x6a8] sm:$0xf]
    %v437 = vld [vmem:[#allocation7 + $0x6ac] sm:$0xff]
    %v438 = vld [vmem:[#allocation7 + $0x6b4] sm:$0xff]
    %v439 = vld [vmem:[#allocation7 + $0x6bc] sm:$0xff]
    %v440 = vld [vmem:[#allocation7 + $0x6c4] sm:$0xf]
    %v441 = vld [vmem:[#allocation7 + $0x6c8] sm:$0xff]
    %v442 = vld [vmem:[#allocation7 + $0x6d0] sm:$0xff]
    %v443 = vld [vmem:[#allocation7 + $0x6d8] sm:$0xff]
    %v444 = vld [vmem:[#allocation7 + $0x6e0] sm:$0xf]
    %v445 = vld [vmem:[#allocation7 + $0x6e4] sm:$0xff]
    %v446 = vld [vmem:[#allocation7 + $0x6ec] sm:$0xff]
    %v447 = vld [vmem:[#allocation7 + $0x6f4] sm:$0xff]
    %v448 = vld [vmem:[#allocation7 + $0x6fc] sm:$0xf]
    %v449 = vld [vmem:[#allocation7 + $0x700] sm:$0xff]
    %v450 = vld [vmem:[#allocation7 + $0x708] sm:$0xff]
    %v451 = vld [vmem:[#allocation7 + $0x710] sm:$0xff]
    %v452 = vld [vmem:[#allocation7 + $0x718] sm:$0xf]
    %v453 = vld [vmem:[#allocation7 + $0x71c] sm:$0xff]
    %v454 = vld [vmem:[#allocation7 + $0x724] sm:$0xff]
    %v455 = vld [vmem:[#allocation7 + $0x72c] sm:$0xff]
    %v456 = vld [vmem:[#allocation7 + $0x734] sm:$0xf]
    %v457 = vld [vmem:[#allocation7 + $0x738] sm:$0xff]
    %v458 = vld [vmem:[#allocation7 + $0x740] sm:$0xff]
    %v459 = vld [vmem:[#allocation7 + $0x748] sm:$0xff]
    %v460 = vld [vmem:[#allocation7 + $0x750] sm:$0xf]
    %v461 = vld [vmem:[#allocation7 + $0x754] sm:$0xff]
    %v462 = vld [vmem:[#allocation7 + $0x75c] sm:$0xff]
    %v463 = vld [vmem:[#allocation7 + $0x764] sm:$0xff]
    %v464 = vld [vmem:[#allocation7 + $0x76c] sm:$0xf]
    %v465 = vld [vmem:[#allocation7 + $0x770] sm:$0xff]
    %v466 = vld [vmem:[#allocation7 + $0x778] sm:$0xff]
    %v467 = vld [vmem:[#allocation7 + $0x780] sm:$0xff]
    %v468 = vld [vmem:[#allocation7 + $0x788] sm:$0xf]
    %v469 = vld [vmem:[#allocation7 + $0x78c] sm:$0xff]
    %v470 = vld [vmem:[#allocation7 + $0x794] sm:$0xff]
    %v471 = vld [vmem:[#allocation7 + $0x79c] sm:$0xff]
    %v472 = vld [vmem:[#allocation7 + $0x7a4] sm:$0xf]
    %v473 = vld [vmem:[#allocation7 + $0x7a8] sm:$0xff]
    %v474 = vld [vmem:[#allocation7 + $0x7b0] sm:$0xff]
    %v475 = vld [vmem:[#allocation7 + $0x7b8] sm:$0xff]
    %v476 = vld [vmem:[#allocation7 + $0x7c0] sm:$0xf]
    %v477 = vld [vmem:[#allocation7 + $0x7c4] sm:$0xff]
    %v478 = vld [vmem:[#allocation7 + $0x7cc] sm:$0xff]
    %v479 = vld [vmem:[#allocation7 + $0x7d4] sm:$0xff]
    %v480 = vld [vmem:[#allocation7 + $0x7dc] sm:$0xf]
    %v481 = vld [vmem:[#allocation7 + $0x7e0] sm:$0xff]
    %v482 = vld [vmem:[#allocation7 + $0x7e8] sm:$0xff]
    %v483 = vld [vmem:[#allocation7 + $0x7f0] sm:$0xff]
    %v484 = vld [vmem:[#allocation7 + $0x7f8] sm:$0xf]
    %v485 = vld [vmem:[#allocation7 + $0x7fc] sm:$0xff]
    %v486 = vld [vmem:[#allocation7 + $0x804] sm:$0xff]
    %v487 = vld [vmem:[#allocation7 + $0x80c] sm:$0xff]
    %v488 = vld [vmem:[#allocation7 + $0x814] sm:$0xf]
    %v489 = vld [vmem:[#allocation7 + $0x818] sm:$0xff]
    %v490 = vld [vmem:[#allocation7 + $0x820] sm:$0xff]
    %v491 = vld [vmem:[#allocation7 + $0x828] sm:$0xff]
    %v492 = vld [vmem:[#allocation7 + $0x830] sm:$0xf]
    %v493 = vld [vmem:[#allocation7 + $0x834] sm:$0xff]
    %v494 = vld [vmem:[#allocation7 + $0x83c] sm:$0xff]
    %v495 = vld [vmem:[#allocation7 + $0x844] sm:$0xff]
    %v496 = vld [vmem:[#allocation7 + $0x84c] sm:$0xf]
    %v497 = vld [vmem:[#allocation7 + $0x850] sm:$0xff]
    %v498 = vld [vmem:[#allocation7 + $0x858] sm:$0xff]
    %v499 = vld [vmem:[#allocation7 + $0x860] sm:$0xff]
    %v500 = vld [vmem:[#allocation7 + $0x868] sm:$0xf]
    %v501 = vld [vmem:[#allocation7 + $0x86c] sm:$0xff]
    %v502 = vld [vmem:[#allocation7 + $0x874] sm:$0xff]
    %v503 = vld [vmem:[#allocation7 + $0x87c] sm:$0xff]
    %v504 = vld [vmem:[#allocation7 + $0x884] sm:$0xf]
    %v505 = vld [vmem:[#allocation7 + $0x888] sm:$0xff]
    %v506 = vld [vmem:[#allocation7 + $0x890] sm:$0xff]
    %v507 = vld [vmem:[#allocation7 + $0x898] sm:$0xff]
    %v508 = vld [vmem:[#allocation7 + $0x8a0] sm:$0xf]
    %v509 = vld [vmem:[#allocation7 + $0x8a4] sm:$0xff]
    %v510 = vld [vmem:[#allocation7 + $0x8ac] sm:$0xff]
    %v511 = vld [vmem:[#allocation7 + $0x8b4] sm:$0xff]
    %v512 = vld [vmem:[#allocation7 + $0x8bc] sm:$0xf]
    %v513 = vld [vmem:[#allocation7 + $0x8c0] sm:$0xff]
    %v514 = vld [vmem:[#allocation7 + $0x8c8] sm:$0xff]
    %v515 = vld [vmem:[#allocation7 + $0x8d0] sm:$0xff]
    %v516 = vld [vmem:[#allocation7 + $0x8d8] sm:$0xf]
    %v517 = vld [vmem:[#allocation7 + $0x8dc] sm:$0xff]
    %v518 = vld [vmem:[#allocation7 + $0x8e4] sm:$0xff]
    %v519 = vld [vmem:[#allocation7 + $0x8ec] sm:$0xff]
    %v520 = vld [vmem:[#allocation7 + $0x8f4] sm:$0xf]
    %v521 = vld [vmem:[#allocation7 + $0x8f8] sm:$0xff]
    %v522 = vld [vmem:[#allocation7 + $0x900] sm:$0xff]
    %v523 = vld [vmem:[#allocation7 + $0x908] sm:$0xff]
    %v524 = vld [vmem:[#allocation7 + $0x910] sm:$0xf]
    %v525 = vld [vmem:[#allocation7 + $0x914] sm:$0xff]
    %v526 = vld [vmem:[#allocation7 + $0x91c] sm:$0xff]
    %v527 = vld [vmem:[#allocation7 + $0x924] sm:$0xff]
    %v528 = vld [vmem:[#allocation7 + $0x92c] sm:$0xf]
    %v529 = vld [vmem:[#allocation7 + $0x930] sm:$0xff]
    %v530 = vld [vmem:[#allocation7 + $0x938] sm:$0xff]
    %v531 = vld [vmem:[#allocation7 + $0x940] sm:$0xff]
    %v532 = vld [vmem:[#allocation7 + $0x948] sm:$0xf]
    %v533 = vld [vmem:[#allocation7 + $0x94c] sm:$0xff]
    %v534 = vld [vmem:[#allocation7 + $0x954] sm:$0xff]
    %v535 = vld [vmem:[#allocation7 + $0x95c] sm:$0xff]
    %v536 = vld [vmem:[#allocation7 + $0x964] sm:$0xf]
    %v537 = vld [vmem:[#allocation7 + $0x968] sm:$0xff]
    %v538 = vld [vmem:[#allocation7 + $0x970] sm:$0xff]
    %v539 = vld [vmem:[#allocation7 + $0x978] sm:$0xff]
    %v540 = vld [vmem:[#allocation7 + $0x980] sm:$0xf]
    %v541 = vld [vmem:[#allocation7 + $0x984] sm:$0xff]
    %v542 = vld [vmem:[#allocation7 + $0x98c] sm:$0xff]
    %v543 = vld [vmem:[#allocation7 + $0x994] sm:$0xff]
    %v544 = vld [vmem:[#allocation7 + $0x99c] sm:$0xf]
    %v545 = vld [vmem:[#allocation7 + $0x9a0] sm:$0xff]
    %v546 = vld [vmem:[#allocation7 + $0x9a8] sm:$0xff]
    %v547 = vld [vmem:[#allocation7 + $0x9b0] sm:$0xff]
    %v548 = vld [vmem:[#allocation7 + $0x9b8] sm:$0xf]
    %v549 = vld [vmem:[#allocation7 + $0x9bc] sm:$0xff]
    %v550 = vld [vmem:[#allocation7 + $0x9c4] sm:$0xff]
    %v551 = vld [vmem:[#allocation7 + $0x9cc] sm:$0xff]
    %v552 = vld [vmem:[#allocation7 + $0x9d4] sm:$0xf]
    %v553 = vld [vmem:[#allocation7 + $0x9d8] sm:$0xff]
    %v554 = vld [vmem:[#allocation7 + $0x9e0] sm:$0xff]
    %v555 = vld [vmem:[#allocation7 + $0x9e8] sm:$0xff]
    %v556 = vld [vmem:[#allocation7 + $0x9f0] sm:$0xf]
    %v557 = vld [vmem:[#allocation7 + $0x9f4] sm:$0xff]
    %v558 = vld [vmem:[#allocation7 + $0x9fc] sm:$0xff]
    %v559 = vld [vmem:[#allocation7 + $0xa04] sm:$0xff]
    %v560 = vld [vmem:[#allocation7 + $0xa0c] sm:$0xf]
    %v561 = vld [vmem:[#allocation7 + $0xa10] sm:$0xff]
    %v562 = vld [vmem:[#allocation7 + $0xa18] sm:$0xff]
    %v563 = vld [vmem:[#allocation7 + $0xa20] sm:$0xff]
    %v564 = vld [vmem:[#allocation7 + $0xa28] sm:$0xf]
    %v565 = vld [vmem:[#allocation7 + $0xa2c] sm:$0xff]
    %v566 = vld [vmem:[#allocation7 + $0xa34] sm:$0xff]
    %v567 = vld [vmem:[#allocation7 + $0xa3c] sm:$0xff]
    %v568 = vld [vmem:[#allocation7 + $0xa44] sm:$0xf]
    %v569 = vld [vmem:[#allocation7 + $0xa48] sm:$0xff]
    %v570 = vld [vmem:[#allocation7 + $0xa50] sm:$0xff]
    %v571 = vld [vmem:[#allocation7 + $0xa58] sm:$0xff]
    %v572 = vld [vmem:[#allocation7 + $0xa60] sm:$0xf]
    %v573 = vld [vmem:[#allocation7 + $0xa64] sm:$0xff]
    %v574 = vld [vmem:[#allocation7 + $0xa6c] sm:$0xff]
    %v575 = vld [vmem:[#allocation7 + $0xa74] sm:$0xff]
    %v576 = vld [vmem:[#allocation7 + $0xa7c] sm:$0xf]
    %v577 = vld [vmem:[#allocation7 + $0xa80] sm:$0xff]
    %v578 = vld [vmem:[#allocation7 + $0xa88] sm:$0xff]
    %v579 = vld [vmem:[#allocation7 + $0xa90] sm:$0xff]
    %v580 = vld [vmem:[#allocation7 + $0xa98] sm:$0xf]
    %v581 = vld [vmem:[#allocation7 + $0xa9c] sm:$0xff]
    %v582 = vld [vmem:[#allocation7 + $0xaa4] sm:$0xff]
    %v583 = vld [vmem:[#allocation7 + $0xaac] sm:$0xff]
    %v584 = vld [vmem:[#allocation7 + $0xab4] sm:$0xf]
    %v585 = vld [vmem:[#allocation8] sm:$0xff]
    %v586 = vld [vmem:[#allocation8 + $0x8] sm:$0xff]
    %v587 = vld [vmem:[#allocation8 + $0x10] sm:$0xff]
    %v588 = vld [vmem:[#allocation8 + $0x18] sm:$0xf]
    %v589 = vld [vmem:[#allocation8 + $0x1c] sm:$0xff]
    %v590 = vld [vmem:[#allocation8 + $0x24] sm:$0xff]
    %v591 = vld [vmem:[#allocation8 + $0x2c] sm:$0xff]
    %v592 = vld [vmem:[#allocation8 + $0x34] sm:$0xf]
    %v593 = vld [vmem:[#allocation8 + $0x38] sm:$0xff]
    %v594 = vld [vmem:[#allocation8 + $0x40] sm:$0xff]
    %v595 = vld [vmem:[#allocation8 + $0x48] sm:$0xff]
    %v596 = vld [vmem:[#allocation8 + $0x50] sm:$0xf]
    %v597 = vld [vmem:[#allocation8 + $0x54] sm:$0xff]
    %v598 = vld [vmem:[#allocation8 + $0x5c] sm:$0xff]
    %v599 = vld [vmem:[#allocation8 + $0x64] sm:$0xff]
    %v600 = vld [vmem:[#allocation8 + $0x6c] sm:$0xf]
    %v617 = vunpack.c.l.b16 %v585
    %v618 = vunpack.c.h.b16 %v585
    %v619 = vunpack.c.l.b16 %v586
    %v620 = vunpack.c.h.b16 %v586
    %v621 = vunpack.c.l.b16 %v587
    %v622 = vunpack.c.h.b16 %v587
    %v623 = vunpack.c.l.b16 %v588
    %v624 = vunpack.c.l.b16 %v589
    %v625 = vunpack.c.h.b16 %v589
    %v626 = vunpack.c.l.b16 %v590
    %v627 = vunpack.c.h.b16 %v590
    %v628 = vunpack.c.l.b16 %v591
    %v629 = vunpack.c.h.b16 %v591
    %v630 = vunpack.c.l.b16 %v592
    %v631 = vunpack.c.l.b16 %v593
    %v632 = vunpack.c.h.b16 %v593
    %v633 = vunpack.c.l.b16 %v594
    %v634 = vunpack.c.h.b16 %v594
    %v635 = vunpack.c.l.b16 %v595
    %v636 = vunpack.c.h.b16 %v595
    %v637 = vunpack.c.l.b16 %v596
    %v638 = vunpack.c.l.b16 %v597
    %v639 = vunpack.c.h.b16 %v597
    %v640 = vunpack.c.l.b16 %v598
    %v641 = vunpack.c.h.b16 %v598
    %v642 = vunpack.c.l.b16 %v599
    %v643 = vunpack.c.h.b16 %v599
    %v644 = vunpack.c.l.b16 %v600
    %v645 = vpack.c.b16 %v624, %v617
    %v646 = vpack.c.b16 %v625, %v618
    %v647 = vpack.c.b16 %v626, %v619
    %v648 = vpack.c.b16 %v627, %v620
    %v649 = vpack.c.b16 %v628, %v621
    %v650 = vpack.c.b16 %v629, %v622
    %v651 = vpack.c.b16 %v630, %v623
    %v652 = vpack.c.b16 %v638, %v631
    %v653 = vpack.c.b16 %v639, %v632
    %v654 = vpack.c.b16 %v640, %v633
    %v655 = vpack.c.b16 %v641, %v634
    %v656 = vpack.c.b16 %v642, %v635
    %v657 = vpack.c.b16 %v643, %v636
    %v658 = vpack.c.b16 %v644, %v637
    %vm673 = vcmask 261120
    %v675 = vsel %vm673, %v192, 0
    %677 = vmatprep.subr.bf16.mxu0 %v646
    %678 = vmatpush1.bf16.msra.mxu0 %v645
    %679 = vmatprep.subr.bf16.mxu0 %v653
    %680 = vmatpush1.bf16.msra.mxu0 %v652
    %681 = vmatprep.subr.bf16.mxu0 0
    %682 = vmatpush1.bf16.msra.mxu0 0
    %683 = vmatprep.subr.bf16.mxu0 0
    %684 = vmatpush1.bf16.msra.mxu0 0
    %685 = vmatprep.subr.bf16.mxu0 0
    %686 = vmatpush1.bf16.msra.mxu0 0
    %687 = vmatprep.subr.bf16.mxu0 0
    %688 = vmatpush1.bf16.msra.mxu0 0
    %689 = vmatprep.subr.bf16.mxu0 0
    %690 = vmatpush1.bf16.msra.mxu0 0
    %691 = vmatprep.subr.bf16.mxu0 0
    %692 = vmatpush1.bf16.msra.mxu0 0
    %693 = vmatprep.subr.bf16.mxu0 0
    %694 = vmatpush1.bf16.msra.mxu0 0
    %695 = vmatprep.subr.bf16.mxu0 0
    %696 = vmatpush1.bf16.msra.mxu0 0
    %697 = vmatprep.subr.bf16.mxu0 0
    %698 = vmatpush1.bf16.msra.mxu0 0
    %699 = vmatprep.subr.bf16.mxu0 0
    %700 = vmatpush1.bf16.msra.mxu0 0
    %701 = vmatprep.subr.bf16.mxu0 0
    %702 = vmatpush1.bf16.msra.mxu0 0
    %703 = vmatprep.subr.bf16.mxu0 0
    %704 = vmatpush1.bf16.msra.mxu0 0
    %705 = vmatprep.subr.bf16.mxu0 0
    %706 = vmatpush1.bf16.msra.mxu0 0
    %707 = vmatprep.subr.bf16.mxu0 0
    %708 = vmatpush1.bf16.msra.mxu0 0
    %709 = vmatprep.mubr.bf16.mxu0 0
    %710 = vmatmul.mubr.bf16.gmra.mrb[0].mxu0 %v675
    %v711 = vpop.f32.mrb[0].mxu0
    %v712 = vadd.f32 0.0, %v711
    %v713 = vpop.f32.mrb[0].mxu0
    %v714 = vadd.f32 0.0, %v713
    %v715 = vpop.f32.mrb[0].mxu0
    %v716 = vpop.f32.mrb[0].mxu0
    %717 = vdwg.mxu0
    %718 = vmatprep.subr.bf16.mxu0 %v648
    %719 = vmatpush1.bf16.msra.mxu0 %v647
    %720 = vmatprep.subr.bf16.mxu0 %v655
    %721 = vmatpush1.bf16.msra.mxu0 %v654
    %722 = vmatprep.subr.bf16.mxu0 0
    %723 = vmatpush1.bf16.msra.mxu0 0
    %724 = vmatprep.subr.bf16.mxu0 0
    %725 = vmatpush1.bf16.msra.mxu0 0
    %726 = vmatprep.subr.bf16.mxu0 0
    %727 = vmatpush1.bf16.msra.mxu0 0
    %728 = vmatprep.subr.bf16.mxu0 0
    %729 = vmatpush1.bf16.msra.mxu0 0
    %730 = vmatprep.subr.bf16.mxu0 0
    %731 = vmatpush1.bf16.msra.mxu0 0
    %732 = vmatprep.subr.bf16.mxu0 0
    %733 = vmatpush1.bf16.msra.mxu0 0
    %734 = vmatprep.subr.bf16.mxu0 0
    %735 = vmatpush1.bf16.msra.mxu0 0
    %736 = vmatprep.subr.bf16.mxu0 0
    %737 = vmatpush1.bf16.msra.mxu0 0
    %738 = vmatprep.subr.bf16.mxu0 0
    %739 = vmatpush1.bf16.msra.mxu0 0
    %740 = vmatprep.subr.bf16.mxu0 0
    %741 = vmatpush1.bf16.msra.mxu0 0
    %742 = vmatprep.subr.bf16.mxu0 0
    %743 = vmatpush1.bf16.msra.mxu0 0
    %744 = vmatprep.subr.bf16.mxu0 0
    %745 = vmatpush1.bf16.msra.mxu0 0
    %746 = vmatprep.subr.bf16.mxu0 0
    %747 = vmatpush1.bf16.msra.mxu0 0
    %748 = vmatprep.subr.bf16.mxu0 0
    %749 = vmatpush1.bf16.msra.mxu0 0
    %750 = vmatprep.mubr.bf16.mxu0 0
    %751 = vmatmul.mubr.bf16.gmra.mrb[0].mxu0 %v675
    %v752 = vpop.f32.mrb[0].mxu0
    %v753 = vadd.f32 0.0, %v752
    %v754 = vpop.f32.mrb[0].mxu0
    %v755 = vadd.f32 0.0, %v754
    %v756 = vpop.f32.mrb[0].mxu0
    %v757 = vpop.f32.mrb[0].mxu0
    %758 = vdwg.mxu0
    %759 = vmatprep.subr.bf16.mxu0 %v650
    %760 = vmatpush1.bf16.msra.mxu0 %v649
    %761 = vmatprep.subr.bf16.mxu0 %v657
    %762 = vmatpush1.bf16.msra.mxu0 %v656
    %763 = vmatprep.subr.bf16.mxu0 0
    %764 = vmatpush1.bf16.msra.mxu0 0
    %765 = vmatprep.subr.bf16.mxu0 0
    %766 = vmatpush1.bf16.msra.mxu0 0
    %767 = vmatprep.subr.bf16.mxu0 0
    %768 = vmatpush1.bf16.msra.mxu0 0
    %769 = vmatprep.subr.bf16.mxu0 0
    %770 = vmatpush1.bf16.msra.mxu0 0
    %771 = vmatprep.subr.bf16.mxu0 0
    %772 = vmatpush1.bf16.msra.mxu0 0
    %773 = vmatprep.subr.bf16.mxu0 0
    %774 = vmatpush1.bf16.msra.mxu0 0
    %775 = vmatprep.subr.bf16.mxu0 0
    %776 = vmatpush1.bf16.msra.mxu0 0
    %777 = vmatprep.subr.bf16.mxu0 0
    %778 = vmatpush1.bf16.msra.mxu0 0
    %779 = vmatprep.subr.bf16.mxu0 0
    %780 = vmatpush1.bf16.msra.mxu0 0
    %781 = vmatprep.subr.bf16.mxu0 0
    %782 = vmatpush1.bf16.msra.mxu0 0
    %783 = vmatprep.subr.bf16.mxu0 0
    %784 = vmatpush1.bf16.msra.mxu0 0
    %785 = vmatprep.subr.bf16.mxu0 0
    %786 = vmatpush1.bf16.msra.mxu0 0
    %787 = vmatprep.subr.bf16.mxu0 0
    %788 = vmatpush1.bf16.msra.mxu0 0
    %789 = vmatprep.subr.bf16.mxu0 0
    %790 = vmatpush1.bf16.msra.mxu0 0
    %791 = vmatprep.mubr.bf16.mxu0 0
    %792 = vmatmul.mubr.bf16.gmra.mrb[0].mxu0 %v675
    %v793 = vpop.f32.mrb[0].mxu0
    %v794 = vadd.f32 0.0, %v793
    %v795 = vpop.f32.mrb[0].mxu0
    %v796 = vadd.f32 0.0, %v795
    %v797 = vpop.f32.mrb[0].mxu0
    %v798 = vpop.f32.mrb[0].mxu0
    %799 = vdwg.mxu0
    %800 = vmatprep.subr.bf16.mxu0 0
    %801 = vmatpush1.bf16.msra.mxu0 %v651
    %802 = vmatprep.subr.bf16.mxu0 0
    %803 = vmatpush1.bf16.msra.mxu0 %v658
    %804 = vmatprep.subr.bf16.mxu0 0
    %805 = vmatpush1.bf16.msra.mxu0 0
    %806 = vmatprep.subr.bf16.mxu0 0
    %807 = vmatpush1.bf16.msra.mxu0 0
    %808 = vmatprep.subr.bf16.mxu0 0
    %809 = vmatpush1.bf16.msra.mxu0 0
    %810 = vmatprep.subr.bf16.mxu0 0
    %811 = vmatpush1.bf16.msra.mxu0 0
    %812 = vmatprep.subr.bf16.mxu0 0
    %813 = vmatpush1.bf16.msra.mxu0 0
    %814 = vmatprep.subr.bf16.mxu0 0
    %815 = vmatpush1.bf16.msra.mxu0 0
    %816 = vmatprep.subr.bf16.mxu0 0
    %817 = vmatpush1.bf16.msra.mxu0 0
    %818 = vmatprep.subr.bf16.mxu0 0
    %819 = vmatpush1.bf16.msra.mxu0 0
    %820 = vmatprep.subr.bf16.mxu0 0
    %821 = vmatpush1.bf16.msra.mxu0 0
    %822 = vmatprep.subr.bf16.mxu0 0
    %823 = vmatpush1.bf16.msra.mxu0 0
    %824 = vmatprep.subr.bf16.mxu0 0
    %825 = vmatpush1.bf16.msra.mxu0 0
    %826 = vmatprep.subr.bf16.mxu0 0
    %827 = vmatpush1.bf16.msra.mxu0 0
    %828 = vmatprep.subr.bf16.mxu0 0
    %829 = vmatpush1.bf16.msra.mxu0 0
    %830 = vmatprep.subr.bf16.mxu0 0
    %831 = vmatpush1.bf16.msra.mxu0 0
    %832 = vmatprep.mubr.bf16.mxu0 0
    %833 = vmatmul.mubr.bf16.gmra.mrb[0].mxu0 %v675
    %v834 = vpop.f32.mrb[0].mxu0
    %v835 = vadd.f32 0.0, %v834
    %v836 = vpop.f32.mrb[0].mxu0
    %v837 = vpop.f32.mrb[0].mxu0
    %v838 = vpop.f32.mrb[0].mxu0
    %839 = vdwg.mxu0
    %v1232 = vunpack.c.l.b16 %v193
    %v1233 = vunpack.c.h.b16 %v193
    %v1234 = vunpack.c.l.b16 %v194
    %v1235 = vunpack.c.h.b16 %v194
    %v1236 = vunpack.c.l.b16 %v195
    %v1237 = vunpack.c.h.b16 %v195
    %v1238 = vunpack.c.l.b16 %v196
    %v1239 = vunpack.c.l.b16 %v197
    %v1240 = vunpack.c.h.b16 %v197
    %v1241 = vunpack.c.l.b16 %v198
    %v1242 = vunpack.c.h.b16 %v198
    %v1243 = vunpack.c.l.b16 %v199
    %v1244 = vunpack.c.h.b16 %v199
    %v1245 = vunpack.c.l.b16 %v200
    %v1246 = vunpack.c.l.b16 %v201
    %v1247 = vunpack.c.h.b16 %v201
    %v1248 = vunpack.c.l.b16 %v202
    %v1249 = vunpack.c.h.b16 %v202
    %v1250 = vunpack.c.l.b16 %v203
    %v1251 = vunpack.c.h.b16 %v203
    %v1252 = vunpack.c.l.b16 %v204
    %v1253 = vunpack.c.l.b16 %v205
    %v1254 = vunpack.c.h.b16 %v205
    %v1255 = vunpack.c.l.b16 %v206
    %v1256 = vunpack.c.h.b16 %v206
    %v1257 = vunpack.c.l.b16 %v207
    %v1258 = vunpack.c.h.b16 %v207
    %v1259 = vunpack.c.l.b16 %v208
    %v1260 = vunpack.c.l.b16 %v209
    %v1261 = vunpack.c.h.b16 %v209
    %v1262 = vunpack.c.l.b16 %v210
    %v1263 = vunpack.c.h.b16 %v210
    %v1264 = vunpack.c.l.b16 %v211
    %v1265 = vunpack.c.h.b16 %v211
    %v1266 = vunpack.c.l.b16 %v212
    %v1267 = vunpack.c.l.b16 %v213
    %v1268 = vunpack.c.h.b16 %v213
    %v1269 = vunpack.c.l.b16 %v214
    %v1270 = vunpack.c.h.b16 %v214
    %v1271 = vunpack.c.l.b16 %v215
    %v1272 = vunpack.c.h.b16 %v215
    %v1273 = vunpack.c.l.b16 %v216
    %v1274 = vunpack.c.l.b16 %v217
    %v1275 = vunpack.c.h.b16 %v217
    %v1276 = vunpack.c.l.b16 %v218
    %v1277 = vunpack.c.h.b16 %v218
    %v1278 = vunpack.c.l.b16 %v219
    %v1279 = vunpack.c.h.b16 %v219
    %v1280 = vunpack.c.l.b16 %v220
    %v1281 = vunpack.c.l.b16 %v221
    %v1282 = vunpack.c.h.b16 %v221
    %v1283 = vunpack.c.l.b16 %v222
    %v1284 = vunpack.c.h.b16 %v222
    %v1285 = vunpack.c.l.b16 %v223
    %v1286 = vunpack.c.h.b16 %v223
    %v1287 = vunpack.c.l.b16 %v224
    %v1288 = vunpack.c.l.b16 %v225
    %v1289 = vunpack.c.h.b16 %v225
    %v1290 = vunpack.c.l.b16 %v226
    %v1291 = vunpack.c.h.b16 %v226
    %v1292 = vunpack.c.l.b16 %v227
    %v1293 = vunpack.c.h.b16 %v227
    %v1294 = vunpack.c.l.b16 %v228
    %v1295 = vunpack.c.l.b16 %v229
    %v1296 = vunpack.c.h.b16 %v229
    %v1297 = vunpack.c.l.b16 %v230
    %v1298 = vunpack.c.h.b16 %v230
    %v1299 = vunpack.c.l.b16 %v231
    %v1300 = vunpack.c.h.b16 %v231
    %v1301 = vunpack.c.l.b16 %v232
    %v1302 = vunpack.c.l.b16 %v233
    %v1303 = vunpack.c.h.b16 %v233
    %v1304 = vunpack.c.l.b16 %v234
    %v1305 = vunpack.c.h.b16 %v234
    %v1306 = vunpack.c.l.b16 %v235
    %v1307 = vunpack.c.h.b16 %v235
    %v1308 = vunpack.c.l.b16 %v236
    %v1309 = vunpack.c.l.b16 %v237
    %v1310 = vunpack.c.h.b16 %v237
    %v1311 = vunpack.c.l.b16 %v238
    %v1312 = vunpack.c.h.b16 %v238
    %v1313 = vunpack.c.l.b16 %v239
    %v1314 = vunpack.c.h.b16 %v239
    %v1315 = vunpack.c.l.b16 %v240
    %v1316 = vunpack.c.l.b16 %v241
    %v1317 = vunpack.c.h.b16 %v241
    %v1318 = vunpack.c.l.b16 %v242
    %v1319 = vunpack.c.h.b16 %v242
    %v1320 = vunpack.c.l.b16 %v243
    %v1321 = vunpack.c.h.b16 %v243
    %v1322 = vunpack.c.l.b16 %v244
    %v1323 = vunpack.c.l.b16 %v245
    %v1324 = vunpack.c.h.b16 %v245
    %v1325 = vunpack.c.l.b16 %v246
    %v1326 = vunpack.c.h.b16 %v246
    %v1327 = vunpack.c.l.b16 %v247
    %v1328 = vunpack.c.h.b16 %v247
    %v1329 = vunpack.c.l.b16 %v248
    %v1330 = vunpack.c.l.b16 %v249
    %v1331 = vunpack.c.h.b16 %v249
    %v1332 = vunpack.c.l.b16 %v250
    %v1333 = vunpack.c.h.b16 %v250
    %v1334 = vunpack.c.l.b16 %v251
    %v1335 = vunpack.c.h.b16 %v251
    %v1336 = vunpack.c.l.b16 %v252
    %v1337 = vunpack.c.l.b16 %v253
    %v1338 = vunpack.c.h.b16 %v253
    %v1339 = vunpack.c.l.b16 %v254
    %v1340 = vunpack.c.h.b16 %v254
    %v1341 = vunpack.c.l.b16 %v255
    %v1342 = vunpack.c.h.b16 %v255
    %v1343 = vunpack.c.l.b16 %v256
    %v1344 = vunpack.c.l.b16 %v257
    %v1345 = vunpack.c.h.b16 %v257
    %v1346 = vunpack.c.l.b16 %v258
    %v1347 = vunpack.c.h.b16 %v258
    %v1348 = vunpack.c.l.b16 %v259
    %v1349 = vunpack.c.h.b16 %v259
    %v1350 = vunpack.c.l.b16 %v260
    %v1351 = vunpack.c.l.b16 %v261
    %v1352 = vunpack.c.h.b16 %v261
    %v1353 = vunpack.c.l.b16 %v262
    %v1354 = vunpack.c.h.b16 %v262
    %v1355 = vunpack.c.l.b16 %v263
    %v1356 = vunpack.c.h.b16 %v263
    %v1357 = vunpack.c.l.b16 %v264
    %v1358 = vunpack.c.l.b16 %v265
    %v1359 = vunpack.c.h.b16 %v265
    %v1360 = vunpack.c.l.b16 %v266
    %v1361 = vunpack.c.h.b16 %v266
    %v1362 = vunpack.c.l.b16 %v267
    %v1363 = vunpack.c.h.b16 %v267
    %v1364 = vunpack.c.l.b16 %v268
    %v1365 = vunpack.c.l.b16 %v269
    %v1366 = vunpack.c.h.b16 %v269
    %v1367 = vunpack.c.l.b16 %v270
    %v1368 = vunpack.c.h.b16 %v270
    %v1369 = vunpack.c.l.b16 %v271
    %v1370 = vunpack.c.h.b16 %v271
    %v1371 = vunpack.c.l.b16 %v272
    %v1372 = vunpack.c.l.b16 %v273
    %v1373 = vunpack.c.h.b16 %v273
    %v1374 = vunpack.c.l.b16 %v274
    %v1375 = vunpack.c.h.b16 %v274
    %v1376 = vunpack.c.l.b16 %v275
    %v1377 = vunpack.c.h.b16 %v275
    %v1378 = vunpack.c.l.b16 %v276
    %v1379 = vunpack.c.l.b16 %v277
    %v1380 = vunpack.c.h.b16 %v277
    %v1381 = vunpack.c.l.b16 %v278
    %v1382 = vunpack.c.h.b16 %v278
    %v1383 = vunpack.c.l.b16 %v279
    %v1384 = vunpack.c.h.b16 %v279
    %v1385 = vunpack.c.l.b16 %v280
    %v1386 = vunpack.c.l.b16 %v281
    %v1387 = vunpack.c.h.b16 %v281
    %v1388 = vunpack.c.l.b16 %v282
    %v1389 = vunpack.c.h.b16 %v282
    %v1390 = vunpack.c.l.b16 %v283
    %v1391 = vunpack.c.h.b16 %v283
    %v1392 = vunpack.c.l.b16 %v284
    %v1393 = vunpack.c.l.b16 %v285
    %v1394 = vunpack.c.h.b16 %v285
    %v1395 = vunpack.c.l.b16 %v286
    %v1396 = vunpack.c.h.b16 %v286
    %v1397 = vunpack.c.l.b16 %v287
    %v1398 = vunpack.c.h.b16 %v287
    %v1399 = vunpack.c.l.b16 %v288
    %v1400 = vunpack.c.l.b16 %v289
    %v1401 = vunpack.c.h.b16 %v289
    %v1402 = vunpack.c.l.b16 %v290
    %v1403 = vunpack.c.h.b16 %v290
    %v1404 = vunpack.c.l.b16 %v291
    %v1405 = vunpack.c.h.b16 %v291
    %v1406 = vunpack.c.l.b16 %v292
    %v1407 = vunpack.c.l.b16 %v293
    %v1408 = vunpack.c.h.b16 %v293
    %v1409 = vunpack.c.l.b16 %v294
    %v1410 = vunpack.c.h.b16 %v294
    %v1411 = vunpack.c.l.b16 %v295
    %v1412 = vunpack.c.h.b16 %v295
    %v1413 = vunpack.c.l.b16 %v296
    %v1414 = vunpack.c.l.b16 %v297
    %v1415 = vunpack.c.h.b16 %v297
    %v1416 = vunpack.c.l.b16 %v298
    %v1417 = vunpack.c.h.b16 %v298
    %v1418 = vunpack.c.l.b16 %v299
    %v1419 = vunpack.c.h.b16 %v299
    %v1420 = vunpack.c.l.b16 %v300
    %v1421 = vunpack.c.l.b16 %v301
    %v1422 = vunpack.c.h.b16 %v301
    %v1423 = vunpack.c.l.b16 %v302
    %v1424 = vunpack.c.h.b16 %v302
    %v1425 = vunpack.c.l.b16 %v303
    %v1426 = vunpack.c.h.b16 %v303
    %v1427 = vunpack.c.l.b16 %v304
    %v1428 = vunpack.c.l.b16 %v305
    %v1429 = vunpack.c.h.b16 %v305
    %v1430 = vunpack.c.l.b16 %v306
    %v1431 = vunpack.c.h.b16 %v306
    %v1432 = vunpack.c.l.b16 %v307
    %v1433 = vunpack.c.h.b16 %v307
    %v1434 = vunpack.c.l.b16 %v308
    %v1435 = vunpack.c.l.b16 %v309
    %v1436 = vunpack.c.h.b16 %v309
    %v1437 = vunpack.c.l.b16 %v310
    %v1438 = vunpack.c.h.b16 %v310
    %v1439 = vunpack.c.l.b16 %v311
    %v1440 = vunpack.c.h.b16 %v311
    %v1441 = vunpack.c.l.b16 %v312
    %v1442 = vunpack.c.l.b16 %v313
    %v1443 = vunpack.c.h.b16 %v313
    %v1444 = vunpack.c.l.b16 %v314
    %v1445 = vunpack.c.h.b16 %v314
    %v1446 = vunpack.c.l.b16 %v315
    %v1447 = vunpack.c.h.b16 %v315
    %v1448 = vunpack.c.l.b16 %v316
    %v1449 = vunpack.c.l.b16 %v317
    %v1450 = vunpack.c.h.b16 %v317
    %v1451 = vunpack.c.l.b16 %v318
    %v1452 = vunpack.c.h.b16 %v318
    %v1453 = vunpack.c.l.b16 %v319
    %v1454 = vunpack.c.h.b16 %v319
    %v1455 = vunpack.c.l.b16 %v320
    %v1456 = vunpack.c.l.b16 %v321
    %v1457 = vunpack.c.h.b16 %v321
    %v1458 = vunpack.c.l.b16 %v322
    %v1459 = vunpack.c.h.b16 %v322
    %v1460 = vunpack.c.l.b16 %v323
    %v1461 = vunpack.c.h.b16 %v323
    %v1462 = vunpack.c.l.b16 %v324
    %v1463 = vunpack.c.l.b16 %v325
    %v1464 = vunpack.c.h.b16 %v325
    %v1465 = vunpack.c.l.b16 %v326
    %v1466 = vunpack.c.h.b16 %v326
    %v1467 = vunpack.c.l.b16 %v327
    %v1468 = vunpack.c.h.b16 %v327
    %v1469 = vunpack.c.l.b16 %v328
    %v1470 = vunpack.c.l.b16 %v329
    %v1471 = vunpack.c.h.b16 %v329
    %v1472 = vunpack.c.l.b16 %v330
    %v1473 = vunpack.c.h.b16 %v330
    %v1474 = vunpack.c.l.b16 %v331
    %v1475 = vunpack.c.h.b16 %v331
    %v1476 = vunpack.c.l.b16 %v332
    %v1477 = vunpack.c.l.b16 %v333
    %v1478 = vunpack.c.h.b16 %v333
    %v1479 = vunpack.c.l.b16 %v334
    %v1480 = vunpack.c.h.b16 %v334
    %v1481 = vunpack.c.l.b16 %v335
    %v1482 = vunpack.c.h.b16 %v335
    %v1483 = vunpack.c.l.b16 %v336
    %v1484 = vunpack.c.l.b16 %v337
    %v1485 = vunpack.c.h.b16 %v337
    %v1486 = vunpack.c.l.b16 %v338
    %v1487 = vunpack.c.h.b16 %v338
    %v1488 = vunpack.c.l.b16 %v339
    %v1489 = vunpack.c.h.b16 %v339
    %v1490 = vunpack.c.l.b16 %v340
    %v1491 = vunpack.c.l.b16 %v341
    %v1492 = vunpack.c.h.b16 %v341
    %v1493 = vunpack.c.l.b16 %v342
    %v1494 = vunpack.c.h.b16 %v342
    %v1495 = vunpack.c.l.b16 %v343
    %v1496 = vunpack.c.h.b16 %v343
    %v1497 = vunpack.c.l.b16 %v344
    %v1498 = vunpack.c.l.b16 %v345
    %v1499 = vunpack.c.h.b16 %v345
    %v1500 = vunpack.c.l.b16 %v346
    %v1501 = vunpack.c.h.b16 %v346
    %v1502 = vunpack.c.l.b16 %v347
    %v1503 = vunpack.c.h.b16 %v347
    %v1504 = vunpack.c.l.b16 %v348
    %v1505 = vunpack.c.l.b16 %v349
    %v1506 = vunpack.c.h.b16 %v349
    %v1507 = vunpack.c.l.b16 %v350
    %v1508 = vunpack.c.h.b16 %v350
    %v1509 = vunpack.c.l.b16 %v351
    %v1510 = vunpack.c.h.b16 %v351
    %v1511 = vunpack.c.l.b16 %v352
    %v1512 = vunpack.c.l.b16 %v353
    %v1513 = vunpack.c.h.b16 %v353
    %v1514 = vunpack.c.l.b16 %v354
    %v1515 = vunpack.c.h.b16 %v354
    %v1516 = vunpack.c.l.b16 %v355
    %v1517 = vunpack.c.h.b16 %v355
    %v1518 = vunpack.c.l.b16 %v356
    %v1519 = vunpack.c.l.b16 %v357
    %v1520 = vunpack.c.h.b16 %v357
    %v1521 = vunpack.c.l.b16 %v358
    %v1522 = vunpack.c.h.b16 %v358
    %v1523 = vunpack.c.l.b16 %v359
    %v1524 = vunpack.c.h.b16 %v359
    %v1525 = vunpack.c.l.b16 %v360
    %v1526 = vunpack.c.l.b16 %v361
    %v1527 = vunpack.c.h.b16 %v361
    %v1528 = vunpack.c.l.b16 %v362
    %v1529 = vunpack.c.h.b16 %v362
    %v1530 = vunpack.c.l.b16 %v363
    %v1531 = vunpack.c.h.b16 %v363
    %v1532 = vunpack.c.l.b16 %v364
    %v1533 = vunpack.c.l.b16 %v365
    %v1534 = vunpack.c.h.b16 %v365
    %v1535 = vunpack.c.l.b16 %v366
    %v1536 = vunpack.c.h.b16 %v366
    %v1537 = vunpack.c.l.b16 %v367
    %v1538 = vunpack.c.h.b16 %v367
    %v1539 = vunpack.c.l.b16 %v368
    %v1540 = vunpack.c.l.b16 %v369
    %v1541 = vunpack.c.h.b16 %v369
    %v1542 = vunpack.c.l.b16 %v370
    %v1543 = vunpack.c.h.b16 %v370
    %v1544 = vunpack.c.l.b16 %v371
    %v1545 = vunpack.c.h.b16 %v371
    %v1546 = vunpack.c.l.b16 %v372
    %v1547 = vunpack.c.l.b16 %v373
    %v1548 = vunpack.c.h.b16 %v373
    %v1549 = vunpack.c.l.b16 %v374
    %v1550 = vunpack.c.h.b16 %v374
    %v1551 = vunpack.c.l.b16 %v375
    %v1552 = vunpack.c.h.b16 %v375
    %v1553 = vunpack.c.l.b16 %v376
    %v1554 = vunpack.c.l.b16 %v377
    %v1555 = vunpack.c.h.b16 %v377
    %v1556 = vunpack.c.l.b16 %v378
    %v1557 = vunpack.c.h.b16 %v378
    %v1558 = vunpack.c.l.b16 %v379
    %v1559 = vunpack.c.h.b16 %v379
    %v1560 = vunpack.c.l.b16 %v380
    %v1561 = vunpack.c.l.b16 %v381
    %v1562 = vunpack.c.h.b16 %v381
    %v1563 = vunpack.c.l.b16 %v382
    %v1564 = vunpack.c.h.b16 %v382
    %v1565 = vunpack.c.l.b16 %v383
    %v1566 = vunpack.c.h.b16 %v383
    %v1567 = vunpack.c.l.b16 %v384
    %v1568 = vunpack.c.l.b16 %v385
    %v1569 = vunpack.c.h.b16 %v385
    %v1570 = vunpack.c.l.b16 %v386
    %v1571 = vunpack.c.h.b16 %v386
    %v1572 = vunpack.c.l.b16 %v387
    %v1573 = vunpack.c.h.b16 %v387
    %v1574 = vunpack.c.l.b16 %v388
    %v1575 = vunpack.c.l.b16 %v389
    %v1576 = vunpack.c.h.b16 %v389
    %v1577 = vunpack.c.l.b16 %v390
    %v1578 = vunpack.c.h.b16 %v390
    %v1579 = vunpack.c.l.b16 %v391
    %v1580 = vunpack.c.h.b16 %v391
    %v1581 = vunpack.c.l.b16 %v392
    %v1582 = vunpack.c.l.b16 %v393
    %v1583 = vunpack.c.h.b16 %v393
    %v1584 = vunpack.c.l.b16 %v394
    %v1585 = vunpack.c.h.b16 %v394
    %v1586 = vunpack.c.l.b16 %v395
    %v1587 = vunpack.c.h.b16 %v395
    %v1588 = vunpack.c.l.b16 %v396
    %v1589 = vunpack.c.l.b16 %v397
    %v1590 = vunpack.c.h.b16 %v397
    %v1591 = vunpack.c.l.b16 %v398
    %v1592 = vunpack.c.h.b16 %v398
    %v1593 = vunpack.c.l.b16 %v399
    %v1594 = vunpack.c.h.b16 %v399
    %v1595 = vunpack.c.l.b16 %v400
    %v1596 = vunpack.c.l.b16 %v401
    %v1597 = vunpack.c.h.b16 %v401
    %v1598 = vunpack.c.l.b16 %v402
    %v1599 = vunpack.c.h.b16 %v402
    %v1600 = vunpack.c.l.b16 %v403
    %v1601 = vunpack.c.h.b16 %v403
    %v1602 = vunpack.c.l.b16 %v404
    %v1603 = vunpack.c.l.b16 %v405
    %v1604 = vunpack.c.h.b16 %v405
    %v1605 = vunpack.c.l.b16 %v406
    %v1606 = vunpack.c.h.b16 %v406
    %v1607 = vunpack.c.l.b16 %v407
    %v1608 = vunpack.c.h.b16 %v407
    %v1609 = vunpack.c.l.b16 %v408
    %v1610 = vunpack.c.l.b16 %v409
    %v1611 = vunpack.c.h.b16 %v409
    %v1612 = vunpack.c.l.b16 %v410
    %v1613 = vunpack.c.h.b16 %v410
    %v1614 = vunpack.c.l.b16 %v411
    %v1615 = vunpack.c.h.b16 %v411
    %v1616 = vunpack.c.l.b16 %v412
    %v1617 = vunpack.c.l.b16 %v413
    %v1618 = vunpack.c.h.b16 %v413
    %v1619 = vunpack.c.l.b16 %v414
    %v1620 = vunpack.c.h.b16 %v414
    %v1621 = vunpack.c.l.b16 %v415
    %v1622 = vunpack.c.h.b16 %v415
    %v1623 = vunpack.c.l.b16 %v416
    %v1624 = vunpack.c.l.b16 %v417
    %v1625 = vunpack.c.h.b16 %v417
    %v1626 = vunpack.c.l.b16 %v418
    %v1627 = vunpack.c.h.b16 %v418
    %v1628 = vunpack.c.l.b16 %v419
    %v1629 = vunpack.c.h.b16 %v419
    %v1630 = vunpack.c.l.b16 %v420
    %v1631 = vunpack.c.l.b16 %v421
    %v1632 = vunpack.c.h.b16 %v421
    %v1633 = vunpack.c.l.b16 %v422
    %v1634 = vunpack.c.h.b16 %v422
    %v1635 = vunpack.c.l.b16 %v423
    %v1636 = vunpack.c.h.b16 %v423
    %v1637 = vunpack.c.l.b16 %v424
    %v1638 = vunpack.c.l.b16 %v425
    %v1639 = vunpack.c.h.b16 %v425
    %v1640 = vunpack.c.l.b16 %v426
    %v1641 = vunpack.c.h.b16 %v426
    %v1642 = vunpack.c.l.b16 %v427
    %v1643 = vunpack.c.h.b16 %v427
    %v1644 = vunpack.c.l.b16 %v428
    %v1645 = vunpack.c.l.b16 %v429
    %v1646 = vunpack.c.h.b16 %v429
    %v1647 = vunpack.c.l.b16 %v430
    %v1648 = vunpack.c.h.b16 %v430
    %v1649 = vunpack.c.l.b16 %v431
    %v1650 = vunpack.c.h.b16 %v431
    %v1651 = vunpack.c.l.b16 %v432
    %v1652 = vunpack.c.l.b16 %v433
    %v1653 = vunpack.c.h.b16 %v433
    %v1654 = vunpack.c.l.b16 %v434
    %v1655 = vunpack.c.h.b16 %v434
    %v1656 = vunpack.c.l.b16 %v435
    %v1657 = vunpack.c.h.b16 %v435
    %v1658 = vunpack.c.l.b16 %v436
    %v1659 = vunpack.c.l.b16 %v437
    %v1660 = vunpack.c.h.b16 %v437
    %v1661 = vunpack.c.l.b16 %v438
    %v1662 = vunpack.c.h.b16 %v438
    %v1663 = vunpack.c.l.b16 %v439
    %v1664 = vunpack.c.h.b16 %v439
    %v1665 = vunpack.c.l.b16 %v440
    %v1666 = vunpack.c.l.b16 %v441
    %v1667 = vunpack.c.h.b16 %v441
    %v1668 = vunpack.c.l.b16 %v442
    %v1669 = vunpack.c.h.b16 %v442
    %v1670 = vunpack.c.l.b16 %v443
    %v1671 = vunpack.c.h.b16 %v443
    %v1672 = vunpack.c.l.b16 %v444
    %v1673 = vunpack.c.l.b16 %v445
    %v1674 = vunpack.c.h.b16 %v445
    %v1675 = vunpack.c.l.b16 %v446
    %v1676 = vunpack.c.h.b16 %v446
    %v1677 = vunpack.c.l.b16 %v447
    %v1678 = vunpack.c.h.b16 %v447
    %v1679 = vunpack.c.l.b16 %v448
    %v1680 = vunpack.c.l.b16 %v449
    %v1681 = vunpack.c.h.b16 %v449
    %v1682 = vunpack.c.l.b16 %v450
    %v1683 = vunpack.c.h.b16 %v450
    %v1684 = vunpack.c.l.b16 %v451
    %v1685 = vunpack.c.h.b16 %v451
    %v1686 = vunpack.c.l.b16 %v452
    %v1687 = vunpack.c.l.b16 %v453
    %v1688 = vunpack.c.h.b16 %v453
    %v1689 = vunpack.c.l.b16 %v454
    %v1690 = vunpack.c.h.b16 %v454
    %v1691 = vunpack.c.l.b16 %v455
    %v1692 = vunpack.c.h.b16 %v455
    %v1693 = vunpack.c.l.b16 %v456
    %v1694 = vunpack.c.l.b16 %v457
    %v1695 = vunpack.c.h.b16 %v457
    %v1696 = vunpack.c.l.b16 %v458
    %v1697 = vunpack.c.h.b16 %v458
    %v1698 = vunpack.c.l.b16 %v459
    %v1699 = vunpack.c.h.b16 %v459
    %v1700 = vunpack.c.l.b16 %v460
    %v1701 = vunpack.c.l.b16 %v461
    %v1702 = vunpack.c.h.b16 %v461
    %v1703 = vunpack.c.l.b16 %v462
    %v1704 = vunpack.c.h.b16 %v462
    %v1705 = vunpack.c.l.b16 %v463
    %v1706 = vunpack.c.h.b16 %v463
    %v1707 = vunpack.c.l.b16 %v464
    %v1708 = vunpack.c.l.b16 %v465
    %v1709 = vunpack.c.h.b16 %v465
    %v1710 = vunpack.c.l.b16 %v466
    %v1711 = vunpack.c.h.b16 %v466
    %v1712 = vunpack.c.l.b16 %v467
    %v1713 = vunpack.c.h.b16 %v467
    %v1714 = vunpack.c.l.b16 %v468
    %v1715 = vunpack.c.l.b16 %v469
    %v1716 = vunpack.c.h.b16 %v469
    %v1717 = vunpack.c.l.b16 %v470
    %v1718 = vunpack.c.h.b16 %v470
    %v1719 = vunpack.c.l.b16 %v471
    %v1720 = vunpack.c.h.b16 %v471
    %v1721 = vunpack.c.l.b16 %v472
    %v1722 = vunpack.c.l.b16 %v473
    %v1723 = vunpack.c.h.b16 %v473
    %v1724 = vunpack.c.l.b16 %v474
    %v1725 = vunpack.c.h.b16 %v474
    %v1726 = vunpack.c.l.b16 %v475
    %v1727 = vunpack.c.h.b16 %v475
    %v1728 = vunpack.c.l.b16 %v476
    %v1729 = vunpack.c.l.b16 %v477
    %v1730 = vunpack.c.h.b16 %v477
    %v1731 = vunpack.c.l.b16 %v478
    %v1732 = vunpack.c.h.b16 %v478
    %v1733 = vunpack.c.l.b16 %v479
    %v1734 = vunpack.c.h.b16 %v479
    %v1735 = vunpack.c.l.b16 %v480
    %v1736 = vunpack.c.l.b16 %v481
    %v1737 = vunpack.c.h.b16 %v481
    %v1738 = vunpack.c.l.b16 %v482
    %v1739 = vunpack.c.h.b16 %v482
    %v1740 = vunpack.c.l.b16 %v483
    %v1741 = vunpack.c.h.b16 %v483
    %v1742 = vunpack.c.l.b16 %v484
    %v1743 = vunpack.c.l.b16 %v485
    %v1744 = vunpack.c.h.b16 %v485
    %v1745 = vunpack.c.l.b16 %v486
    %v1746 = vunpack.c.h.b16 %v486
    %v1747 = vunpack.c.l.b16 %v487
    %v1748 = vunpack.c.h.b16 %v487
    %v1749 = vunpack.c.l.b16 %v488
    %v1750 = vunpack.c.l.b16 %v489
    %v1751 = vunpack.c.h.b16 %v489
    %v1752 = vunpack.c.l.b16 %v490
    %v1753 = vunpack.c.h.b16 %v490
    %v1754 = vunpack.c.l.b16 %v491
    %v1755 = vunpack.c.h.b16 %v491
    %v1756 = vunpack.c.l.b16 %v492
    %v1757 = vunpack.c.l.b16 %v493
    %v1758 = vunpack.c.h.b16 %v493
    %v1759 = vunpack.c.l.b16 %v494
    %v1760 = vunpack.c.h.b16 %v494
    %v1761 = vunpack.c.l.b16 %v495
    %v1762 = vunpack.c.h.b16 %v495
    %v1763 = vunpack.c.l.b16 %v496
    %v1764 = vunpack.c.l.b16 %v497
    %v1765 = vunpack.c.h.b16 %v497
    %v1766 = vunpack.c.l.b16 %v498
    %v1767 = vunpack.c.h.b16 %v498
    %v1768 = vunpack.c.l.b16 %v499
    %v1769 = vunpack.c.h.b16 %v499
    %v1770 = vunpack.c.l.b16 %v500
    %v1771 = vunpack.c.l.b16 %v501
    %v1772 = vunpack.c.h.b16 %v501
    %v1773 = vunpack.c.l.b16 %v502
    %v1774 = vunpack.c.h.b16 %v502
    %v1775 = vunpack.c.l.b16 %v503
    %v1776 = vunpack.c.h.b16 %v503
    %v1777 = vunpack.c.l.b16 %v504
    %v1778 = vunpack.c.l.b16 %v505
    %v1779 = vunpack.c.h.b16 %v505
    %v1780 = vunpack.c.l.b16 %v506
    %v1781 = vunpack.c.h.b16 %v506
    %v1782 = vunpack.c.l.b16 %v507
    %v1783 = vunpack.c.h.b16 %v507
    %v1784 = vunpack.c.l.b16 %v508
    %v1785 = vunpack.c.l.b16 %v509
    %v1786 = vunpack.c.h.b16 %v509
    %v1787 = vunpack.c.l.b16 %v510
    %v1788 = vunpack.c.h.b16 %v510
    %v1789 = vunpack.c.l.b16 %v511
    %v1790 = vunpack.c.h.b16 %v511
    %v1791 = vunpack.c.l.b16 %v512
    %v1792 = vunpack.c.l.b16 %v513
    %v1793 = vunpack.c.h.b16 %v513
    %v1794 = vunpack.c.l.b16 %v514
    %v1795 = vunpack.c.h.b16 %v514
    %v1796 = vunpack.c.l.b16 %v515
    %v1797 = vunpack.c.h.b16 %v515
    %v1798 = vunpack.c.l.b16 %v516
    %v1799 = vunpack.c.l.b16 %v517
    %v1800 = vunpack.c.h.b16 %v517
    %v1801 = vunpack.c.l.b16 %v518
    %v1802 = vunpack.c.h.b16 %v518
    %v1803 = vunpack.c.l.b16 %v519
    %v1804 = vunpack.c.h.b16 %v519
    %v1805 = vunpack.c.l.b16 %v520
    %v1806 = vunpack.c.l.b16 %v521
    %v1807 = vunpack.c.h.b16 %v521
    %v1808 = vunpack.c.l.b16 %v522
    %v1809 = vunpack.c.h.b16 %v522
    %v1810 = vunpack.c.l.b16 %v523
    %v1811 = vunpack.c.h.b16 %v523
    %v1812 = vunpack.c.l.b16 %v524
    %v1813 = vunpack.c.l.b16 %v525
    %v1814 = vunpack.c.h.b16 %v525
    %v1815 = vunpack.c.l.b16 %v526
    %v1816 = vunpack.c.h.b16 %v526
    %v1817 = vunpack.c.l.b16 %v527
    %v1818 = vunpack.c.h.b16 %v527
    %v1819 = vunpack.c.l.b16 %v528
    %v1820 = vunpack.c.l.b16 %v529
    %v1821 = vunpack.c.h.b16 %v529
    %v1822 = vunpack.c.l.b16 %v530
    %v1823 = vunpack.c.h.b16 %v530
    %v1824 = vunpack.c.l.b16 %v531
    %v1825 = vunpack.c.h.b16 %v531
    %v1826 = vunpack.c.l.b16 %v532
    %v1827 = vunpack.c.l.b16 %v533
    %v1828 = vunpack.c.h.b16 %v533
    %v1829 = vunpack.c.l.b16 %v534
    %v1830 = vunpack.c.h.b16 %v534
    %v1831 = vunpack.c.l.b16 %v535
    %v1832 = vunpack.c.h.b16 %v535
    %v1833 = vunpack.c.l.b16 %v536
    %v1834 = vunpack.c.l.b16 %v537
    %v1835 = vunpack.c.h.b16 %v537
    %v1836 = vunpack.c.l.b16 %v538
    %v1837 = vunpack.c.h.b16 %v538
    %v1838 = vunpack.c.l.b16 %v539
    %v1839 = vunpack.c.h.b16 %v539
    %v1840 = vunpack.c.l.b16 %v540
    %v1841 = vunpack.c.l.b16 %v541
    %v1842 = vunpack.c.h.b16 %v541
    %v1843 = vunpack.c.l.b16 %v542
    %v1844 = vunpack.c.h.b16 %v542
    %v1845 = vunpack.c.l.b16 %v543
    %v1846 = vunpack.c.h.b16 %v543
    %v1847 = vunpack.c.l.b16 %v544
    %v1848 = vunpack.c.l.b16 %v545
    %v1849 = vunpack.c.h.b16 %v545
    %v1850 = vunpack.c.l.b16 %v546
    %v1851 = vunpack.c.h.b16 %v546
    %v1852 = vunpack.c.l.b16 %v547
    %v1853 = vunpack.c.h.b16 %v547
    %v1854 = vunpack.c.l.b16 %v548
    %v1855 = vunpack.c.l.b16 %v549
    %v1856 = vunpack.c.h.b16 %v549
    %v1857 = vunpack.c.l.b16 %v550
    %v1858 = vunpack.c.h.b16 %v550
    %v1859 = vunpack.c.l.b16 %v551
    %v1860 = vunpack.c.h.b16 %v551
    %v1861 = vunpack.c.l.b16 %v552
    %v1862 = vunpack.c.l.b16 %v553
    %v1863 = vunpack.c.h.b16 %v553
    %v1864 = vunpack.c.l.b16 %v554
    %v1865 = vunpack.c.h.b16 %v554
    %v1866 = vunpack.c.l.b16 %v555
    %v1867 = vunpack.c.h.b16 %v555
    %v1868 = vunpack.c.l.b16 %v556
    %v1869 = vunpack.c.l.b16 %v557
    %v1870 = vunpack.c.h.b16 %v557
    %v1871 = vunpack.c.l.b16 %v558
    %v1872 = vunpack.c.h.b16 %v558
    %v1873 = vunpack.c.l.b16 %v559
    %v1874 = vunpack.c.h.b16 %v559
    %v1875 = vunpack.c.l.b16 %v560
    %v1876 = vunpack.c.l.b16 %v561
    %v1877 = vunpack.c.h.b16 %v561
    %v1878 = vunpack.c.l.b16 %v562
    %v1879 = vunpack.c.h.b16 %v562
    %v1880 = vunpack.c.l.b16 %v563
    %v1881 = vunpack.c.h.b16 %v563
    %v1882 = vunpack.c.l.b16 %v564
    %v1883 = vunpack.c.l.b16 %v565
    %v1884 = vunpack.c.h.b16 %v565
    %v1885 = vunpack.c.l.b16 %v566
    %v1886 = vunpack.c.h.b16 %v566
    %v1887 = vunpack.c.l.b16 %v567
    %v1888 = vunpack.c.h.b16 %v567
    %v1889 = vunpack.c.l.b16 %v568
    %v1890 = vunpack.c.l.b16 %v569
    %v1891 = vunpack.c.h.b16 %v569
    %v1892 = vunpack.c.l.b16 %v570
    %v1893 = vunpack.c.h.b16 %v570
    %v1894 = vunpack.c.l.b16 %v571
    %v1895 = vunpack.c.h.b16 %v571
    %v1896 = vunpack.c.l.b16 %v572
    %v1897 = vunpack.c.l.b16 %v573
    %v1898 = vunpack.c.h.b16 %v573
    %v1899 = vunpack.c.l.b16 %v574
    %v1900 = vunpack.c.h.b16 %v574
    %v1901 = vunpack.c.l.b16 %v575
    %v1902 = vunpack.c.h.b16 %v575
    %v1903 = vunpack.c.l.b16 %v576
    %v1904 = vunpack.c.l.b16 %v577
    %v1905 = vunpack.c.h.b16 %v577
    %v1906 = vunpack.c.l.b16 %v578
    %v1907 = vunpack.c.h.b16 %v578
    %v1908 = vunpack.c.l.b16 %v579
    %v1909 = vunpack.c.h.b16 %v579
    %v1910 = vunpack.c.l.b16 %v580
    %v1911 = vunpack.c.l.b16 %v581
    %v1912 = vunpack.c.h.b16 %v581
    %v1913 = vunpack.c.l.b16 %v582
    %v1914 = vunpack.c.h.b16 %v582
    %v1915 = vunpack.c.l.b16 %v583
    %v1916 = vunpack.c.h.b16 %v583
    %v1917 = vunpack.c.l.b16 %v584
    %v1918 = vpack.c.b16 %v1239, %v1232
    %v1919 = vpack.c.b16 %v1240, %v1233
    %v1920 = vpack.c.b16 %v1241, %v1234
    %v1921 = vpack.c.b16 %v1242, %v1235
    %v1922 = vpack.c.b16 %v1243, %v1236
    %v1923 = vpack.c.b16 %v1244, %v1237
    %v1924 = vpack.c.b16 %v1245, %v1238
    %v1925 = vpack.c.b16 %v1253, %v1246
    %v1926 = vpack.c.b16 %v1254, %v1247
    %v1927 = vpack.c.b16 %v1255, %v1248
    %v1928 = vpack.c.b16 %v1256, %v1249
    %v1929 = vpack.c.b16 %v1257, %v1250
    %v1930 = vpack.c.b16 %v1258, %v1251
    %v1931 = vpack.c.b16 %v1259, %v1252
    %v1932 = vpack.c.b16 %v1267, %v1260
    %v1933 = vpack.c.b16 %v1268, %v1261
    %v1934 = vpack.c.b16 %v1269, %v1262
    %v1935 = vpack.c.b16 %v1270, %v1263
    %v1936 = vpack.c.b16 %v1271, %v1264
    %v1937 = vpack.c.b16 %v1272, %v1265
    %v1938 = vpack.c.b16 %v1273, %v1266
    %v1939 = vpack.c.b16 %v1281, %v1274
    %v1940 = vpack.c.b16 %v1282, %v1275
    %v1941 = vpack.c.b16 %v1283, %v1276
    %v1942 = vpack.c.b16 %v1284, %v1277
    %v1943 = vpack.c.b16 %v1285, %v1278
    %v1944 = vpack.c.b16 %v1286, %v1279
    %v1945 = vpack.c.b16 %v1287, %v1280
    %v1946 = vpack.c.b16 %v1295, %v1288
    %v1947 = vpack.c.b16 %v1296, %v1289
    %v1948 = vpack.c.b16 %v1297, %v1290
    %v1949 = vpack.c.b16 %v1298, %v1291
    %v1950 = vpack.c.b16 %v1299, %v1292
    %v1951 = vpack.c.b16 %v1300, %v1293
    %v1952 = vpack.c.b16 %v1301, %v1294
    %v1953 = vpack.c.b16 %v1309, %v1302
    %v1954 = vpack.c.b16 %v1310, %v1303
    %v1955 = vpack.c.b16 %v1311, %v1304
    %v1956 = vpack.c.b16 %v1312, %v1305
    %v1957 = vpack.c.b16 %v1313, %v1306
    %v1958 = vpack.c.b16 %v1314, %v1307
    %v1959 = vpack.c.b16 %v1315, %v1308
    %v1960 = vpack.c.b16 %v1323, %v1316
    %v1961 = vpack.c.b16 %v1324, %v1317
    %v1962 = vpack.c.b16 %v1325, %v1318
    %v1963 = vpack.c.b16 %v1326, %v1319
    %v1964 = vpack.c.b16 %v1327, %v1320
    %v1965 = vpack.c.b16 %v1328, %v1321
    %v1966 = vpack.c.b16 %v1329, %v1322
    %v1967 = vpack.c.b16 %v1337, %v1330
    %v1968 = vpack.c.b16 %v1338, %v1331
    %v1969 = vpack.c.b16 %v1339, %v1332
    %v1970 = vpack.c.b16 %v1340, %v1333
    %v1971 = vpack.c.b16 %v1341, %v1334
    %v1972 = vpack.c.b16 %v1342, %v1335
    %v1973 = vpack.c.b16 %v1343, %v1336
    %v1974 = vpack.c.b16 %v1351, %v1344
    %v1975 = vpack.c.b16 %v1352, %v1345
    %v1976 = vpack.c.b16 %v1353, %v1346
    %v1977 = vpack.c.b16 %v1354, %v1347
    %v1978 = vpack.c.b16 %v1355, %v1348
    %v1979 = vpack.c.b16 %v1356, %v1349
    %v1980 = vpack.c.b16 %v1357, %v1350
    %v1981 = vpack.c.b16 %v1365, %v1358
    %v1982 = vpack.c.b16 %v1366, %v1359
    %v1983 = vpack.c.b16 %v1367, %v1360
    %v1984 = vpack.c.b16 %v1368, %v1361
    %v1985 = vpack.c.b16 %v1369, %v1362
    %v1986 = vpack.c.b16 %v1370, %v1363
    %v1987 = vpack.c.b16 %v1371, %v1364
    %v1988 = vpack.c.b16 %v1379, %v1372
    %v1989 = vpack.c.b16 %v1380, %v1373
    %v1990 = vpack.c.b16 %v1381, %v1374
    %v1991 = vpack.c.b16 %v1382, %v1375
    %v1992 = vpack.c.b16 %v1383, %v1376
    %v1993 = vpack.c.b16 %v1384, %v1377
    %v1994 = vpack.c.b16 %v1385, %v1378
    %v1995 = vpack.c.b16 %v1393, %v1386
    %v1996 = vpack.c.b16 %v1394, %v1387
    %v1997 = vpack.c.b16 %v1395, %v1388
    %v1998 = vpack.c.b16 %v1396, %v1389
    %v1999 = vpack.c.b16 %v1397, %v1390
    %v2000 = vpack.c.b16 %v1398, %v1391
    %v2001 = vpack.c.b16 %v1399, %v1392
    %v2002 = vpack.c.b16 %v1407, %v1400
    %v2003 = vpack.c.b16 %v1408, %v1401
    %v2004 = vpack.c.b16 %v1409, %v1402
    %v2005 = vpack.c.b16 %v1410, %v1403
    %v2006 = vpack.c.b16 %v1411, %v1404
    %v2007 = vpack.c.b16 %v1412, %v1405
    %v2008 = vpack.c.b16 %v1413, %v1406
    %v2009 = vpack.c.b16 %v1421, %v1414
    %v2010 = vpack.c.b16 %v1422, %v1415
    %v2011 = vpack.c.b16 %v1423, %v1416
    %v2012 = vpack.c.b16 %v1424, %v1417
    %v2013 = vpack.c.b16 %v1425, %v1418
    %v2014 = vpack.c.b16 %v1426, %v1419
    %v2015 = vpack.c.b16 %v1427, %v1420
    %v2016 = vpack.c.b16 %v1435, %v1428
    %v2017 = vpack.c.b16 %v1436, %v1429
    %v2018 = vpack.c.b16 %v1437, %v1430
    %v2019 = vpack.c.b16 %v1438, %v1431
    %v2020 = vpack.c.b16 %v1439, %v1432
    %v2021 = vpack.c.b16 %v1440, %v1433
    %v2022 = vpack.c.b16 %v1441, %v1434
    %v2023 = vpack.c.b16 %v1449, %v1442
    %v2024 = vpack.c.b16 %v1450, %v1443
    %v2025 = vpack.c.b16 %v1451, %v1444
    %v2026 = vpack.c.b16 %v1452, %v1445
    %v2027 = vpack.c.b16 %v1453, %v1446
    %v2028 = vpack.c.b16 %v1454, %v1447
    %v2029 = vpack.c.b16 %v1455, %v1448
    %v2030 = vpack.c.b16 %v1463, %v1456
    %v2031 = vpack.c.b16 %v1464, %v1457
    %v2032 = vpack.c.b16 %v1465, %v1458
    %v2033 = vpack.c.b16 %v1466, %v1459
    %v2034 = vpack.c.b16 %v1467, %v1460
    %v2035 = vpack.c.b16 %v1468, %v1461
    %v2036 = vpack.c.b16 %v1469, %v1462
    %v2037 = vpack.c.b16 %v1477, %v1470
    %v2038 = vpack.c.b16 %v1478, %v1471
    %v2039 = vpack.c.b16 %v1479, %v1472
    %v2040 = vpack.c.b16 %v1480, %v1473
    %v2041 = vpack.c.b16 %v1481, %v1474
    %v2042 = vpack.c.b16 %v1482, %v1475
    %v2043 = vpack.c.b16 %v1483, %v1476
    %v2044 = vpack.c.b16 %v1491, %v1484
    %v2045 = vpack.c.b16 %v1492, %v1485
    %v2046 = vpack.c.b16 %v1493, %v1486
    %v2047 = vpack.c.b16 %v1494, %v1487
    %v2048 = vpack.c.b16 %v1495, %v1488
    %v2049 = vpack.c.b16 %v1496, %v1489
    %v2050 = vpack.c.b16 %v1497, %v1490
    %v2051 = vpack.c.b16 %v1505, %v1498
    %v2052 = vpack.c.b16 %v1506, %v1499
    %v2053 = vpack.c.b16 %v1507, %v1500
    %v2054 = vpack.c.b16 %v1508, %v1501
    %v2055 = vpack.c.b16 %v1509, %v1502
    %v2056 = vpack.c.b16 %v1510, %v1503
    %v2057 = vpack.c.b16 %v1511, %v1504
    %v2058 = vpack.c.b16 %v1519, %v1512
    %v2059 = vpack.c.b16 %v1520, %v1513
    %v2060 = vpack.c.b16 %v1521, %v1514
    %v2061 = vpack.c.b16 %v1522, %v1515
    %v2062 = vpack.c.b16 %v1523, %v1516
    %v2063 = vpack.c.b16 %v1524, %v1517
    %v2064 = vpack.c.b16 %v1525, %v1518
    %v2065 = vpack.c.b16 %v1533, %v1526
    %v2066 = vpack.c.b16 %v1534, %v1527
    %v2067 = vpack.c.b16 %v1535, %v1528
    %v2068 = vpack.c.b16 %v1536, %v1529
    %v2069 = vpack.c.b16 %v1537, %v1530
    %v2070 = vpack.c.b16 %v1538, %v1531
    %v2071 = vpack.c.b16 %v1539, %v1532
    %v2072 = vpack.c.b16 %v1547, %v1540
    %v2073 = vpack.c.b16 %v1548, %v1541
    %v2074 = vpack.c.b16 %v1549, %v1542
    %v2075 = vpack.c.b16 %v1550, %v1543
    %v2076 = vpack.c.b16 %v1551, %v1544
    %v2077 = vpack.c.b16 %v1552, %v1545
    %v2078 = vpack.c.b16 %v1553, %v1546
    %v2079 = vpack.c.b16 %v1561, %v1554
    %v2080 = vpack.c.b16 %v1562, %v1555
    %v2081 = vpack.c.b16 %v1563, %v1556
    %v2082 = vpack.c.b16 %v1564, %v1557
    %v2083 = vpack.c.b16 %v1565, %v1558
    %v2084 = vpack.c.b16 %v1566, %v1559
    %v2085 = vpack.c.b16 %v1567, %v1560
    %v2086 = vpack.c.b16 %v1575, %v1568
    %v2087 = vpack.c.b16 %v1576, %v1569
    %v2088 = vpack.c.b16 %v1577, %v1570
    %v2089 = vpack.c.b16 %v1578, %v1571
    %v2090 = vpack.c.b16 %v1579, %v1572
    %v2091 = vpack.c.b16 %v1580, %v1573
    %v2092 = vpack.c.b16 %v1581, %v1574
    %v2093 = vpack.c.b16 %v1589, %v1582
    %v2094 = vpack.c.b16 %v1590, %v1583
    %v2095 = vpack.c.b16 %v1591, %v1584
    %v2096 = vpack.c.b16 %v1592, %v1585
    %v2097 = vpack.c.b16 %v1593, %v1586
    %v2098 = vpack.c.b16 %v1594, %v1587
    %v2099 = vpack.c.b16 %v1595, %v1588
    %v2100 = vpack.c.b16 %v1603, %v1596
    %v2101 = vpack.c.b16 %v1604, %v1597
    %v2102 = vpack.c.b16 %v1605, %v1598
    %v2103 = vpack.c.b16 %v1606, %v1599
    %v2104 = vpack.c.b16 %v1607, %v1600
    %v2105 = vpack.c.b16 %v1608, %v1601
    %v2106 = vpack.c.b16 %v1609, %v1602
    %v2107 = vpack.c.b16 %v1617, %v1610
    %v2108 = vpack.c.b16 %v1618, %v1611
    %v2109 = vpack.c.b16 %v1619, %v1612
    %v2110 = vpack.c.b16 %v1620, %v1613
    %v2111 = vpack.c.b16 %v1621, %v1614
    %v2112 = vpack.c.b16 %v1622, %v1615
    %v2113 = vpack.c.b16 %v1623, %v1616
    %v2114 = vpack.c.b16 %v1631, %v1624
    %v2115 = vpack.c.b16 %v1632, %v1625
    %v2116 = vpack.c.b16 %v1633, %v1626
    %v2117 = vpack.c.b16 %v1634, %v1627
    %v2118 = vpack.c.b16 %v1635, %v1628
    %v2119 = vpack.c.b16 %v1636, %v1629
    %v2120 = vpack.c.b16 %v1637, %v1630
    %v2121 = vpack.c.b16 %v1645, %v1638
    %v2122 = vpack.c.b16 %v1646, %v1639
    %v2123 = vpack.c.b16 %v1647, %v1640
    %v2124 = vpack.c.b16 %v1648, %v1641
    %v2125 = vpack.c.b16 %v1649, %v1642
    %v2126 = vpack.c.b16 %v1650, %v1643
    %v2127 = vpack.c.b16 %v1651, %v1644
    %v2128 = vpack.c.b16 %v1659, %v1652
    %v2129 = vpack.c.b16 %v1660, %v1653
    %v2130 = vpack.c.b16 %v1661, %v1654
    %v2131 = vpack.c.b16 %v1662, %v1655
    %v2132 = vpack.c.b16 %v1663, %v1656
    %v2133 = vpack.c.b16 %v1664, %v1657
    %v2134 = vpack.c.b16 %v1665, %v1658
    %v2135 = vpack.c.b16 %v1673, %v1666
    %v2136 = vpack.c.b16 %v1674, %v1667
    %v2137 = vpack.c.b16 %v1675, %v1668
    %v2138 = vpack.c.b16 %v1676, %v1669
    %v2139 = vpack.c.b16 %v1677, %v1670
    %v2140 = vpack.c.b16 %v1678, %v1671
    %v2141 = vpack.c.b16 %v1679, %v1672
    %v2142 = vpack.c.b16 %v1687, %v1680
    %v2143 = vpack.c.b16 %v1688, %v1681
    %v2144 = vpack.c.b16 %v1689, %v1682
    %v2145 = vpack.c.b16 %v1690, %v1683
    %v2146 = vpack.c.b16 %v1691, %v1684
    %v2147 = vpack.c.b16 %v1692, %v1685
    %v2148 = vpack.c.b16 %v1693, %v1686
    %v2149 = vpack.c.b16 %v1701, %v1694
    %v2150 = vpack.c.b16 %v1702, %v1695
    %v2151 = vpack.c.b16 %v1703, %v1696
    %v2152 = vpack.c.b16 %v1704, %v1697
    %v2153 = vpack.c.b16 %v1705, %v1698
    %v2154 = vpack.c.b16 %v1706, %v1699
    %v2155 = vpack.c.b16 %v1707, %v1700
    %v2156 = vpack.c.b16 %v1715, %v1708
    %v2157 = vpack.c.b16 %v1716, %v1709
    %v2158 = vpack.c.b16 %v1717, %v1710
    %v2159 = vpack.c.b16 %v1718, %v1711
    %v2160 = vpack.c.b16 %v1719, %v1712
    %v2161 = vpack.c.b16 %v1720, %v1713
    %v2162 = vpack.c.b16 %v1721, %v1714
    %v2163 = vpack.c.b16 %v1729, %v1722
    %v2164 = vpack.c.b16 %v1730, %v1723
    %v2165 = vpack.c.b16 %v1731, %v1724
    %v2166 = vpack.c.b16 %v1732, %v1725
    %v2167 = vpack.c.b16 %v1733, %v1726
    %v2168 = vpack.c.b16 %v1734, %v1727
    %v2169 = vpack.c.b16 %v1735, %v1728
    %v2170 = vpack.c.b16 %v1743, %v1736
    %v2171 = vpack.c.b16 %v1744, %v1737
    %v2172 = vpack.c.b16 %v1745, %v1738
    %v2173 = vpack.c.b16 %v1746, %v1739
    %v2174 = vpack.c.b16 %v1747, %v1740
    %v2175 = vpack.c.b16 %v1748, %v1741
    %v2176 = vpack.c.b16 %v1749, %v1742
    %v2177 = vpack.c.b16 %v1757, %v1750
    %v2178 = vpack.c.b16 %v1758, %v1751
    %v2179 = vpack.c.b16 %v1759, %v1752
    %v2180 = vpack.c.b16 %v1760, %v1753
    %v2181 = vpack.c.b16 %v1761, %v1754
    %v2182 = vpack.c.b16 %v1762, %v1755
    %v2183 = vpack.c.b16 %v1763, %v1756
    %v2184 = vpack.c.b16 %v1771, %v1764
    %v2185 = vpack.c.b16 %v1772, %v1765
    %v2186 = vpack.c.b16 %v1773, %v1766
    %v2187 = vpack.c.b16 %v1774, %v1767
    %v2188 = vpack.c.b16 %v1775, %v1768
    %v2189 = vpack.c.b16 %v1776, %v1769
    %v2190 = vpack.c.b16 %v1777, %v1770
    %v2191 = vpack.c.b16 %v1785, %v1778
    %v2192 = vpack.c.b16 %v1786, %v1779
    %v2193 = vpack.c.b16 %v1787, %v1780
    %v2194 = vpack.c.b16 %v1788, %v1781
    %v2195 = vpack.c.b16 %v1789, %v1782
    %v2196 = vpack.c.b16 %v1790, %v1783
    %v2197 = vpack.c.b16 %v1791, %v1784
    %v2198 = vpack.c.b16 %v1799, %v1792
    %v2199 = vpack.c.b16 %v1800, %v1793
    %v2200 = vpack.c.b16 %v1801, %v1794
    %v2201 = vpack.c.b16 %v1802, %v1795
    %v2202 = vpack.c.b16 %v1803, %v1796
    %v2203 = vpack.c.b16 %v1804, %v1797
    %v2204 = vpack.c.b16 %v1805, %v1798
    %v2205 = vpack.c.b16 %v1813, %v1806
    %v2206 = vpack.c.b16 %v1814, %v1807
    %v2207 = vpack.c.b16 %v1815, %v1808
    %v2208 = vpack.c.b16 %v1816, %v1809
    %v2209 = vpack.c.b16 %v1817, %v1810
    %v2210 = vpack.c.b16 %v1818, %v1811
    %v2211 = vpack.c.b16 %v1819, %v1812
    %v2212 = vpack.c.b16 %v1827, %v1820
    %v2213 = vpack.c.b16 %v1828, %v1821
    %v2214 = vpack.c.b16 %v1829, %v1822
    %v2215 = vpack.c.b16 %v1830, %v1823
    %v2216 = vpack.c.b16 %v1831, %v1824
    %v2217 = vpack.c.b16 %v1832, %v1825
    %v2218 = vpack.c.b16 %v1833, %v1826
    %v2219 = vpack.c.b16 %v1841, %v1834
    %v2220 = vpack.c.b16 %v1842, %v1835
    %v2221 = vpack.c.b16 %v1843, %v1836
    %v2222 = vpack.c.b16 %v1844, %v1837
    %v2223 = vpack.c.b16 %v1845, %v1838
    %v2224 = vpack.c.b16 %v1846, %v1839
    %v2225 = vpack.c.b16 %v1847, %v1840
    %v2226 = vpack.c.b16 %v1855, %v1848
    %v2227 = vpack.c.b16 %v1856, %v1849
    %v2228 = vpack.c.b16 %v1857, %v1850
    %v2229 = vpack.c.b16 %v1858, %v1851
    %v2230 = vpack.c.b16 %v1859, %v1852
    %v2231 = vpack.c.b16 %v1860, %v1853
    %v2232 = vpack.c.b16 %v1861, %v1854
    %v2233 = vpack.c.b16 %v1869, %v1862
    %v2234 = vpack.c.b16 %v1870, %v1863
    %v2235 = vpack.c.b16 %v1871, %v1864
    %v2236 = vpack.c.b16 %v1872, %v1865
    %v2237 = vpack.c.b16 %v1873, %v1866
    %v2238 = vpack.c.b16 %v1874, %v1867
    %v2239 = vpack.c.b16 %v1875, %v1868
    %v2240 = vpack.c.b16 %v1883, %v1876
    %v2241 = vpack.c.b16 %v1884, %v1877
    %v2242 = vpack.c.b16 %v1885, %v1878
    %v2243 = vpack.c.b16 %v1886, %v1879
    %v2244 = vpack.c.b16 %v1887, %v1880
    %v2245 = vpack.c.b16 %v1888, %v1881
    %v2246 = vpack.c.b16 %v1889, %v1882
    %v2247 = vpack.c.b16 %v1897, %v1890
    %v2248 = vpack.c.b16 %v1898, %v1891
    %v2249 = vpack.c.b16 %v1899, %v1892
    %v2250 = vpack.c.b16 %v1900, %v1893
    %v2251 = vpack.c.b16 %v1901, %v1894
    %v2252 = vpack.c.b16 %v1902, %v1895
    %v2253 = vpack.c.b16 %v1903, %v1896
    %v2254 = vpack.c.b16 %v1911, %v1904
    %v2255 = vpack.c.b16 %v1912, %v1905
    %v2256 = vpack.c.b16 %v1913, %v1906
    %v2257 = vpack.c.b16 %v1914, %v1907
    %v2258 = vpack.c.b16 %v1915, %v1908
    %v2259 = vpack.c.b16 %v1916, %v1909
    %v2260 = vpack.c.b16 %v1917, %v1910
    %vm2604 = vcmask 130048
    %v2606 = vsel %vm2604, %v190, 0
    %2608 = vmatprep.subr.bf16.mxu0 %v1919
    %2609 = vmatpush1.bf16.msra.mxu0 %v1918
    %2610 = vmatprep.subr.bf16.mxu0 %v1926
    %2611 = vmatpush1.bf16.msra.mxu0 %v1925
    %2612 = vmatprep.subr.bf16.mxu0 %v1933
    %2613 = vmatpush1.bf16.msra.mxu0 %v1932
    %2614 = vmatprep.subr.bf16.mxu0 %v1940
    %2615 = vmatpush1.bf16.msra.mxu0 %v1939
    %2616 = vmatprep.subr.bf16.mxu0 %v1947
    %2617 = vmatpush1.bf16.msra.mxu0 %v1946
    %2618 = vmatprep.subr.bf16.mxu0 %v1954
    %2619 = vmatpush1.bf16.msra.mxu0 %v1953
    %2620 = vmatprep.subr.bf16.mxu0 %v1961
    %2621 = vmatpush1.bf16.msra.mxu0 %v1960
    %2622 = vmatprep.subr.bf16.mxu0 %v1968
    %2623 = vmatpush1.bf16.msra.mxu0 %v1967
    %2624 = vmatprep.subr.bf16.mxu0 %v1975
    %2625 = vmatpush1.bf16.msra.mxu0 %v1974
    %2626 = vmatprep.subr.bf16.mxu0 %v1982
    %2627 = vmatpush1.bf16.msra.mxu0 %v1981
    %2628 = vmatprep.subr.bf16.mxu0 %v1989
    %2629 = vmatpush1.bf16.msra.mxu0 %v1988
    %2630 = vmatprep.subr.bf16.mxu0 %v1996
    %2631 = vmatpush1.bf16.msra.mxu0 %v1995
    %2632 = vmatprep.subr.bf16.mxu0 %v2003
    %2633 = vmatpush1.bf16.msra.mxu0 %v2002
    %2634 = vmatprep.subr.bf16.mxu0 %v2010
    %2635 = vmatpush1.bf16.msra.mxu0 %v2009
    %2636 = vmatprep.subr.bf16.mxu0 %v2017
    %2637 = vmatpush1.bf16.msra.mxu0 %v2016
    %2638 = vmatprep.subr.bf16.mxu0 %v2024
    %2639 = vmatpush1.bf16.msra.mxu0 %v2023
    %2640 = vmatprep.mubr.bf16.mxu0 %v185
    %2641 = vmatmul.mubr.bf16.gmra.mrb[0].mxu0 %v184
    %v2642 = vpop.f32.mrb[0].mxu0
    %v2643 = vadd.f32 %v712, %v2642
    %v2644 = vpop.f32.mrb[0].mxu0
    %v2645 = vadd.f32 %v714, %v2644
    %v2646 = vpop.f32.mrb[0].mxu0
    %v2647 = vpop.f32.mrb[0].mxu0
    %2648 = vdwg.mxu0
    %2649 = vmatprep.subr.bf16.mxu0 %v2031
    %2650 = vmatpush1.bf16.msra.mxu0 %v2030
    %2651 = vmatprep.subr.bf16.mxu0 %v2038
    %2652 = vmatpush1.bf16.msra.mxu0 %v2037
    %2653 = vmatprep.subr.bf16.mxu0 %v2045
    %2654 = vmatpush1.bf16.msra.mxu0 %v2044
    %2655 = vmatprep.subr.bf16.mxu0 %v2052
    %2656 = vmatpush1.bf16.msra.mxu0 %v2051
    %2657 = vmatprep.subr.bf16.mxu0 %v2059
    %2658 = vmatpush1.bf16.msra.mxu0 %v2058
    %2659 = vmatprep.subr.bf16.mxu0 %v2066
    %2660 = vmatpush1.bf16.msra.mxu0 %v2065
    %2661 = vmatprep.subr.bf16.mxu0 %v2073
    %2662 = vmatpush1.bf16.msra.mxu0 %v2072
    %2663 = vmatprep.subr.bf16.mxu0 %v2080
    %2664 = vmatpush1.bf16.msra.mxu0 %v2079
    %2665 = vmatprep.subr.bf16.mxu0 %v2087
    %2666 = vmatpush1.bf16.msra.mxu0 %v2086
    %2667 = vmatprep.subr.bf16.mxu0 %v2094
    %2668 = vmatpush1.bf16.msra.mxu0 %v2093
    %2669 = vmatprep.subr.bf16.mxu0 %v2101
    %2670 = vmatpush1.bf16.msra.mxu0 %v2100
    %2671 = vmatprep.subr.bf16.mxu0 %v2108
    %2672 = vmatpush1.bf16.msra.mxu0 %v2107
    %2673 = vmatprep.subr.bf16.mxu0 %v2115
    %2674 = vmatpush1.bf16.msra.mxu0 %v2114
    %2675 = vmatprep.subr.bf16.mxu0 %v2122
    %2676 = vmatpush1.bf16.msra.mxu0 %v2121
    %2677 = vmatprep.subr.bf16.mxu0 %v2129
    %2678 = vmatpush1.bf16.msra.mxu0 %v2128
    %2679 = vmatprep.subr.bf16.mxu0 %v2136
    %2680 = vmatpush1.bf16.msra.mxu0 %v2135
    %2681 = vmatprep.mubr.bf16.mxu0 %v187
    %2682 = vmatmul.mubr.bf16.gmra.mrb[0].mxu0 %v186
    %v2683 = vpop.f32.mrb[0].mxu0
    %v2684 = vadd.f32 %v2643, %v2683
    %v2685 = vpop.f32.mrb[0].mxu0
    %v2686 = vadd.f32 %v2645, %v2685
    %v2687 = vpop.f32.mrb[0].mxu0
    %v2688 = vpop.f32.mrb[0].mxu0
    %2689 = vdwg.mxu0
    %2690 = vmatprep.subr.bf16.mxu0 %v2143
    %2691 = vmatpush1.bf16.msra.mxu0 %v2142
    %2692 = vmatprep.subr.bf16.mxu0 %v2150
    %2693 = vmatpush1.bf16.msra.mxu0 %v2149
    %2694 = vmatprep.subr.bf16.mxu0 %v2157
    %2695 = vmatpush1.bf16.msra.mxu0 %v2156
    %2696 = vmatprep.subr.bf16.mxu0 %v2164
    %2697 = vmatpush1.bf16.msra.mxu0 %v2163
    %2698 = vmatprep.subr.bf16.mxu0 %v2171
    %2699 = vmatpush1.bf16.msra.mxu0 %v2170
    %2700 = vmatprep.subr.bf16.mxu0 %v2178
    %2701 = vmatpush1.bf16.msra.mxu0 %v2177
    %2702 = vmatprep.subr.bf16.mxu0 %v2185
    %2703 = vmatpush1.bf16.msra.mxu0 %v2184
    %2704 = vmatprep.subr.bf16.mxu0 %v2192
    %2705 = vmatpush1.bf16.msra.mxu0 %v2191
    %2706 = vmatprep.subr.bf16.mxu0 %v2199
    %2707 = vmatpush1.bf16.msra.mxu0 %v2198
    %2708 = vmatprep.subr.bf16.mxu0 %v2206
    %2709 = vmatpush1.bf16.msra.mxu0 %v2205
    %2710 = vmatprep.subr.bf16.mxu0 %v2213
    %2711 = vmatpush1.bf16.msra.mxu0 %v2212
    %2712 = vmatprep.subr.bf16.mxu0 %v2220
    %2713 = vmatpush1.bf16.msra.mxu0 %v2219
    %2714 = vmatprep.subr.bf16.mxu0 %v2227
    %2715 = vmatpush1.bf16.msra.mxu0 %v2226
    %2716 = vmatprep.subr.bf16.mxu0 %v2234
    %2717 = vmatpush1.bf16.msra.mxu0 %v2233
    %2718 = vmatprep.subr.bf16.mxu0 %v2241
    %2719 = vmatpush1.bf16.msra.mxu0 %v2240
    %2720 = vmatprep.subr.bf16.mxu0 %v2248
    %2721 = vmatpush1.bf16.msra.mxu0 %v2247
    %2722 = vmatprep.mubr.bf16.mxu0 %v189
    %2723 = vmatmul.mubr.bf16.gmra.mrb[0].mxu0 %v188
    %v2724 = vpop.f32.mrb[0].mxu0
    %v2725 = vadd.f32 %v2684, %v2724
    %v2726 = vpop.f32.mrb[0].mxu0
    %v2727 = vadd.f32 %v2686, %v2726
    %v2728 = vpop.f32.mrb[0].mxu0
    %v2729 = vpop.f32.mrb[0].mxu0
    %2730 = vdwg.mxu0
    %2731 = vmatprep.subr.bf16.mxu0 %v2255
    %2732 = vmatpush1.bf16.msra.mxu0 %v2254
    %2733 = vmatprep.subr.bf16.mxu0 0
    %2734 = vmatpush1.bf16.msra.mxu0 0
    %2735 = vmatprep.subr.bf16.mxu0 0
    %2736 = vmatpush1.bf16.msra.mxu0 0
    %2737 = vmatprep.subr.bf16.mxu0 0
    %2738 = vmatpush1.bf16.msra.mxu0 0
    %2739 = vmatprep.subr.bf16.mxu0 0
    %2740 = vmatpush1.bf16.msra.mxu0 0
    %2741 = vmatprep.subr.bf16.mxu0 0
    %2742 = vmatpush1.bf16.msra.mxu0 0
    %2743 = vmatprep.subr.bf16.mxu0 0
    %2744 = vmatpush1.bf16.msra.mxu0 0
    %2745 = vmatprep.subr.bf16.mxu0 0
    %2746 = vmatpush1.bf16.msra.mxu0 0
    %2747 = vmatprep.subr.bf16.mxu0 0
    %2748 = vmatpush1.bf16.msra.mxu0 0
    %2749 = vmatprep.subr.bf16.mxu0 0
    %2750 = vmatpush1.bf16.msra.mxu0 0
    %2751 = vmatprep.subr.bf16.mxu0 0
    %2752 = vmatpush1.bf16.msra.mxu0 0
    %2753 = vmatprep.subr.bf16.mxu0 0
    %2754 = vmatpush1.bf16.msra.mxu0 0
    %2755 = vmatprep.subr.bf16.mxu0 0
    %2756 = vmatpush1.bf16.msra.mxu0 0
    %2757 = vmatprep.subr.bf16.mxu0 0
    %2758 = vmatpush1.bf16.msra.mxu0 0
    %2759 = vmatprep.subr.bf16.mxu0 0
    %2760 = vmatpush1.bf16.msra.mxu0 0
    %2761 = vmatprep.subr.bf16.mxu0 0
    %2762 = vmatpush1.bf16.msra.mxu0 0
    %2763 = vmatprep.mubr.bf16.mxu0 0
    %2764 = vmatmul.mubr.bf16.gmra.mrb[0].mxu0 %v2606
    %v2765 = vpop.f32.mrb[0].mxu0
    %v2766 = vadd.f32 %v2725, %v2765
    %v2767 = vpop.f32.mrb[0].mxu0
    %v2768 = vadd.f32 %v2727, %v2767
    %v2769 = vpop.f32.mrb[0].mxu0
    %v2770 = vpop.f32.mrb[0].mxu0
    %2771 = vdwg.mxu0
    %2772 = vmatprep.subr.bf16.mxu0 %v1921
    %2773 = vmatpush1.bf16.msra.mxu0 %v1920
    %2774 = vmatprep.subr.bf16.mxu0 %v1928
    %2775 = vmatpush1.bf16.msra.mxu0 %v1927
    %2776 = vmatprep.subr.bf16.mxu0 %v1935
    %2777 = vmatpush1.bf16.msra.mxu0 %v1934
    %2778 = vmatprep.subr.bf16.mxu0 %v1942
    %2779 = vmatpush1.bf16.msra.mxu0 %v1941
    %2780 = vmatprep.subr.bf16.mxu0 %v1949
    %2781 = vmatpush1.bf16.msra.mxu0 %v1948
    %2782 = vmatprep.subr.bf16.mxu0 %v1956
    %2783 = vmatpush1.bf16.msra.mxu0 %v1955
    %2784 = vmatprep.subr.bf16.mxu0 %v1963
    %2785 = vmatpush1.bf16.msra.mxu0 %v1962
    %2786 = vmatprep.subr.bf16.mxu0 %v1970
    %2787 = vmatpush1.bf16.msra.mxu0 %v1969
    %2788 = vmatprep.subr.bf16.mxu0 %v1977
    %2789 = vmatpush1.bf16.msra.mxu0 %v1976
    %2790 = vmatprep.subr.bf16.mxu0 %v1984
    %2791 = vmatpush1.bf16.msra.mxu0 %v1983
    %2792 = vmatprep.subr.bf16.mxu0 %v1991
    %2793 = vmatpush1.bf16.msra.mxu0 %v1990
    %2794 = vmatprep.subr.bf16.mxu0 %v1998
    %2795 = vmatpush1.bf16.msra.mxu0 %v1997
    %2796 = vmatprep.subr.bf16.mxu0 %v2005
    %2797 = vmatpush1.bf16.msra.mxu0 %v2004
    %2798 = vmatprep.subr.bf16.mxu0 %v2012
    %2799 = vmatpush1.bf16.msra.mxu0 %v2011
    %2800 = vmatprep.subr.bf16.mxu0 %v2019
    %2801 = vmatpush1.bf16.msra.mxu0 %v2018
    %2802 = vmatprep.subr.bf16.mxu0 %v2026
    %2803 = vmatpush1.bf16.msra.mxu0 %v2025
    %2804 = vmatprep.mubr.bf16.mxu0 %v185
    %2805 = vmatmul.mubr.bf16.gmra.mrb[0].mxu0 %v184
    %v2806 = vpop.f32.mrb[0].mxu0
    %v2807 = vadd.f32 %v753, %v2806
    %v2808 = vpop.f32.mrb[0].mxu0
    %v2809 = vadd.f32 %v755, %v2808
    %v2810 = vpop.f32.mrb[0].mxu0
    %v2811 = vpop.f32.mrb[0].mxu0
    %2812 = vdwg.mxu0
    %2813 = vmatprep.subr.bf16.mxu0 %v2033
    %2814 = vmatpush1.bf16.msra.mxu0 %v2032
    %2815 = vmatprep.subr.bf16.mxu0 %v2040
    %2816 = vmatpush1.bf16.msra.mxu0 %v2039
    %2817 = vmatprep.subr.bf16.mxu0 %v2047
    %2818 = vmatpush1.bf16.msra.mxu0 %v2046
    %2819 = vmatprep.subr.bf16.mxu0 %v2054
    %2820 = vmatpush1.bf16.msra.mxu0 %v2053
    %2821 = vmatprep.subr.bf16.mxu0 %v2061
    %2822 = vmatpush1.bf16.msra.mxu0 %v2060
    %2823 = vmatprep.subr.bf16.mxu0 %v2068
    %2824 = vmatpush1.bf16.msra.mxu0 %v2067
    %2825 = vmatprep.subr.bf16.mxu0 %v2075
    %2826 = vmatpush1.bf16.msra.mxu0 %v2074
    %2827 = vmatprep.subr.bf16.mxu0 %v2082
    %2828 = vmatpush1.bf16.msra.mxu0 %v2081
    %2829 = vmatprep.subr.bf16.mxu0 %v2089
    %2830 = vmatpush1.bf16.msra.mxu0 %v2088
    %2831 = vmatprep.subr.bf16.mxu0 %v2096
    %2832 = vmatpush1.bf16.msra.mxu0 %v2095
    %2833 = vmatprep.subr.bf16.mxu0 %v2103
    %2834 = vmatpush1.bf16.msra.mxu0 %v2102
    %2835 = vmatprep.subr.bf16.mxu0 %v2110
    %2836 = vmatpush1.bf16.msra.mxu0 %v2109
    %2837 = vmatprep.subr.bf16.mxu0 %v2117
    %2838 = vmatpush1.bf16.msra.mxu0 %v2116
    %2839 = vmatprep.subr.bf16.mxu0 %v2124
    %2840 = vmatpush1.bf16.msra.mxu0 %v2123
    %2841 = vmatprep.subr.bf16.mxu0 %v2131
    %2842 = vmatpush1.bf16.msra.mxu0 %v2130
    %2843 = vmatprep.subr.bf16.mxu0 %v2138
    %2844 = vmatpush1.bf16.msra.mxu0 %v2137
    %2845 = vmatprep.mubr.bf16.mxu0 %v187
    %2846 = vmatmul.mubr.bf16.gmra.mrb[0].mxu0 %v186
    %v2847 = vpop.f32.mrb[0].mxu0
    %v2848 = vadd.f32 %v2807, %v2847
    %v2849 = vpop.f32.mrb[0].mxu0
    %v2850 = vadd.f32 %v2809, %v2849
    %v2851 = vpop.f32.mrb[0].mxu0
    %v2852 = vpop.f32.mrb[0].mxu0
    %2853 = vdwg.mxu0
    %2854 = vmatprep.subr.bf16.mxu0 %v2145
    %2855 = vmatpush1.bf16.msra.mxu0 %v2144
    %2856 = vmatprep.subr.bf16.mxu0 %v2152
    %2857 = vmatpush1.bf16.msra.mxu0 %v2151
    %2858 = vmatprep.subr.bf16.mxu0 %v2159
    %2859 = vmatpush1.bf16.msra.mxu0 %v2158
    %2860 = vmatprep.subr.bf16.mxu0 %v2166
    %2861 = vmatpush1.bf16.msra.mxu0 %v2165
    %2862 = vmatprep.subr.bf16.mxu0 %v2173
    %2863 = vmatpush1.bf16.msra.mxu0 %v2172
    %2864 = vmatprep.subr.bf16.mxu0 %v2180
    %2865 = vmatpush1.bf16.msra.mxu0 %v2179
    %2866 = vmatprep.subr.bf16.mxu0 %v2187
    %2867 = vmatpush1.bf16.msra.mxu0 %v2186
    %2868 = vmatprep.subr.bf16.mxu0 %v2194
    %2869 = vmatpush1.bf16.msra.mxu0 %v2193
    %2870 = vmatprep.subr.bf16.mxu0 %v2201
    %2871 = vmatpush1.bf16.msra.mxu0 %v2200
    %2872 = vmatprep.subr.bf16.mxu0 %v2208
    %2873 = vmatpush1.bf16.msra.mxu0 %v2207
    %2874 = vmatprep.subr.bf16.mxu0 %v2215
    %2875 = vmatpush1.bf16.msra.mxu0 %v2214
    %2876 = vmatprep.subr.bf16.mxu0 %v2222
    %2877 = vmatpush1.bf16.msra.mxu0 %v2221
    %2878 = vmatprep.subr.bf16.mxu0 %v2229
    %2879 = vmatpush1.bf16.msra.mxu0 %v2228
    %2880 = vmatprep.subr.bf16.mxu0 %v2236
    %2881 = vmatpush1.bf16.msra.mxu0 %v2235
    %2882 = vmatprep.subr.bf16.mxu0 %v2243
    %2883 = vmatpush1.bf16.msra.mxu0 %v2242
    %2884 = vmatprep.subr.bf16.mxu0 %v2250
    %2885 = vmatpush1.bf16.msra.mxu0 %v2249
    %2886 = vmatprep.mubr.bf16.mxu0 %v189
    %2887 = vmatmul.mubr.bf16.gmra.mrb[0].mxu0 %v188
    %v2888 = vpop.f32.mrb[0].mxu0
    %v2889 = vadd.f32 %v2848, %v2888
    %v2890 = vpop.f32.mrb[0].mxu0
    %v2891 = vadd.f32 %v2850, %v2890
    %v2892 = vpop.f32.mrb[0].mxu0
    %v2893 = vpop.f32.mrb[0].mxu0
    %2894 = vdwg.mxu0
    %2895 = vmatprep.subr.bf16.mxu0 %v2257
    %2896 = vmatpush1.bf16.msra.mxu0 %v2256
    %2897 = vmatprep.subr.bf16.mxu0 0
    %2898 = vmatpush1.bf16.msra.mxu0 0
    %2899 = vmatprep.subr.bf16.mxu0 0
    %2900 = vmatpush1.bf16.msra.mxu0 0
    %2901 = vmatprep.subr.bf16.mxu0 0
    %2902 = vmatpush1.bf16.msra.mxu0 0
    %2903 = vmatprep.subr.bf16.mxu0 0
    %2904 = vmatpush1.bf16.msra.mxu0 0
    %2905 = vmatprep.subr.bf16.mxu0 0
    %2906 = vmatpush1.bf16.msra.mxu0 0
    %2907 = vmatprep.subr.bf16.mxu0 0
    %2908 = vmatpush1.bf16.msra.mxu0 0
    %2909 = vmatprep.subr.bf16.mxu0 0
    %2910 = vmatpush1.bf16.msra.mxu0 0
    %2911 = vmatprep.subr.bf16.mxu0 0
    %2912 = vmatpush1.bf16.msra.mxu0 0
    %2913 = vmatprep.subr.bf16.mxu0 0
    %2914 = vmatpush1.bf16.msra.mxu0 0
    %2915 = vmatprep.subr.bf16.mxu0 0
    %2916 = vmatpush1.bf16.msra.mxu0 0
    %2917 = vmatprep.subr.bf16.mxu0 0
    %2918 = vmatpush1.bf16.msra.mxu0 0
    %2919 = vmatprep.subr.bf16.mxu0 0
    %2920 = vmatpush1.bf16.msra.mxu0 0
    %2921 = vmatprep.subr.bf16.mxu0 0
    %2922 = vmatpush1.bf16.msra.mxu0 0
    %2923 = vmatprep.subr.bf16.mxu0 0
    %2924 = vmatpush1.bf16.msra.mxu0 0
    %2925 = vmatprep.subr.bf16.mxu0 0
    %2926 = vmatpush1.bf16.msra.mxu0 0
    %2927 = vmatprep.mubr.bf16.mxu0 0
    %2928 = vmatmul.mubr.bf16.gmra.mrb[0].mxu0 %v2606
    %v2929 = vpop.f32.mrb[0].mxu0
    %v2930 = vadd.f32 %v2889, %v2929
    %v2931 = vpop.f32.mrb[0].mxu0
    %v2932 = vadd.f32 %v2891, %v2931
    %v2933 = vpop.f32.mrb[0].mxu0
    %v2934 = vpop.f32.mrb[0].mxu0
    %2935 = vdwg.mxu0
    %2936 = vmatprep.subr.bf16.mxu0 %v1923
    %2937 = vmatpush1.bf16.msra.mxu0 %v1922
    %2938 = vmatprep.subr.bf16.mxu0 %v1930
    %2939 = vmatpush1.bf16.msra.mxu0 %v1929
    %2940 = vmatprep.subr.bf16.mxu0 %v1937
    %2941 = vmatpush1.bf16.msra.mxu0 %v1936
    %2942 = vmatprep.subr.bf16.mxu0 %v1944
    %2943 = vmatpush1.bf16.msra.mxu0 %v1943
    %2944 = vmatprep.subr.bf16.mxu0 %v1951
    %2945 = vmatpush1.bf16.msra.mxu0 %v1950
    %2946 = vmatprep.subr.bf16.mxu0 %v1958
    %2947 = vmatpush1.bf16.msra.mxu0 %v1957
    %2948 = vmatprep.subr.bf16.mxu0 %v1965
    %2949 = vmatpush1.bf16.msra.mxu0 %v1964
    %2950 = vmatprep.subr.bf16.mxu0 %v1972
    %2951 = vmatpush1.bf16.msra.mxu0 %v1971
    %2952 = vmatprep.subr.bf16.mxu0 %v1979
    %2953 = vmatpush1.bf16.msra.mxu0 %v1978
    %2954 = vmatprep.subr.bf16.mxu0 %v1986
    %2955 = vmatpush1.bf16.msra.mxu0 %v1985
    %2956 = vmatprep.subr.bf16.mxu0 %v1993
    %2957 = vmatpush1.bf16.msra.mxu0 %v1992
    %2958 = vmatprep.subr.bf16.mxu0 %v2000
    %2959 = vmatpush1.bf16.msra.mxu0 %v1999
    %2960 = vmatprep.subr.bf16.mxu0 %v2007
    %2961 = vmatpush1.bf16.msra.mxu0 %v2006
    %2962 = vmatprep.subr.bf16.mxu0 %v2014
    %2963 = vmatpush1.bf16.msra.mxu0 %v2013
    %2964 = vmatprep.subr.bf16.mxu0 %v2021
    %2965 = vmatpush1.bf16.msra.mxu0 %v2020
    %2966 = vmatprep.subr.bf16.mxu0 %v2028
    %2967 = vmatpush1.bf16.msra.mxu0 %v2027
    %2968 = vmatprep.mubr.bf16.mxu0 %v185
    %2969 = vmatmul.mubr.bf16.gmra.mrb[0].mxu0 %v184
    %v2970 = vpop.f32.mrb[0].mxu0
    %v2971 = vadd.f32 %v794, %v2970
    %v2972 = vpop.f32.mrb[0].mxu0
    %v2973 = vadd.f32 %v796, %v2972
    %v2974 = vpop.f32.mrb[0].mxu0
    %v2975 = vpop.f32.mrb[0].mxu0
    %2976 = vdwg.mxu0
    %2977 = vmatprep.subr.bf16.mxu0 %v2035
    %2978 = vmatpush1.bf16.msra.mxu0 %v2034
    %2979 = vmatprep.subr.bf16.mxu0 %v2042
    %2980 = vmatpush1.bf16.msra.mxu0 %v2041
    %2981 = vmatprep.subr.bf16.mxu0 %v2049
    %2982 = vmatpush1.bf16.msra.mxu0 %v2048
    %2983 = vmatprep.subr.bf16.mxu0 %v2056
    %2984 = vmatpush1.bf16.msra.mxu0 %v2055
    %2985 = vmatprep.subr.bf16.mxu0 %v2063
    %2986 = vmatpush1.bf16.msra.mxu0 %v2062
    %2987 = vmatprep.subr.bf16.mxu0 %v2070
    %2988 = vmatpush1.bf16.msra.mxu0 %v2069
    %2989 = vmatprep.subr.bf16.mxu0 %v2077
    %2990 = vmatpush1.bf16.msra.mxu0 %v2076
    %2991 = vmatprep.subr.bf16.mxu0 %v2084
    %2992 = vmatpush1.bf16.msra.mxu0 %v2083
    %2993 = vmatprep.subr.bf16.mxu0 %v2091
    %2994 = vmatpush1.bf16.msra.mxu0 %v2090
    %2995 = vmatprep.subr.bf16.mxu0 %v2098
    %2996 = vmatpush1.bf16.msra.mxu0 %v2097
    %2997 = vmatprep.subr.bf16.mxu0 %v2105
    %2998 = vmatpush1.bf16.msra.mxu0 %v2104
    %2999 = vmatprep.subr.bf16.mxu0 %v2112
    %3000 = vmatpush1.bf16.msra.mxu0 %v2111
    %3001 = vmatprep.subr.bf16.mxu0 %v2119
    %3002 = vmatpush1.bf16.msra.mxu0 %v2118
    %3003 = vmatprep.subr.bf16.mxu0 %v2126
    %3004 = vmatpush1.bf16.msra.mxu0 %v2125
    %3005 = vmatprep.subr.bf16.mxu0 %v2133
    %3006 = vmatpush1.bf16.msra.mxu0 %v2132
    %3007 = vmatprep.subr.bf16.mxu0 %v2140
    %3008 = vmatpush1.bf16.msra.mxu0 %v2139
    %3009 = vmatprep.mubr.bf16.mxu0 %v187
    %3010 = vmatmul.mubr.bf16.gmra.mrb[0].mxu0 %v186
    %v3011 = vpop.f32.mrb[0].mxu0
    %v3012 = vadd.f32 %v2971, %v3011
    %v3013 = vpop.f32.mrb[0].mxu0
    %v3014 = vadd.f32 %v2973, %v3013
    %v3015 = vpop.f32.mrb[0].mxu0
    %v3016 = vpop.f32.mrb[0].mxu0
    %3017 = vdwg.mxu0
    %3018 = vmatprep.subr.bf16.mxu0 %v2147
    %3019 = vmatpush1.bf16.msra.mxu0 %v2146
    %3020 = vmatprep.subr.bf16.mxu0 %v2154
    %3021 = vmatpush1.bf16.msra.mxu0 %v2153
    %3022 = vmatprep.subr.bf16.mxu0 %v2161
    %3023 = vmatpush1.bf16.msra.mxu0 %v2160
    %3024 = vmatprep.subr.bf16.mxu0 %v2168
    %3025 = vmatpush1.bf16.msra.mxu0 %v2167
    %3026 = vmatprep.subr.bf16.mxu0 %v2175
    %3027 = vmatpush1.bf16.msra.mxu0 %v2174
    %3028 = vmatprep.subr.bf16.mxu0 %v2182
    %3029 = vmatpush1.bf16.msra.mxu0 %v2181
    %3030 = vmatprep.subr.bf16.mxu0 %v2189
    %3031 = vmatpush1.bf16.msra.mxu0 %v2188
    %3032 = vmatprep.subr.bf16.mxu0 %v2196
    %3033 = vmatpush1.bf16.msra.mxu0 %v2195
    %3034 = vmatprep.subr.bf16.mxu0 %v2203
    %3035 = vmatpush1.bf16.msra.mxu0 %v2202
    %3036 = vmatprep.subr.bf16.mxu0 %v2210
    %3037 = vmatpush1.bf16.msra.mxu0 %v2209
    %3038 = vmatprep.subr.bf16.mxu0 %v2217
    %3039 = vmatpush1.bf16.msra.mxu0 %v2216
    %3040 = vmatprep.subr.bf16.mxu0 %v2224
    %3041 = vmatpush1.bf16.msra.mxu0 %v2223
    %3042 = vmatprep.subr.bf16.mxu0 %v2231
    %3043 = vmatpush1.bf16.msra.mxu0 %v2230
    %3044 = vmatprep.subr.bf16.mxu0 %v2238
    %3045 = vmatpush1.bf16.msra.mxu0 %v2237
    %3046 = vmatprep.subr.bf16.mxu0 %v2245
    %3047 = vmatpush1.bf16.msra.mxu0 %v2244
    %3048 = vmatprep.subr.bf16.mxu0 %v2252
    %3049 = vmatpush1.bf16.msra.mxu0 %v2251
    %3050 = vmatprep.mubr.bf16.mxu0 %v189
    %3051 = vmatmul.mubr.bf16.gmra.mrb[0].mxu0 %v188
    %v3052 = vpop.f32.mrb[0].mxu0
    %v3053 = vadd.f32 %v3012, %v3052
    %v3054 = vpop.f32.mrb[0].mxu0
    %v3055 = vadd.f32 %v3014, %v3054
    %v3056 = vpop.f32.mrb[0].mxu0
    %v3057 = vpop.f32.mrb[0].mxu0
    %3058 = vdwg.mxu0
    %3059 = vmatprep.subr.bf16.mxu0 %v2259
    %3060 = vmatpush1.bf16.msra.mxu0 %v2258
    %3061 = vmatprep.subr.bf16.mxu0 0
    %3062 = vmatpush1.bf16.msra.mxu0 0
    %3063 = vmatprep.subr.bf16.mxu0 0
    %3064 = vmatpush1.bf16.msra.mxu0 0
    %3065 = vmatprep.subr.bf16.mxu0 0
    %3066 = vmatpush1.bf16.msra.mxu0 0
    %3067 = vmatprep.subr.bf16.mxu0 0
    %3068 = vmatpush1.bf16.msra.mxu0 0
    %3069 = vmatprep.subr.bf16.mxu0 0
    %3070 = vmatpush1.bf16.msra.mxu0 0
    %3071 = vmatprep.subr.bf16.mxu0 0
    %3072 = vmatpush1.bf16.msra.mxu0 0
    %3073 = vmatprep.subr.bf16.mxu0 0
    %3074 = vmatpush1.bf16.msra.mxu0 0
    %3075 = vmatprep.subr.bf16.mxu0 0
    %3076 = vmatpush1.bf16.msra.mxu0 0
    %3077 = vmatprep.subr.bf16.mxu0 0
    %3078 = vmatpush1.bf16.msra.mxu0 0
    %3079 = vmatprep.subr.bf16.mxu0 0
    %3080 = vmatpush1.bf16.msra.mxu0 0
    %3081 = vmatprep.subr.bf16.mxu0 0
    %3082 = vmatpush1.bf16.msra.mxu0 0
    %3083 = vmatprep.subr.bf16.mxu0 0
    %3084 = vmatpush1.bf16.msra.mxu0 0
    %3085 = vmatprep.subr.bf16.mxu0 0
    %3086 = vmatpush1.bf16.msra.mxu0 0
    %3087 = vmatprep.subr.bf16.mxu0 0
    %3088 = vmatpush1.bf16.msra.mxu0 0
    %3089 = vmatprep.subr.bf16.mxu0 0
    %3090 = vmatpush1.bf16.msra.mxu0 0
    %3091 = vmatprep.mubr.bf16.mxu0 0
    %3092 = vmatmul.mubr.bf16.gmra.mrb[0].mxu0 %v2606
    %v3093 = vpop.f32.mrb[0].mxu0
    %v3094 = vadd.f32 %v3053, %v3093
    %v3095 = vpop.f32.mrb[0].mxu0
    %v3096 = vadd.f32 %v3055, %v3095
    %v3097 = vpop.f32.mrb[0].mxu0
    %v3098 = vpop.f32.mrb[0].mxu0
    %3099 = vdwg.mxu0
    %3100 = vmatprep.subr.bf16.mxu0 0
    %3101 = vmatpush1.bf16.msra.mxu0 %v1924
    %3102 = vmatprep.subr.bf16.mxu0 0
    %3103 = vmatpush1.bf16.msra.mxu0 %v1931
    %3104 = vmatprep.subr.bf16.mxu0 0
    %3105 = vmatpush1.bf16.msra.mxu0 %v1938
    %3106 = vmatprep.subr.bf16.mxu0 0
    %3107 = vmatpush1.bf16.msra.mxu0 %v1945
    %3108 = vmatprep.subr.bf16.mxu0 0
    %3109 = vmatpush1.bf16.msra.mxu0 %v1952
    %3110 = vmatprep.subr.bf16.mxu0 0
    %3111 = vmatpush1.bf16.msra.mxu0 %v1959
    %3112 = vmatprep.subr.bf16.mxu0 0
    %3113 = vmatpush1.bf16.msra.mxu0 %v1966
    %3114 = vmatprep.subr.bf16.mxu0 0
    %3115 = vmatpush1.bf16.msra.mxu0 %v1973
    %3116 = vmatprep.subr.bf16.mxu0 0
    %3117 = vmatpush1.bf16.msra.mxu0 %v1980
    %3118 = vmatprep.subr.bf16.mxu0 0
    %3119 = vmatpush1.bf16.msra.mxu0 %v1987
    %3120 = vmatprep.subr.bf16.mxu0 0
    %3121 = vmatpush1.bf16.msra.mxu0 %v1994
    %3122 = vmatprep.subr.bf16.mxu0 0
    %3123 = vmatpush1.bf16.msra.mxu0 %v2001
    %3124 = vmatprep.subr.bf16.mxu0 0
    %3125 = vmatpush1.bf16.msra.mxu0 %v2008
    %3126 = vmatprep.subr.bf16.mxu0 0
    %3127 = vmatpush1.bf16.msra.mxu0 %v2015
    %3128 = vmatprep.subr.bf16.mxu0 0
    %3129 = vmatpush1.bf16.msra.mxu0 %v2022
    %3130 = vmatprep.subr.bf16.mxu0 0
    %3131 = vmatpush1.bf16.msra.mxu0 %v2029
    %3132 = vmatprep.mubr.bf16.mxu0 %v185
    %3133 = vmatmul.mubr.bf16.gmra.mrb[0].mxu0 %v184
    %v3134 = vpop.f32.mrb[0].mxu0
    %v3135 = vadd.f32 %v835, %v3134
    %v3136 = vpop.f32.mrb[0].mxu0
    %v3137 = vpop.f32.mrb[0].mxu0
    %v3138 = vpop.f32.mrb[0].mxu0
    %3139 = vdwg.mxu0
    %3140 = vmatprep.subr.bf16.mxu0 0
    %3141 = vmatpush1.bf16.msra.mxu0 %v2036
    %3142 = vmatprep.subr.bf16.mxu0 0
    %3143 = vmatpush1.bf16.msra.mxu0 %v2043
    %3144 = vmatprep.subr.bf16.mxu0 0
    %3145 = vmatpush1.bf16.msra.mxu0 %v2050
    %3146 = vmatprep.subr.bf16.mxu0 0
    %3147 = vmatpush1.bf16.msra.mxu0 %v2057
    %3148 = vmatprep.subr.bf16.mxu0 0
    %3149 = vmatpush1.bf16.msra.mxu0 %v2064
    %3150 = vmatprep.subr.bf16.mxu0 0
    %3151 = vmatpush1.bf16.msra.mxu0 %v2071
    %3152 = vmatprep.subr.bf16.mxu0 0
    %3153 = vmatpush1.bf16.msra.mxu0 %v2078
    %3154 = vmatprep.subr.bf16.mxu0 0
    %3155 = vmatpush1.bf16.msra.mxu0 %v2085
    %3156 = vmatprep.subr.bf16.mxu0 0
    %3157 = vmatpush1.bf16.msra.mxu0 %v2092
    %3158 = vmatprep.subr.bf16.mxu0 0
    %3159 = vmatpush1.bf16.msra.mxu0 %v2099
    %3160 = vmatprep.subr.bf16.mxu0 0
    %3161 = vmatpush1.bf16.msra.mxu0 %v2106
    %3162 = vmatprep.subr.bf16.mxu0 0
    %3163 = vmatpush1.bf16.msra.mxu0 %v2113
    %3164 = vmatprep.subr.bf16.mxu0 0
    %3165 = vmatpush1.bf16.msra.mxu0 %v2120
    %3166 = vmatprep.subr.bf16.mxu0 0
    %3167 = vmatpush1.bf16.msra.mxu0 %v2127
    %3168 = vmatprep.subr.bf16.mxu0 0
    %3169 = vmatpush1.bf16.msra.mxu0 %v2134
    %3170 = vmatprep.subr.bf16.mxu0 0
    %3171 = vmatpush1.bf16.msra.mxu0 %v2141
    %3172 = vmatprep.mubr.bf16.mxu0 %v187
    %3173 = vmatmul.mubr.bf16.gmra.mrb[0].mxu0 %v186
    %v3174 = vpop.f32.mrb[0].mxu0
    %v3175 = vadd.f32 %v3135, %v3174
    %v3176 = vpop.f32.mrb[0].mxu0
    %v3177 = vpop.f32.mrb[0].mxu0
    %v3178 = vpop.f32.mrb[0].mxu0
    %3179 = vdwg.mxu0
    %3180 = vmatprep.subr.bf16.mxu0 0
    %3181 = vmatpush1.bf16.msra.mxu0 %v2148
    %3182 = vmatprep.subr.bf16.mxu0 0
    %3183 = vmatpush1.bf16.msra.mxu0 %v2155
    %3184 = vmatprep.subr.bf16.mxu0 0
    %3185 = vmatpush1.bf16.msra.mxu0 %v2162
    %3186 = vmatprep.subr.bf16.mxu0 0
    %3187 = vmatpush1.bf16.msra.mxu0 %v2169
    %3188 = vmatprep.subr.bf16.mxu0 0
    %3189 = vmatpush1.bf16.msra.mxu0 %v2176
    %3190 = vmatprep.subr.bf16.mxu0 0
    %3191 = vmatpush1.bf16.msra.mxu0 %v2183
    %3192 = vmatprep.subr.bf16.mxu0 0
    %3193 = vmatpush1.bf16.msra.mxu0 %v2190
    %3194 = vmatprep.subr.bf16.mxu0 0
    %3195 = vmatpush1.bf16.msra.mxu0 %v2197
    %3196 = vmatprep.subr.bf16.mxu0 0
    %3197 = vmatpush1.bf16.msra.mxu0 %v2204
    %3198 = vmatprep.subr.bf16.mxu0 0
    %3199 = vmatpush1.bf16.msra.mxu0 %v2211
    %3200 = vmatprep.subr.bf16.mxu0 0
    %3201 = vmatpush1.bf16.msra.mxu0 %v2218
    %3202 = vmatprep.subr.bf16.mxu0 0
    %3203 = vmatpush1.bf16.msra.mxu0 %v2225
    %3204 = vmatprep.subr.bf16.mxu0 0
    %3205 = vmatpush1.bf16.msra.mxu0 %v2232
    %3206 = vmatprep.subr.bf16.mxu0 0
    %3207 = vmatpush1.bf16.msra.mxu0 %v2239
    %3208 = vmatprep.subr.bf16.mxu0 0
    %3209 = vmatpush1.bf16.msra.mxu0 %v2246
    %3210 = vmatprep.subr.bf16.mxu0 0
    %3211 = vmatpush1.bf16.msra.mxu0 %v2253
    %3212 = vmatprep.mubr.bf16.mxu0 %v189
    %3213 = vmatmul.mubr.bf16.gmra.mrb[0].mxu0 %v188
    %v3214 = vpop.f32.mrb[0].mxu0
    %v3215 = vadd.f32 %v3175, %v3214
    %v3216 = vpop.f32.mrb[0].mxu0
    %v3217 = vpop.f32.mrb[0].mxu0
    %v3218 = vpop.f32.mrb[0].mxu0
    %3219 = vdwg.mxu0
    %3220 = vmatprep.subr.bf16.mxu0 0
    %3221 = vmatpush1.bf16.msra.mxu0 %v2260
    %3222 = vmatprep.subr.bf16.mxu0 0
    %3223 = vmatpush1.bf16.msra.mxu0 0
    %3224 = vmatprep.subr.bf16.mxu0 0
    %3225 = vmatpush1.bf16.msra.mxu0 0
    %3226 = vmatprep.subr.bf16.mxu0 0
    %3227 = vmatpush1.bf16.msra.mxu0 0
    %3228 = vmatprep.subr.bf16.mxu0 0
    %3229 = vmatpush1.bf16.msra.mxu0 0
    %3230 = vmatprep.subr.bf16.mxu0 0
    %3231 = vmatpush1.bf16.msra.mxu0 0
    %3232 = vmatprep.subr.bf16.mxu0 0
    %3233 = vmatpush1.bf16.msra.mxu0 0
    %3234 = vmatprep.subr.bf16.mxu0 0
    %3235 = vmatpush1.bf16.msra.mxu0 0
    %3236 = vmatprep.subr.bf16.mxu0 0
    %3237 = vmatpush1.bf16.msra.mxu0 0
    %3238 = vmatprep.subr.bf16.mxu0 0
    %3239 = vmatpush1.bf16.msra.mxu0 0
    %3240 = vmatprep.subr.bf16.mxu0 0
    %3241 = vmatpush1.bf16.msra.mxu0 0
    %3242 = vmatprep.subr.bf16.mxu0 0
    %3243 = vmatpush1.bf16.msra.mxu0 0
    %3244 = vmatprep.subr.bf16.mxu0 0
    %3245 = vmatpush1.bf16.msra.mxu0 0
    %3246 = vmatprep.subr.bf16.mxu0 0
    %3247 = vmatpush1.bf16.msra.mxu0 0
    %3248 = vmatprep.subr.bf16.mxu0 0
    %3249 = vmatpush1.bf16.msra.mxu0 0
    %3250 = vmatprep.subr.bf16.mxu0 0
    %3251 = vmatpush1.bf16.msra.mxu0 0
    %3252 = vmatprep.mubr.bf16.mxu0 0
    %3253 = vmatmul.mubr.bf16.gmra.mrb[0].mxu0 %v2606
    %v3254 = vpop.f32.mrb[0].mxu0
    %v3255 = vadd.f32 %v3215, %v3254
    %v3256 = vpop.f32.mrb[0].mxu0
    %v3257 = vpop.f32.mrb[0].mxu0
    %v3258 = vpop.f32.mrb[0].mxu0
    %3259 = vdwg.mxu0
    %v3260 = vld [vmem:[#allocation10] sm:$0xff]
    %v3262 = vlaneseq
    %v3263 = vshrl.u32 %v3262, 7
    %v3264 = vsub.s32 0, %v3263
    %v3265 = vrot.slane %v3260, %v3264
    %v3266 = vlaneseq
    %v3267 = vshrl.u32 %v3266, 7
    %v3268 = vsub.s32 1, %v3267
    %v3269 = vrot.slane %v3260, %v3268
    %v3270 = vlaneseq
    %v3271 = vshrl.u32 %v3270, 7
    %v3272 = vsub.s32 2, %v3271
    %v3273 = vrot.slane %v3260, %v3272
    %v3274 = vlaneseq
    %v3275 = vshrl.u32 %v3274, 7
    %v3276 = vsub.s32 3, %v3275
    %v3277 = vrot.slane %v3260, %v3276
    %v3278 = vlaneseq
    %v3279 = vshrl.u32 %v3278, 7
    %v3280 = vsub.s32 4, %v3279
    %v3281 = vrot.slane %v3260, %v3280
    %v3282 = vlaneseq
    %v3283 = vshrl.u32 %v3282, 7
    %v3284 = vsub.s32 5, %v3283
    %v3285 = vrot.slane %v3260, %v3284
    %v3286 = vlaneseq
    %v3287 = vshrl.u32 %v3286, 7
    %v3288 = vsub.s32 6, %v3287
    %v3289 = vrot.slane %v3260, %v3288
    %v3297 = vadd.f32 %v2766, %v3265
    %v3298 = vadd.f32 %v2768, %v3269
    %v3299 = vadd.f32 %v2930, %v3273
    %v3300 = vadd.f32 %v2932, %v3277
    %v3301 = vadd.f32 %v3094, %v3281
    %v3302 = vadd.f32 %v3096, %v3285
    %v3303 = vadd.f32 %v3255, %v3289
    %vm3304 = vcmp.gt.f32.partialorder %v3297, 0.0
    %vm3305 = vcmp.gt.f32.partialorder %v3298, 0.0
    %vm3306 = vcmp.gt.f32.partialorder %v3299, 0.0
    %vm3307 = vcmp.gt.f32.partialorder %v3300, 0.0
    %vm3308 = vcmp.gt.f32.partialorder %v3301, 0.0
    %vm3309 = vcmp.gt.f32.partialorder %v3302, 0.0
    %vm3310 = vcmp.gt.f32.partialorder %v3303, 0.0
    %v3311 = vmul.f32 %v3297, 0.1
    %v3312 = vmul.f32 %v3298, 0.1
    %v3313 = vmul.f32 %v3299, 0.1
    %v3314 = vmul.f32 %v3300, 0.1
    %v3315 = vmul.f32 %v3301, 0.1
    %v3316 = vmul.f32 %v3302, 0.1
    %v3317 = vmul.f32 %v3303, 0.1
    %v3318 = vsel %vm3304, %v3297, %v3311
    %v3319 = vsel %vm3305, %v3298, %v3312
    %v3320 = vsel %vm3306, %v3299, %v3313
    %v3321 = vsel %vm3307, %v3300, %v3314
    %v3322 = vsel %vm3308, %v3301, %v3315
    %v3323 = vsel %vm3309, %v3302, %v3316
    %v3324 = vsel %vm3310, %v3303, %v3317
    %v3325 = vpack.c.bf16 %v3318, %v3318
    %v3326 = vpack.c.bf16 %v3319, %v3319
    %v3327 = vpack.c.bf16 %v3320, %v3320
    %v3328 = vpack.c.bf16 %v3321, %v3321
    %v3329 = vpack.c.bf16 %v3322, %v3322
    %v3330 = vpack.c.bf16 %v3323, %v3323
    %v3331 = vpack.c.bf16 %v3324, %v3324
    %v3332 = vld [vmem:[#allocation11] sm:$0xff]
    %v3333 = vld [vmem:[#allocation11 + $0x8] sm:$0xff]
    %v3334 = vld [vmem:[#allocation11 + $0x10] sm:$0xff]
    %v3335 = vld [vmem:[#allocation11 + $0x18] sm:$0xff]
    %v3336 = vld [vmem:[#allocation11 + $0x20] sm:$0xff]
    %v3337 = vld [vmem:[#allocation11 + $0x28] sm:$0xff]
    %v3338 = vld [vmem:[#allocation11 + $0x30] sm:$0xff]
    %v3339 = vld [vmem:[#allocation11 + $0x38] sm:$0xff]
    %v3340 = vld [vmem:[#allocation11 + $0x40] sm:$0xff]
    %v3341 = vld [vmem:[#allocation11 + $0x48] sm:$0xff]
    %v3342 = vld [vmem:[#allocation11 + $0x50] sm:$0xff]
    %v3343 = vld [vmem:[#allocation11 + $0x58] sm:$0xff]
    %v3344 = vld [vmem:[#allocation11 + $0x60] sm:$0xff]
    %v3345 = vld [vmem:[#allocation11 + $0x68] sm:$0xff]
    %v3346 = vld [vmem:[#allocation11 + $0x70] sm:$0xff]
    %v3347 = vld [vmem:[#allocation11 + $0x78] sm:$0xff]
    %v3348 = vld [vmem:[#allocation11 + $0x80] sm:$0xff]
    %v3349 = vld [vmem:[#allocation11 + $0x88] sm:$0xff]
    %v3350 = vld [vmem:[#allocation11 + $0x90] sm:$0xff]
    %v3351 = vld [vmem:[#allocation11 + $0x98] sm:$0xff]
    %v3352 = vld [vmem:[#allocation11 + $0xa0] sm:$0xff]
    %v3353 = vld [vmem:[#allocation11 + $0xa8] sm:$0xff]
    %v3354 = vld [vmem:[#allocation11 + $0xb0] sm:$0xff]
    %v3355 = vld [vmem:[#allocation11 + $0xb8] sm:$0xff]
    %v3356 = vld [vmem:[#allocation11 + $0xc0] sm:$0xff]
    %v3357 = vld [vmem:[#allocation11 + $0xc8] sm:$0xff]
    %v3358 = vld [vmem:[#allocation11 + $0xd0] sm:$0xff]
    %v3359 = vld [vmem:[#allocation11 + $0xd8] sm:$0xff]
    %v3360 = vld [vmem:[#allocation11 + $0xe0] sm:$0xff]
    %v3361 = vld [vmem:[#allocation11 + $0xe8] sm:$0xff]
    %v3362 = vld [vmem:[#allocation11 + $0xf0] sm:$0xff]
    %v3363 = vld [vmem:[#allocation11 + $0xf8] sm:$0xff]
    %v3364 = vld [vmem:[#allocation11 + $0x100] sm:$0xff]
    %v3365 = vld [vmem:[#allocation11 + $0x108] sm:$0xff]
    %v3366 = vld [vmem:[#allocation11 + $0x110] sm:$0xff]
    %v3367 = vld [vmem:[#allocation11 + $0x118] sm:$0xff]
    %v3368 = vld [vmem:[#allocation11 + $0x120] sm:$0xff]
    %v3369 = vld [vmem:[#allocation11 + $0x128] sm:$0xff]
    %v3370 = vld [vmem:[#allocation11 + $0x130] sm:$0xff]
    %v3371 = vld [vmem:[#allocation11 + $0x138] sm:$0xff]
    %v3372 = vld [vmem:[#allocation11 + $0x140] sm:$0xff]
    %v3373 = vld [vmem:[#allocation11 + $0x148] sm:$0xff]
    %v3374 = vld [vmem:[#allocation11 + $0x150] sm:$0xff]
    %v3375 = vld [vmem:[#allocation11 + $0x158] sm:$0xff]
    %v3376 = vld [vmem:[#allocation11 + $0x160] sm:$0xff]
    %v3377 = vld [vmem:[#allocation11 + $0x168] sm:$0xff]
    %v3378 = vld [vmem:[#allocation11 + $0x170] sm:$0xff]
    %v3379 = vld [vmem:[#allocation11 + $0x178] sm:$0xff]
    %v3380 = vld [vmem:[#allocation11 + $0x180] sm:$0xff]
    %v3381 = vld [vmem:[#allocation11 + $0x188] sm:$0xff]
    %v3382 = vld [vmem:[#allocation11 + $0x190] sm:$0xff]
    %v3383 = vld [vmem:[#allocation11 + $0x198] sm:$0xff]
    %v3384 = vld [vmem:[#allocation11 + $0x1a0] sm:$0xff]
    %v3385 = vld [vmem:[#allocation11 + $0x1a8] sm:$0xff]
    %v3386 = vld [vmem:[#allocation11 + $0x1b0] sm:$0xff]
    %v3387 = vld [vmem:[#allocation11 + $0x1b8] sm:$0xff]
    %v3388 = vld [vmem:[#allocation11 + $0x1c0] sm:$0xff]
    %v3389 = vld [vmem:[#allocation11 + $0x1c8] sm:$0xff]
    %v3390 = vld [vmem:[#allocation11 + $0x1d0] sm:$0xff]
    %v3391 = vld [vmem:[#allocation11 + $0x1d8] sm:$0xff]
    %v3392 = vld [vmem:[#allocation11 + $0x1e0] sm:$0xff]
    %v3393 = vld [vmem:[#allocation11 + $0x1e8] sm:$0xff]
    %v3394 = vld [vmem:[#allocation11 + $0x1f0] sm:$0xff]
    %v3395 = vld [vmem:[#allocation11 + $0x1f8] sm:$0xff]
    %v3396 = vld [vmem:[#allocation11 + $0x200] sm:$0xff]
    %v3397 = vld [vmem:[#allocation11 + $0x208] sm:$0xff]
    %v3398 = vld [vmem:[#allocation11 + $0x210] sm:$0xff]
    %v3399 = vld [vmem:[#allocation11 + $0x218] sm:$0xff]
    %v3400 = vld [vmem:[#allocation11 + $0x220] sm:$0xff]
    %v3401 = vld [vmem:[#allocation11 + $0x228] sm:$0xff]
    %v3402 = vld [vmem:[#allocation11 + $0x230] sm:$0xff]
    %v3403 = vld [vmem:[#allocation11 + $0x238] sm:$0xff]
    %v3404 = vld [vmem:[#allocation11 + $0x240] sm:$0xff]
    %v3405 = vld [vmem:[#allocation11 + $0x248] sm:$0xff]
    %v3406 = vld [vmem:[#allocation11 + $0x250] sm:$0xff]
    %v3407 = vld [vmem:[#allocation11 + $0x258] sm:$0xff]
    %v3408 = vld [vmem:[#allocation11 + $0x260] sm:$0xff]
    %v3409 = vld [vmem:[#allocation11 + $0x268] sm:$0xff]
    %v3410 = vld [vmem:[#allocation11 + $0x270] sm:$0xff]
    %v3411 = vld [vmem:[#allocation11 + $0x278] sm:$0xff]
    %v3412 = vld [vmem:[#allocation11 + $0x280] sm:$0xff]
    %v3413 = vld [vmem:[#allocation11 + $0x288] sm:$0xff]
    %v3414 = vld [vmem:[#allocation11 + $0x290] sm:$0xff]
    %v3415 = vld [vmem:[#allocation11 + $0x298] sm:$0xff]
    %v3416 = vld [vmem:[#allocation11 + $0x2a0] sm:$0xff]
    %v3417 = vld [vmem:[#allocation11 + $0x2a8] sm:$0xff]
    %v3418 = vld [vmem:[#allocation11 + $0x2b0] sm:$0xff]
    %v3419 = vld [vmem:[#allocation11 + $0x2b8] sm:$0xff]
    %v3420 = vld [vmem:[#allocation11 + $0x2c0] sm:$0xff]
    %v3421 = vld [vmem:[#allocation11 + $0x2c8] sm:$0xff]
    %v3422 = vld [vmem:[#allocation11 + $0x2d0] sm:$0xff]
    %v3423 = vld [vmem:[#allocation11 + $0x2d8] sm:$0xff]
    %v3424 = vld [vmem:[#allocation11 + $0x2e0] sm:$0xff]
    %v3425 = vld [vmem:[#allocation11 + $0x2e8] sm:$0xff]
    %v3426 = vld [vmem:[#allocation11 + $0x2f0] sm:$0xff]
    %v3427 = vld [vmem:[#allocation11 + $0x2f8] sm:$0xff]
    %v3428 = vld [vmem:[#allocation11 + $0x300] sm:$0xff]
    %v3429 = vld [vmem:[#allocation11 + $0x308] sm:$0xff]
    %v3430 = vld [vmem:[#allocation11 + $0x310] sm:$0xff]
    %v3431 = vld [vmem:[#allocation11 + $0x318] sm:$0xff]
    %v3432 = vld [vmem:[#allocation11 + $0x320] sm:$0xff]
    %v3433 = vld [vmem:[#allocation11 + $0x328] sm:$0xff]
    %v3434 = vld [vmem:[#allocation11 + $0x330] sm:$0xff]
    %v3435 = vld [vmem:[#allocation11 + $0x338] sm:$0xff]
    %v3436 = vld [vmem:[#allocation11 + $0x340] sm:$0xff]
    %v3437 = vld [vmem:[#allocation11 + $0x348] sm:$0xff]
    %v3438 = vld [vmem:[#allocation11 + $0x350] sm:$0xff]
    %v3439 = vld [vmem:[#allocation11 + $0x358] sm:$0xff]
    %v3440 = vld [vmem:[#allocation11 + $0x360] sm:$0xff]
    %v3441 = vld [vmem:[#allocation11 + $0x368] sm:$0xff]
    %v3442 = vld [vmem:[#allocation11 + $0x370] sm:$0xff]
    %v3443 = vld [vmem:[#allocation11 + $0x378] sm:$0xff]
    %v3444 = vld [vmem:[#allocation11 + $0x380] sm:$0xff]
    %v3445 = vld [vmem:[#allocation11 + $0x388] sm:$0xff]
    %v3446 = vld [vmem:[#allocation11 + $0x390] sm:$0xff]
    %v3447 = vld [vmem:[#allocation11 + $0x398] sm:$0xff]
    %v3448 = vld [vmem:[#allocation11 + $0x3a0] sm:$0xff]
    %v3449 = vld [vmem:[#allocation11 + $0x3a8] sm:$0xff]
    %v3450 = vld [vmem:[#allocation11 + $0x3b0] sm:$0xff]
    %v3451 = vld [vmem:[#allocation11 + $0x3b8] sm:$0xff]
    %v3452 = vld [vmem:[#allocation11 + $0x3c0] sm:$0xff]
    %v3453 = vld [vmem:[#allocation11 + $0x3c8] sm:$0xff]
    %v3454 = vld [vmem:[#allocation11 + $0x3d0] sm:$0xff]
    %v3455 = vld [vmem:[#allocation11 + $0x3d8] sm:$0xff]
    %v3456 = vld [vmem:[#allocation11 + $0x3e0] sm:$0xff]
    %v3457 = vld [vmem:[#allocation11 + $0x3e8] sm:$0xff]
    %v3458 = vld [vmem:[#allocation11 + $0x3f0] sm:$0xff]
    %v3459 = vld [vmem:[#allocation11 + $0x3f8] sm:$0xff]
    %v3460 = vld [vmem:[#allocation11 + $0x400] sm:$0xff]
    %v3461 = vld [vmem:[#allocation11 + $0x408] sm:$0xff]
    %v3462 = vld [vmem:[#allocation11 + $0x410] sm:$0xff]
    %v3463 = vld [vmem:[#allocation11 + $0x418] sm:$0xff]
    %v3464 = vld [vmem:[#allocation11 + $0x420] sm:$0xff]
    %v3465 = vld [vmem:[#allocation11 + $0x428] sm:$0xff]
    %v3466 = vld [vmem:[#allocation11 + $0x430] sm:$0xff]
    %v3467 = vld [vmem:[#allocation11 + $0x438] sm:$0xff]
    %v3468 = vld [vmem:[#allocation11 + $0x440] sm:$0xff]
    %v3469 = vld [vmem:[#allocation11 + $0x448] sm:$0xff]
    %v3470 = vld [vmem:[#allocation11 + $0x450] sm:$0xff]
    %v3471 = vld [vmem:[#allocation11 + $0x458] sm:$0xff]
    %v3472 = vld [vmem:[#allocation11 + $0x460] sm:$0xff]
    %v3473 = vld [vmem:[#allocation11 + $0x468] sm:$0xff]
    %v3474 = vld [vmem:[#allocation11 + $0x470] sm:$0xff]
    %v3475 = vld [vmem:[#allocation11 + $0x478] sm:$0xff]
    %v3476 = vld [vmem:[#allocation11 + $0x480] sm:$0xff]
    %v3477 = vld [vmem:[#allocation11 + $0x488] sm:$0xff]
    %v3478 = vld [vmem:[#allocation11 + $0x490] sm:$0xff]
    %v3479 = vld [vmem:[#allocation11 + $0x498] sm:$0xff]
    %v3480 = vld [vmem:[#allocation11 + $0x4a0] sm:$0xff]
    %v3481 = vld [vmem:[#allocation11 + $0x4a8] sm:$0xff]
    %v3482 = vld [vmem:[#allocation11 + $0x4b0] sm:$0xff]
    %v3483 = vld [vmem:[#allocation11 + $0x4b8] sm:$0xff]
    %v3484 = vld [vmem:[#allocation11 + $0x4c0] sm:$0xff]
    %v3485 = vld [vmem:[#allocation11 + $0x4c8] sm:$0xff]
    %v3486 = vld [vmem:[#allocation11 + $0x4d0] sm:$0xff]
    %v3487 = vld [vmem:[#allocation11 + $0x4d8] sm:$0xff]
    %v3488 = vld [vmem:[#allocation11 + $0x4e0] sm:$0xff]
    %v3489 = vld [vmem:[#allocation11 + $0x4e8] sm:$0xff]
    %v3490 = vld [vmem:[#allocation11 + $0x4f0] sm:$0xff]
    %v3491 = vld [vmem:[#allocation11 + $0x4f8] sm:$0xff]
    %v3492 = vld [vmem:[#allocation11 + $0x500] sm:$0xff]
    %v3493 = vld [vmem:[#allocation11 + $0x508] sm:$0xff]
    %v3494 = vld [vmem:[#allocation11 + $0x510] sm:$0xff]
    %v3495 = vld [vmem:[#allocation11 + $0x518] sm:$0xff]
    %v3496 = vld [vmem:[#allocation11 + $0x520] sm:$0xff]
    %v3497 = vld [vmem:[#allocation11 + $0x528] sm:$0xff]
    %v3498 = vld [vmem:[#allocation11 + $0x530] sm:$0xff]
    %v3499 = vld [vmem:[#allocation11 + $0x538] sm:$0xff]
    %v3500 = vld [vmem:[#allocation11 + $0x540] sm:$0xff]
    %v3501 = vld [vmem:[#allocation11 + $0x548] sm:$0xff]
    %v3502 = vld [vmem:[#allocation11 + $0x550] sm:$0xff]
    %v3503 = vld [vmem:[#allocation11 + $0x558] sm:$0xff]
    %v3504 = vld [vmem:[#allocation11 + $0x560] sm:$0xff]
    %v3505 = vld [vmem:[#allocation11 + $0x568] sm:$0xff]
    %v3506 = vld [vmem:[#allocation11 + $0x570] sm:$0xff]
    %v3507 = vld [vmem:[#allocation11 + $0x578] sm:$0xff]
    %v3508 = vld [vmem:[#allocation11 + $0x580] sm:$0xff]
    %v3509 = vld [vmem:[#allocation11 + $0x588] sm:$0xff]
    %v3510 = vld [vmem:[#allocation11 + $0x590] sm:$0xff]
    %v3511 = vld [vmem:[#allocation11 + $0x598] sm:$0xff]
    %v3512 = vld [vmem:[#allocation11 + $0x5a0] sm:$0xff]
    %v3513 = vld [vmem:[#allocation11 + $0x5a8] sm:$0xff]
    %v3514 = vld [vmem:[#allocation11 + $0x5b0] sm:$0xff]
    %v3515 = vld [vmem:[#allocation11 + $0x5b8] sm:$0xff]
    %v3516 = vld [vmem:[#allocation11 + $0x5c0] sm:$0xff]
    %v3517 = vld [vmem:[#allocation11 + $0x5c8] sm:$0xff]
    %v3518 = vld [vmem:[#allocation11 + $0x5d0] sm:$0xff]
    %v3519 = vld [vmem:[#allocation11 + $0x5d8] sm:$0xff]
    %v3520 = vld [vmem:[#allocation11 + $0x5e0] sm:$0xff]
    %v3521 = vld [vmem:[#allocation11 + $0x5e8] sm:$0xff]
    %v3522 = vld [vmem:[#allocation11 + $0x5f0] sm:$0xff]
    %v3523 = vld [vmem:[#allocation11 + $0x5f8] sm:$0xff]
    %v3524 = vld [vmem:[#allocation11 + $0x600] sm:$0xff]
    %v3525 = vld [vmem:[#allocation11 + $0x608] sm:$0xff]
    %v3526 = vld [vmem:[#allocation11 + $0x610] sm:$0xff]
    %v3527 = vld [vmem:[#allocation11 + $0x618] sm:$0xff]
    %v3528 = vld [vmem:[#allocation11 + $0x620] sm:$0xff]
    %v3529 = vld [vmem:[#allocation11 + $0x628] sm:$0xff]
    %v3530 = vld [vmem:[#allocation11 + $0x630] sm:$0xff]
    %v3531 = vld [vmem:[#allocation11 + $0x638] sm:$0xff]
    %v3532 = vld [vmem:[#allocation11 + $0x640] sm:$0xff]
    %v3533 = vld [vmem:[#allocation11 + $0x648] sm:$0xff]
    %v3534 = vld [vmem:[#allocation11 + $0x650] sm:$0xff]
    %v3535 = vld [vmem:[#allocation11 + $0x658] sm:$0xff]
    %v3536 = vld [vmem:[#allocation11 + $0x660] sm:$0xff]
    %v3537 = vld [vmem:[#allocation11 + $0x668] sm:$0xff]
    %v3538 = vld [vmem:[#allocation11 + $0x670] sm:$0xff]
    %v3539 = vld [vmem:[#allocation11 + $0x678] sm:$0xff]
    %v3540 = vld [vmem:[#allocation11 + $0x680] sm:$0xff]
    %v3541 = vld [vmem:[#allocation11 + $0x688] sm:$0xff]
    %v3542 = vld [vmem:[#allocation11 + $0x690] sm:$0xff]
    %v3543 = vld [vmem:[#allocation11 + $0x698] sm:$0xff]
    %v3544 = vld [vmem:[#allocation11 + $0x6a0] sm:$0xff]
    %v3545 = vld [vmem:[#allocation11 + $0x6a8] sm:$0xff]
    %v3546 = vld [vmem:[#allocation11 + $0x6b0] sm:$0xff]
    %v3547 = vld [vmem:[#allocation11 + $0x6b8] sm:$0xff]
    %v3548 = vld [vmem:[#allocation11 + $0x6c0] sm:$0xff]
    %v3549 = vld [vmem:[#allocation11 + $0x6c8] sm:$0xff]
    %v3550 = vld [vmem:[#allocation11 + $0x6d0] sm:$0xff]
    %v3551 = vld [vmem:[#allocation11 + $0x6d8] sm:$0xff]
    %v3552 = vld [vmem:[#allocation11 + $0x6e0] sm:$0xff]
    %v3553 = vld [vmem:[#allocation11 + $0x6e8] sm:$0xff]
    %v3554 = vld [vmem:[#allocation11 + $0x6f0] sm:$0xff]
    %v3555 = vld [vmem:[#allocation11 + $0x6f8] sm:$0xff]
    %v3556 = vld [vmem:[#allocation13] sm:$0xf]
    %v3558 = vlaneseq
    %v3559 = vshrl.u32 %v3558, 7
    %v3560 = vsub.s32 0, %v3559
    %v3561 = vrot.slane %v3556, %v3560
    %v3562 = vlaneseq
    %v3563 = vshrl.u32 %v3562, 7
    %v3564 = vsub.s32 1, %v3563
    %v3565 = vrot.slane %v3556, %v3564
    %v3566 = vlaneseq
    %v3567 = vshrl.u32 %v3566, 7
    %v3568 = vsub.s32 2, %v3567
    %v3569 = vrot.slane %v3556, %v3568
    %v3570 = vlaneseq
    %v3571 = vshrl.u32 %v3570, 7
    %v3572 = vsub.s32 3, %v3571
    %v3573 = vrot.slane %v3556, %v3572
    %v3802 = vunpack.c.l.b16 %v3332
    %v3803 = vunpack.c.h.b16 %v3332
    %v3804 = vunpack.c.l.b16 %v3333
    %v3805 = vunpack.c.h.b16 %v3333
    %v3806 = vunpack.c.l.b16 %v3334
    %v3807 = vunpack.c.h.b16 %v3334
    %v3808 = vunpack.c.l.b16 %v3335
    %v3809 = vunpack.c.h.b16 %v3335
    %v3810 = vunpack.c.l.b16 %v3336
    %v3811 = vunpack.c.h.b16 %v3336
    %v3812 = vunpack.c.l.b16 %v3337
    %v3813 = vunpack.c.h.b16 %v3337
    %v3814 = vunpack.c.l.b16 %v3338
    %v3815 = vunpack.c.h.b16 %v3338
    %v3816 = vunpack.c.l.b16 %v3339
    %v3817 = vunpack.c.h.b16 %v3339
    %v3818 = vunpack.c.l.b16 %v3340
    %v3819 = vunpack.c.h.b16 %v3340
    %v3820 = vunpack.c.l.b16 %v3341
    %v3821 = vunpack.c.h.b16 %v3341
    %v3822 = vunpack.c.l.b16 %v3342
    %v3823 = vunpack.c.h.b16 %v3342
    %v3824 = vunpack.c.l.b16 %v3343
    %v3825 = vunpack.c.h.b16 %v3343
    %v3826 = vunpack.c.l.b16 %v3344
    %v3827 = vunpack.c.h.b16 %v3344
    %v3828 = vunpack.c.l.b16 %v3345
    %v3829 = vunpack.c.h.b16 %v3345
    %v3830 = vunpack.c.l.b16 %v3346
    %v3831 = vunpack.c.h.b16 %v3346
    %v3832 = vunpack.c.l.b16 %v3347
    %v3833 = vunpack.c.h.b16 %v3347
    %v3834 = vunpack.c.l.b16 %v3348
    %v3835 = vunpack.c.h.b16 %v3348
    %v3836 = vunpack.c.l.b16 %v3349
    %v3837 = vunpack.c.h.b16 %v3349
    %v3838 = vunpack.c.l.b16 %v3350
    %v3839 = vunpack.c.h.b16 %v3350
    %v3840 = vunpack.c.l.b16 %v3351
    %v3841 = vunpack.c.h.b16 %v3351
    %v3842 = vunpack.c.l.b16 %v3352
    %v3843 = vunpack.c.h.b16 %v3352
    %v3844 = vunpack.c.l.b16 %v3353
    %v3845 = vunpack.c.h.b16 %v3353
    %v3846 = vunpack.c.l.b16 %v3354
    %v3847 = vunpack.c.h.b16 %v3354
    %v3848 = vunpack.c.l.b16 %v3355
    %v3849 = vunpack.c.h.b16 %v3355
    %v3850 = vunpack.c.l.b16 %v3356
    %v3851 = vunpack.c.h.b16 %v3356
    %v3852 = vunpack.c.l.b16 %v3357
    %v3853 = vunpack.c.h.b16 %v3357
    %v3854 = vunpack.c.l.b16 %v3358
    %v3855 = vunpack.c.h.b16 %v3358
    %v3856 = vunpack.c.l.b16 %v3359
    %v3857 = vunpack.c.h.b16 %v3359
    %v3858 = vunpack.c.l.b16 %v3360
    %v3859 = vunpack.c.h.b16 %v3360
    %v3860 = vunpack.c.l.b16 %v3361
    %v3861 = vunpack.c.h.b16 %v3361
    %v3862 = vunpack.c.l.b16 %v3362
    %v3863 = vunpack.c.h.b16 %v3362
    %v3864 = vunpack.c.l.b16 %v3363
    %v3865 = vunpack.c.h.b16 %v3363
    %v3866 = vunpack.c.l.b16 %v3364
    %v3867 = vunpack.c.h.b16 %v3364
    %v3868 = vunpack.c.l.b16 %v3365
    %v3869 = vunpack.c.h.b16 %v3365
    %v3870 = vunpack.c.l.b16 %v3366
    %v3871 = vunpack.c.h.b16 %v3366
    %v3872 = vunpack.c.l.b16 %v3367
    %v3873 = vunpack.c.h.b16 %v3367
    %v3874 = vunpack.c.l.b16 %v3368
    %v3875 = vunpack.c.h.b16 %v3368
    %v3876 = vunpack.c.l.b16 %v3369
    %v3877 = vunpack.c.h.b16 %v3369
    %v3878 = vunpack.c.l.b16 %v3370
    %v3879 = vunpack.c.h.b16 %v3370
    %v3880 = vunpack.c.l.b16 %v3371
    %v3881 = vunpack.c.h.b16 %v3371
    %v3882 = vunpack.c.l.b16 %v3372
    %v3883 = vunpack.c.h.b16 %v3372
    %v3884 = vunpack.c.l.b16 %v3373
    %v3885 = vunpack.c.h.b16 %v3373
    %v3886 = vunpack.c.l.b16 %v3374
    %v3887 = vunpack.c.h.b16 %v3374
    %v3888 = vunpack.c.l.b16 %v3375
    %v3889 = vunpack.c.h.b16 %v3375
    %v3890 = vunpack.c.l.b16 %v3376
    %v3891 = vunpack.c.h.b16 %v3376
    %v3892 = vunpack.c.l.b16 %v3377
    %v3893 = vunpack.c.h.b16 %v3377
    %v3894 = vunpack.c.l.b16 %v3378
    %v3895 = vunpack.c.h.b16 %v3378
    %v3896 = vunpack.c.l.b16 %v3379
    %v3897 = vunpack.c.h.b16 %v3379
    %v3898 = vunpack.c.l.b16 %v3380
    %v3899 = vunpack.c.h.b16 %v3380
    %v3900 = vunpack.c.l.b16 %v3381
    %v3901 = vunpack.c.h.b16 %v3381
    %v3902 = vunpack.c.l.b16 %v3382
    %v3903 = vunpack.c.h.b16 %v3382
    %v3904 = vunpack.c.l.b16 %v3383
    %v3905 = vunpack.c.h.b16 %v3383
    %v3906 = vunpack.c.l.b16 %v3384
    %v3907 = vunpack.c.h.b16 %v3384
    %v3908 = vunpack.c.l.b16 %v3385
    %v3909 = vunpack.c.h.b16 %v3385
    %v3910 = vunpack.c.l.b16 %v3386
    %v3911 = vunpack.c.h.b16 %v3386
    %v3912 = vunpack.c.l.b16 %v3387
    %v3913 = vunpack.c.h.b16 %v3387
    %v3914 = vunpack.c.l.b16 %v3388
    %v3915 = vunpack.c.h.b16 %v3388
    %v3916 = vunpack.c.l.b16 %v3389
    %v3917 = vunpack.c.h.b16 %v3389
    %v3918 = vunpack.c.l.b16 %v3390
    %v3919 = vunpack.c.h.b16 %v3390
    %v3920 = vunpack.c.l.b16 %v3391
    %v3921 = vunpack.c.h.b16 %v3391
    %v3922 = vunpack.c.l.b16 %v3392
    %v3923 = vunpack.c.h.b16 %v3392
    %v3924 = vunpack.c.l.b16 %v3393
    %v3925 = vunpack.c.h.b16 %v3393
    %v3926 = vunpack.c.l.b16 %v3394
    %v3927 = vunpack.c.h.b16 %v3394
    %v3928 = vunpack.c.l.b16 %v3395
    %v3929 = vunpack.c.h.b16 %v3395
    %v3930 = vunpack.c.l.b16 %v3396
    %v3931 = vunpack.c.h.b16 %v3396
    %v3932 = vunpack.c.l.b16 %v3397
    %v3933 = vunpack.c.h.b16 %v3397
    %v3934 = vunpack.c.l.b16 %v3398
    %v3935 = vunpack.c.h.b16 %v3398
    %v3936 = vunpack.c.l.b16 %v3399
    %v3937 = vunpack.c.h.b16 %v3399
    %v3938 = vunpack.c.l.b16 %v3400
    %v3939 = vunpack.c.h.b16 %v3400
    %v3940 = vunpack.c.l.b16 %v3401
    %v3941 = vunpack.c.h.b16 %v3401
    %v3942 = vunpack.c.l.b16 %v3402
    %v3943 = vunpack.c.h.b16 %v3402
    %v3944 = vunpack.c.l.b16 %v3403
    %v3945 = vunpack.c.h.b16 %v3403
    %v3946 = vunpack.c.l.b16 %v3404
    %v3947 = vunpack.c.h.b16 %v3404
    %v3948 = vunpack.c.l.b16 %v3405
    %v3949 = vunpack.c.h.b16 %v3405
    %v3950 = vunpack.c.l.b16 %v3406
    %v3951 = vunpack.c.h.b16 %v3406
    %v3952 = vunpack.c.l.b16 %v3407
    %v3953 = vunpack.c.h.b16 %v3407
    %v3954 = vunpack.c.l.b16 %v3408
    %v3955 = vunpack.c.h.b16 %v3408
    %v3956 = vunpack.c.l.b16 %v3409
    %v3957 = vunpack.c.h.b16 %v3409
    %v3958 = vunpack.c.l.b16 %v3410
    %v3959 = vunpack.c.h.b16 %v3410
    %v3960 = vunpack.c.l.b16 %v3411
    %v3961 = vunpack.c.h.b16 %v3411
    %v3962 = vunpack.c.l.b16 %v3412
    %v3963 = vunpack.c.h.b16 %v3412
    %v3964 = vunpack.c.l.b16 %v3413
    %v3965 = vunpack.c.h.b16 %v3413
    %v3966 = vunpack.c.l.b16 %v3414
    %v3967 = vunpack.c.h.b16 %v3414
    %v3968 = vunpack.c.l.b16 %v3415
    %v3969 = vunpack.c.h.b16 %v3415
    %v3970 = vunpack.c.l.b16 %v3416
    %v3971 = vunpack.c.h.b16 %v3416
    %v3972 = vunpack.c.l.b16 %v3417
    %v3973 = vunpack.c.h.b16 %v3417
    %v3974 = vunpack.c.l.b16 %v3418
    %v3975 = vunpack.c.h.b16 %v3418
    %v3976 = vunpack.c.l.b16 %v3419
    %v3977 = vunpack.c.h.b16 %v3419
    %v3978 = vunpack.c.l.b16 %v3420
    %v3979 = vunpack.c.h.b16 %v3420
    %v3980 = vunpack.c.l.b16 %v3421
    %v3981 = vunpack.c.h.b16 %v3421
    %v3982 = vunpack.c.l.b16 %v3422
    %v3983 = vunpack.c.h.b16 %v3422
    %v3984 = vunpack.c.l.b16 %v3423
    %v3985 = vunpack.c.h.b16 %v3423
    %v3986 = vunpack.c.l.b16 %v3424
    %v3987 = vunpack.c.h.b16 %v3424
    %v3988 = vunpack.c.l.b16 %v3425
    %v3989 = vunpack.c.h.b16 %v3425
    %v3990 = vunpack.c.l.b16 %v3426
    %v3991 = vunpack.c.h.b16 %v3426
    %v3992 = vunpack.c.l.b16 %v3427
    %v3993 = vunpack.c.h.b16 %v3427
    %v3994 = vunpack.c.l.b16 %v3428
    %v3995 = vunpack.c.h.b16 %v3428
    %v3996 = vunpack.c.l.b16 %v3429
    %v3997 = vunpack.c.h.b16 %v3429
    %v3998 = vunpack.c.l.b16 %v3430
    %v3999 = vunpack.c.h.b16 %v3430
    %v4000 = vunpack.c.l.b16 %v3431
    %v4001 = vunpack.c.h.b16 %v3431
    %v4002 = vunpack.c.l.b16 %v3432
    %v4003 = vunpack.c.h.b16 %v3432
    %v4004 = vunpack.c.l.b16 %v3433
    %v4005 = vunpack.c.h.b16 %v3433
    %v4006 = vunpack.c.l.b16 %v3434
    %v4007 = vunpack.c.h.b16 %v3434
    %v4008 = vunpack.c.l.b16 %v3435
    %v4009 = vunpack.c.h.b16 %v3435
    %v4010 = vunpack.c.l.b16 %v3436
    %v4011 = vunpack.c.h.b16 %v3436
    %v4012 = vunpack.c.l.b16 %v3437
    %v4013 = vunpack.c.h.b16 %v3437
    %v4014 = vunpack.c.l.b16 %v3438
    %v4015 = vunpack.c.h.b16 %v3438
    %v4016 = vunpack.c.l.b16 %v3439
    %v4017 = vunpack.c.h.b16 %v3439
    %v4018 = vunpack.c.l.b16 %v3440
    %v4019 = vunpack.c.h.b16 %v3440
    %v4020 = vunpack.c.l.b16 %v3441
    %v4021 = vunpack.c.h.b16 %v3441
    %v4022 = vunpack.c.l.b16 %v3442
    %v4023 = vunpack.c.h.b16 %v3442
    %v4024 = vunpack.c.l.b16 %v3443
    %v4025 = vunpack.c.h.b16 %v3443
    %v4026 = vunpack.c.l.b16 %v3444
    %v4027 = vunpack.c.h.b16 %v3444
    %v4028 = vunpack.c.l.b16 %v3445
    %v4029 = vunpack.c.h.b16 %v3445
    %v4030 = vunpack.c.l.b16 %v3446
    %v4031 = vunpack.c.h.b16 %v3446
    %v4032 = vunpack.c.l.b16 %v3447
    %v4033 = vunpack.c.h.b16 %v3447
    %v4034 = vunpack.c.l.b16 %v3448
    %v4035 = vunpack.c.h.b16 %v3448
    %v4036 = vunpack.c.l.b16 %v3449
    %v4037 = vunpack.c.h.b16 %v3449
    %v4038 = vunpack.c.l.b16 %v3450
    %v4039 = vunpack.c.h.b16 %v3450
    %v4040 = vunpack.c.l.b16 %v3451
    %v4041 = vunpack.c.h.b16 %v3451
    %v4042 = vunpack.c.l.b16 %v3452
    %v4043 = vunpack.c.h.b16 %v3452
    %v4044 = vunpack.c.l.b16 %v3453
    %v4045 = vunpack.c.h.b16 %v3453
    %v4046 = vunpack.c.l.b16 %v3454
    %v4047 = vunpack.c.h.b16 %v3454
    %v4048 = vunpack.c.l.b16 %v3455
    %v4049 = vunpack.c.h.b16 %v3455
    %v4050 = vunpack.c.l.b16 %v3456
    %v4051 = vunpack.c.h.b16 %v3456
    %v4052 = vunpack.c.l.b16 %v3457
    %v4053 = vunpack.c.h.b16 %v3457
    %v4054 = vunpack.c.l.b16 %v3458
    %v4055 = vunpack.c.h.b16 %v3458
    %v4056 = vunpack.c.l.b16 %v3459
    %v4057 = vunpack.c.h.b16 %v3459
    %v4058 = vunpack.c.l.b16 %v3460
    %v4059 = vunpack.c.h.b16 %v3460
    %v4060 = vunpack.c.l.b16 %v3461
    %v4061 = vunpack.c.h.b16 %v3461
    %v4062 = vunpack.c.l.b16 %v3462
    %v4063 = vunpack.c.h.b16 %v3462
    %v4064 = vunpack.c.l.b16 %v3463
    %v4065 = vunpack.c.h.b16 %v3463
    %v4066 = vunpack.c.l.b16 %v3464
    %v4067 = vunpack.c.h.b16 %v3464
    %v4068 = vunpack.c.l.b16 %v3465
    %v4069 = vunpack.c.h.b16 %v3465
    %v4070 = vunpack.c.l.b16 %v3466
    %v4071 = vunpack.c.h.b16 %v3466
    %v4072 = vunpack.c.l.b16 %v3467
    %v4073 = vunpack.c.h.b16 %v3467
    %v4074 = vunpack.c.l.b16 %v3468
    %v4075 = vunpack.c.h.b16 %v3468
    %v4076 = vunpack.c.l.b16 %v3469
    %v4077 = vunpack.c.h.b16 %v3469
    %v4078 = vunpack.c.l.b16 %v3470
    %v4079 = vunpack.c.h.b16 %v3470
    %v4080 = vunpack.c.l.b16 %v3471
    %v4081 = vunpack.c.h.b16 %v3471
    %v4082 = vunpack.c.l.b16 %v3472
    %v4083 = vunpack.c.h.b16 %v3472
    %v4084 = vunpack.c.l.b16 %v3473
    %v4085 = vunpack.c.h.b16 %v3473
    %v4086 = vunpack.c.l.b16 %v3474
    %v4087 = vunpack.c.h.b16 %v3474
    %v4088 = vunpack.c.l.b16 %v3475
    %v4089 = vunpack.c.h.b16 %v3475
    %v4090 = vunpack.c.l.b16 %v3476
    %v4091 = vunpack.c.h.b16 %v3476
    %v4092 = vunpack.c.l.b16 %v3477
    %v4093 = vunpack.c.h.b16 %v3477
    %v4094 = vunpack.c.l.b16 %v3478
    %v4095 = vunpack.c.h.b16 %v3478
    %v4096 = vunpack.c.l.b16 %v3479
    %v4097 = vunpack.c.h.b16 %v3479
    %v4098 = vunpack.c.l.b16 %v3480
    %v4099 = vunpack.c.h.b16 %v3480
    %v4100 = vunpack.c.l.b16 %v3481
    %v4101 = vunpack.c.h.b16 %v3481
    %v4102 = vunpack.c.l.b16 %v3482
    %v4103 = vunpack.c.h.b16 %v3482
    %v4104 = vunpack.c.l.b16 %v3483
    %v4105 = vunpack.c.h.b16 %v3483
    %v4106 = vunpack.c.l.b16 %v3484
    %v4107 = vunpack.c.h.b16 %v3484
    %v4108 = vunpack.c.l.b16 %v3485
    %v4109 = vunpack.c.h.b16 %v3485
    %v4110 = vunpack.c.l.b16 %v3486
    %v4111 = vunpack.c.h.b16 %v3486
    %v4112 = vunpack.c.l.b16 %v3487
    %v4113 = vunpack.c.h.b16 %v3487
    %v4114 = vunpack.c.l.b16 %v3488
    %v4115 = vunpack.c.h.b16 %v3488
    %v4116 = vunpack.c.l.b16 %v3489
    %v4117 = vunpack.c.h.b16 %v3489
    %v4118 = vunpack.c.l.b16 %v3490
    %v4119 = vunpack.c.h.b16 %v3490
    %v4120 = vunpack.c.l.b16 %v3491
    %v4121 = vunpack.c.h.b16 %v3491
    %v4122 = vunpack.c.l.b16 %v3492
    %v4123 = vunpack.c.h.b16 %v3492
    %v4124 = vunpack.c.l.b16 %v3493
    %v4125 = vunpack.c.h.b16 %v3493
    %v4126 = vunpack.c.l.b16 %v3494
    %v4127 = vunpack.c.h.b16 %v3494
    %v4128 = vunpack.c.l.b16 %v3495
    %v4129 = vunpack.c.h.b16 %v3495
    %v4130 = vunpack.c.l.b16 %v3496
    %v4131 = vunpack.c.h.b16 %v3496
    %v4132 = vunpack.c.l.b16 %v3497
    %v4133 = vunpack.c.h.b16 %v3497
    %v4134 = vunpack.c.l.b16 %v3498
    %v4135 = vunpack.c.h.b16 %v3498
    %v4136 = vunpack.c.l.b16 %v3499
    %v4137 = vunpack.c.h.b16 %v3499
    %v4138 = vunpack.c.l.b16 %v3500
    %v4139 = vunpack.c.h.b16 %v3500
    %v4140 = vunpack.c.l.b16 %v3501
    %v4141 = vunpack.c.h.b16 %v3501
    %v4142 = vunpack.c.l.b16 %v3502
    %v4143 = vunpack.c.h.b16 %v3502
    %v4144 = vunpack.c.l.b16 %v3503
    %v4145 = vunpack.c.h.b16 %v3503
    %v4146 = vunpack.c.l.b16 %v3504
    %v4147 = vunpack.c.h.b16 %v3504
    %v4148 = vunpack.c.l.b16 %v3505
    %v4149 = vunpack.c.h.b16 %v3505
    %v4150 = vunpack.c.l.b16 %v3506
    %v4151 = vunpack.c.h.b16 %v3506
    %v4152 = vunpack.c.l.b16 %v3507
    %v4153 = vunpack.c.h.b16 %v3507
    %v4154 = vunpack.c.l.b16 %v3508
    %v4155 = vunpack.c.h.b16 %v3508
    %v4156 = vunpack.c.l.b16 %v3509
    %v4157 = vunpack.c.h.b16 %v3509
    %v4158 = vunpack.c.l.b16 %v3510
    %v4159 = vunpack.c.h.b16 %v3510
    %v4160 = vunpack.c.l.b16 %v3511
    %v4161 = vunpack.c.h.b16 %v3511
    %v4162 = vunpack.c.l.b16 %v3512
    %v4163 = vunpack.c.h.b16 %v3512
    %v4164 = vunpack.c.l.b16 %v3513
    %v4165 = vunpack.c.h.b16 %v3513
    %v4166 = vunpack.c.l.b16 %v3514
    %v4167 = vunpack.c.h.b16 %v3514
    %v4168 = vunpack.c.l.b16 %v3515
    %v4169 = vunpack.c.h.b16 %v3515
    %v4170 = vunpack.c.l.b16 %v3516
    %v4171 = vunpack.c.h.b16 %v3516
    %v4172 = vunpack.c.l.b16 %v3517
    %v4173 = vunpack.c.h.b16 %v3517
    %v4174 = vunpack.c.l.b16 %v3518
    %v4175 = vunpack.c.h.b16 %v3518
    %v4176 = vunpack.c.l.b16 %v3519
    %v4177 = vunpack.c.h.b16 %v3519
    %v4178 = vunpack.c.l.b16 %v3520
    %v4179 = vunpack.c.h.b16 %v3520
    %v4180 = vunpack.c.l.b16 %v3521
    %v4181 = vunpack.c.h.b16 %v3521
    %v4182 = vunpack.c.l.b16 %v3522
    %v4183 = vunpack.c.h.b16 %v3522
    %v4184 = vunpack.c.l.b16 %v3523
    %v4185 = vunpack.c.h.b16 %v3523
    %v4186 = vunpack.c.l.b16 %v3524
    %v4187 = vunpack.c.h.b16 %v3524
    %v4188 = vunpack.c.l.b16 %v3525
    %v4189 = vunpack.c.h.b16 %v3525
    %v4190 = vunpack.c.l.b16 %v3526
    %v4191 = vunpack.c.h.b16 %v3526
    %v4192 = vunpack.c.l.b16 %v3527
    %v4193 = vunpack.c.h.b16 %v3527
    %v4194 = vunpack.c.l.b16 %v3528
    %v4195 = vunpack.c.h.b16 %v3528
    %v4196 = vunpack.c.l.b16 %v3529
    %v4197 = vunpack.c.h.b16 %v3529
    %v4198 = vunpack.c.l.b16 %v3530
    %v4199 = vunpack.c.h.b16 %v3530
    %v4200 = vunpack.c.l.b16 %v3531
    %v4201 = vunpack.c.h.b16 %v3531
    %v4202 = vunpack.c.l.b16 %v3532
    %v4203 = vunpack.c.h.b16 %v3532
    %v4204 = vunpack.c.l.b16 %v3533
    %v4205 = vunpack.c.h.b16 %v3533
    %v4206 = vunpack.c.l.b16 %v3534
    %v4207 = vunpack.c.h.b16 %v3534
    %v4208 = vunpack.c.l.b16 %v3535
    %v4209 = vunpack.c.h.b16 %v3535
    %v4210 = vunpack.c.l.b16 %v3536
    %v4211 = vunpack.c.h.b16 %v3536
    %v4212 = vunpack.c.l.b16 %v3537
    %v4213 = vunpack.c.h.b16 %v3537
    %v4214 = vunpack.c.l.b16 %v3538
    %v4215 = vunpack.c.h.b16 %v3538
    %v4216 = vunpack.c.l.b16 %v3539
    %v4217 = vunpack.c.h.b16 %v3539
    %v4218 = vunpack.c.l.b16 %v3540
    %v4219 = vunpack.c.h.b16 %v3540
    %v4220 = vunpack.c.l.b16 %v3541
    %v4221 = vunpack.c.h.b16 %v3541
    %v4222 = vunpack.c.l.b16 %v3542
    %v4223 = vunpack.c.h.b16 %v3542
    %v4224 = vunpack.c.l.b16 %v3543
    %v4225 = vunpack.c.h.b16 %v3543
    %v4226 = vunpack.c.l.b16 %v3544
    %v4227 = vunpack.c.h.b16 %v3544
    %v4228 = vunpack.c.l.b16 %v3545
    %v4229 = vunpack.c.h.b16 %v3545
    %v4230 = vunpack.c.l.b16 %v3546
    %v4231 = vunpack.c.h.b16 %v3546
    %v4232 = vunpack.c.l.b16 %v3547
    %v4233 = vunpack.c.h.b16 %v3547
    %v4234 = vunpack.c.l.b16 %v3548
    %v4235 = vunpack.c.h.b16 %v3548
    %v4236 = vunpack.c.l.b16 %v3549
    %v4237 = vunpack.c.h.b16 %v3549
    %v4238 = vunpack.c.l.b16 %v3550
    %v4239 = vunpack.c.h.b16 %v3550
    %v4240 = vunpack.c.l.b16 %v3551
    %v4241 = vunpack.c.h.b16 %v3551
    %v4242 = vunpack.c.l.b16 %v3552
    %v4243 = vunpack.c.h.b16 %v3552
    %v4244 = vunpack.c.l.b16 %v3553
    %v4245 = vunpack.c.h.b16 %v3553
    %v4246 = vunpack.c.l.b16 %v3554
    %v4247 = vunpack.c.h.b16 %v3554
    %v4248 = vunpack.c.l.b16 %v3555
    %v4249 = vunpack.c.h.b16 %v3555
    %v4250 = vpack.c.b16 %v3806, %v3802
    %v4251 = vpack.c.b16 %v3807, %v3803
    %v4252 = vpack.c.b16 %v3808, %v3804
    %v4253 = vpack.c.b16 %v3809, %v3805
    %v4254 = vpack.c.b16 %v3814, %v3810
    %v4255 = vpack.c.b16 %v3815, %v3811
    %v4256 = vpack.c.b16 %v3816, %v3812
    %v4257 = vpack.c.b16 %v3817, %v3813
    %v4258 = vpack.c.b16 %v3822, %v3818
    %v4259 = vpack.c.b16 %v3823, %v3819
    %v4260 = vpack.c.b16 %v3824, %v3820
    %v4261 = vpack.c.b16 %v3825, %v3821
    %v4262 = vpack.c.b16 %v3830, %v3826
    %v4263 = vpack.c.b16 %v3831, %v3827
    %v4264 = vpack.c.b16 %v3832, %v3828
    %v4265 = vpack.c.b16 %v3833, %v3829
    %v4266 = vpack.c.b16 %v3838, %v3834
    %v4267 = vpack.c.b16 %v3839, %v3835
    %v4268 = vpack.c.b16 %v3840, %v3836
    %v4269 = vpack.c.b16 %v3841, %v3837
    %v4270 = vpack.c.b16 %v3846, %v3842
    %v4271 = vpack.c.b16 %v3847, %v3843
    %v4272 = vpack.c.b16 %v3848, %v3844
    %v4273 = vpack.c.b16 %v3849, %v3845
    %v4274 = vpack.c.b16 %v3854, %v3850
    %v4275 = vpack.c.b16 %v3855, %v3851
    %v4276 = vpack.c.b16 %v3856, %v3852
    %v4277 = vpack.c.b16 %v3857, %v3853
    %v4278 = vpack.c.b16 %v3862, %v3858
    %v4279 = vpack.c.b16 %v3863, %v3859
    %v4280 = vpack.c.b16 %v3864, %v3860
    %v4281 = vpack.c.b16 %v3865, %v3861
    %v4282 = vpack.c.b16 %v3870, %v3866
    %v4283 = vpack.c.b16 %v3871, %v3867
    %v4284 = vpack.c.b16 %v3872, %v3868
    %v4285 = vpack.c.b16 %v3873, %v3869
    %v4286 = vpack.c.b16 %v3878, %v3874
    %v4287 = vpack.c.b16 %v3879, %v3875
    %v4288 = vpack.c.b16 %v3880, %v3876
    %v4289 = vpack.c.b16 %v3881, %v3877
    %v4290 = vpack.c.b16 %v3886, %v3882
    %v4291 = vpack.c.b16 %v3887, %v3883
    %v4292 = vpack.c.b16 %v3888, %v3884
    %v4293 = vpack.c.b16 %v3889, %v3885
    %v4294 = vpack.c.b16 %v3894, %v3890
    %v4295 = vpack.c.b16 %v3895, %v3891
    %v4296 = vpack.c.b16 %v3896, %v3892
    %v4297 = vpack.c.b16 %v3897, %v3893
    %v4298 = vpack.c.b16 %v3902, %v3898
    %v4299 = vpack.c.b16 %v3903, %v3899
    %v4300 = vpack.c.b16 %v3904, %v3900
    %v4301 = vpack.c.b16 %v3905, %v3901
    %v4302 = vpack.c.b16 %v3910, %v3906
    %v4303 = vpack.c.b16 %v3911, %v3907
    %v4304 = vpack.c.b16 %v3912, %v3908
    %v4305 = vpack.c.b16 %v3913, %v3909
    %v4306 = vpack.c.b16 %v3918, %v3914
    %v4307 = vpack.c.b16 %v3919, %v3915
    %v4308 = vpack.c.b16 %v3920, %v3916
    %v4309 = vpack.c.b16 %v3921, %v3917
    %v4310 = vpack.c.b16 %v3926, %v3922
    %v4311 = vpack.c.b16 %v3927, %v3923
    %v4312 = vpack.c.b16 %v3928, %v3924
    %v4313 = vpack.c.b16 %v3929, %v3925
    %v4314 = vpack.c.b16 %v3934, %v3930
    %v4315 = vpack.c.b16 %v3935, %v3931
    %v4316 = vpack.c.b16 %v3936, %v3932
    %v4317 = vpack.c.b16 %v3937, %v3933
    %v4318 = vpack.c.b16 %v3942, %v3938
    %v4319 = vpack.c.b16 %v3943, %v3939
    %v4320 = vpack.c.b16 %v3944, %v3940
    %v4321 = vpack.c.b16 %v3945, %v3941
    %v4322 = vpack.c.b16 %v3950, %v3946
    %v4323 = vpack.c.b16 %v3951, %v3947
    %v4324 = vpack.c.b16 %v3952, %v3948
    %v4325 = vpack.c.b16 %v3953, %v3949
    %v4326 = vpack.c.b16 %v3958, %v3954
    %v4327 = vpack.c.b16 %v3959, %v3955
    %v4328 = vpack.c.b16 %v3960, %v3956
    %v4329 = vpack.c.b16 %v3961, %v3957
    %v4330 = vpack.c.b16 %v3966, %v3962
    %v4331 = vpack.c.b16 %v3967, %v3963
    %v4332 = vpack.c.b16 %v3968, %v3964
    %v4333 = vpack.c.b16 %v3969, %v3965
    %v4334 = vpack.c.b16 %v3974, %v3970
    %v4335 = vpack.c.b16 %v3975, %v3971
    %v4336 = vpack.c.b16 %v3976, %v3972
    %v4337 = vpack.c.b16 %v3977, %v3973
    %v4338 = vpack.c.b16 %v3982, %v3978
    %v4339 = vpack.c.b16 %v3983, %v3979
    %v4340 = vpack.c.b16 %v3984, %v3980
    %v4341 = vpack.c.b16 %v3985, %v3981
    %v4342 = vpack.c.b16 %v3990, %v3986
    %v4343 = vpack.c.b16 %v3991, %v3987
    %v4344 = vpack.c.b16 %v3992, %v3988
    %v4345 = vpack.c.b16 %v3993, %v3989
    %v4346 = vpack.c.b16 %v3998, %v3994
    %v4347 = vpack.c.b16 %v3999, %v3995
    %v4348 = vpack.c.b16 %v4000, %v3996
    %v4349 = vpack.c.b16 %v4001, %v3997
    %v4350 = vpack.c.b16 %v4006, %v4002
    %v4351 = vpack.c.b16 %v4007, %v4003
    %v4352 = vpack.c.b16 %v4008, %v4004
    %v4353 = vpack.c.b16 %v4009, %v4005
    %v4354 = vpack.c.b16 %v4014, %v4010
    %v4355 = vpack.c.b16 %v4015, %v4011
    %v4356 = vpack.c.b16 %v4016, %v4012
    %v4357 = vpack.c.b16 %v4017, %v4013
    %v4358 = vpack.c.b16 %v4022, %v4018
    %v4359 = vpack.c.b16 %v4023, %v4019
    %v4360 = vpack.c.b16 %v4024, %v4020
    %v4361 = vpack.c.b16 %v4025, %v4021
    %v4362 = vpack.c.b16 %v4030, %v4026
    %v4363 = vpack.c.b16 %v4031, %v4027
    %v4364 = vpack.c.b16 %v4032, %v4028
    %v4365 = vpack.c.b16 %v4033, %v4029
    %v4366 = vpack.c.b16 %v4038, %v4034
    %v4367 = vpack.c.b16 %v4039, %v4035
    %v4368 = vpack.c.b16 %v4040, %v4036
    %v4369 = vpack.c.b16 %v4041, %v4037
    %v4370 = vpack.c.b16 %v4046, %v4042
    %v4371 = vpack.c.b16 %v4047, %v4043
    %v4372 = vpack.c.b16 %v4048, %v4044
    %v4373 = vpack.c.b16 %v4049, %v4045
    %v4374 = vpack.c.b16 %v4054, %v4050
    %v4375 = vpack.c.b16 %v4055, %v4051
    %v4376 = vpack.c.b16 %v4056, %v4052
    %v4377 = vpack.c.b16 %v4057, %v4053
    %v4378 = vpack.c.b16 %v4062, %v4058
    %v4379 = vpack.c.b16 %v4063, %v4059
    %v4380 = vpack.c.b16 %v4064, %v4060
    %v4381 = vpack.c.b16 %v4065, %v4061
    %v4382 = vpack.c.b16 %v4070, %v4066
    %v4383 = vpack.c.b16 %v4071, %v4067
    %v4384 = vpack.c.b16 %v4072, %v4068
    %v4385 = vpack.c.b16 %v4073, %v4069
    %v4386 = vpack.c.b16 %v4078, %v4074
    %v4387 = vpack.c.b16 %v4079, %v4075
    %v4388 = vpack.c.b16 %v4080, %v4076
    %v4389 = vpack.c.b16 %v4081, %v4077
    %v4390 = vpack.c.b16 %v4086, %v4082
    %v4391 = vpack.c.b16 %v4087, %v4083
    %v4392 = vpack.c.b16 %v4088, %v4084
    %v4393 = vpack.c.b16 %v4089, %v4085
    %v4394 = vpack.c.b16 %v4094, %v4090
    %v4395 = vpack.c.b16 %v4095, %v4091
    %v4396 = vpack.c.b16 %v4096, %v4092
    %v4397 = vpack.c.b16 %v4097, %v4093
    %v4398 = vpack.c.b16 %v4102, %v4098
    %v4399 = vpack.c.b16 %v4103, %v4099
    %v4400 = vpack.c.b16 %v4104, %v4100
    %v4401 = vpack.c.b16 %v4105, %v4101
    %v4402 = vpack.c.b16 %v4110, %v4106
    %v4403 = vpack.c.b16 %v4111, %v4107
    %v4404 = vpack.c.b16 %v4112, %v4108
    %v4405 = vpack.c.b16 %v4113, %v4109
    %v4406 = vpack.c.b16 %v4118, %v4114
    %v4407 = vpack.c.b16 %v4119, %v4115
    %v4408 = vpack.c.b16 %v4120, %v4116
    %v4409 = vpack.c.b16 %v4121, %v4117
    %v4410 = vpack.c.b16 %v4126, %v4122
    %v4411 = vpack.c.b16 %v4127, %v4123
    %v4412 = vpack.c.b16 %v4128, %v4124
    %v4413 = vpack.c.b16 %v4129, %v4125
    %v4414 = vpack.c.b16 %v4134, %v4130
    %v4415 = vpack.c.b16 %v4135, %v4131
    %v4416 = vpack.c.b16 %v4136, %v4132
    %v4417 = vpack.c.b16 %v4137, %v4133
    %v4418 = vpack.c.b16 %v4142, %v4138
    %v4419 = vpack.c.b16 %v4143, %v4139
    %v4420 = vpack.c.b16 %v4144, %v4140
    %v4421 = vpack.c.b16 %v4145, %v4141
    %v4422 = vpack.c.b16 %v4150, %v4146
    %v4423 = vpack.c.b16 %v4151, %v4147
    %v4424 = vpack.c.b16 %v4152, %v4148
    %v4425 = vpack.c.b16 %v4153, %v4149
    %v4426 = vpack.c.b16 %v4158, %v4154
    %v4427 = vpack.c.b16 %v4159, %v4155
    %v4428 = vpack.c.b16 %v4160, %v4156
    %v4429 = vpack.c.b16 %v4161, %v4157
    %v4430 = vpack.c.b16 %v4166, %v4162
    %v4431 = vpack.c.b16 %v4167, %v4163
    %v4432 = vpack.c.b16 %v4168, %v4164
    %v4433 = vpack.c.b16 %v4169, %v4165
    %v4434 = vpack.c.b16 %v4174, %v4170
    %v4435 = vpack.c.b16 %v4175, %v4171
    %v4436 = vpack.c.b16 %v4176, %v4172
    %v4437 = vpack.c.b16 %v4177, %v4173
    %v4438 = vpack.c.b16 %v4182, %v4178
    %v4439 = vpack.c.b16 %v4183, %v4179
    %v4440 = vpack.c.b16 %v4184, %v4180
    %v4441 = vpack.c.b16 %v4185, %v4181
    %v4442 = vpack.c.b16 %v4190, %v4186
    %v4443 = vpack.c.b16 %v4191, %v4187
    %v4444 = vpack.c.b16 %v4192, %v4188
    %v4445 = vpack.c.b16 %v4193, %v4189
    %v4446 = vpack.c.b16 %v4198, %v4194
    %v4447 = vpack.c.b16 %v4199, %v4195
    %v4448 = vpack.c.b16 %v4200, %v4196
    %v4449 = vpack.c.b16 %v4201, %v4197
    %v4450 = vpack.c.b16 %v4206, %v4202
    %v4451 = vpack.c.b16 %v4207, %v4203
    %v4452 = vpack.c.b16 %v4208, %v4204
    %v4453 = vpack.c.b16 %v4209, %v4205
    %v4454 = vpack.c.b16 %v4214, %v4210
    %v4455 = vpack.c.b16 %v4215, %v4211
    %v4456 = vpack.c.b16 %v4216, %v4212
    %v4457 = vpack.c.b16 %v4217, %v4213
    %v4458 = vpack.c.b16 %v4222, %v4218
    %v4459 = vpack.c.b16 %v4223, %v4219
    %v4460 = vpack.c.b16 %v4224, %v4220
    %v4461 = vpack.c.b16 %v4225, %v4221
    %v4462 = vpack.c.b16 %v4230, %v4226
    %v4463 = vpack.c.b16 %v4231, %v4227
    %v4464 = vpack.c.b16 %v4232, %v4228
    %v4465 = vpack.c.b16 %v4233, %v4229
    %v4466 = vpack.c.b16 %v4238, %v4234
    %v4467 = vpack.c.b16 %v4239, %v4235
    %v4468 = vpack.c.b16 %v4240, %v4236
    %v4469 = vpack.c.b16 %v4241, %v4237
    %v4470 = vpack.c.b16 %v4246, %v4242
    %v4471 = vpack.c.b16 %v4247, %v4243
    %v4472 = vpack.c.b16 %v4248, %v4244
    %v4473 = vpack.c.b16 %v4249, %v4245
    %4698 = vmatprep.subr.bf16.mxu0 %v4251
    %4699 = vmatpush1.bf16.msra.mxu0 %v4250
    %4700 = vmatprep.subr.bf16.mxu0 %v4255
    %4701 = vmatpush1.bf16.msra.mxu0 %v4254
    %4702 = vmatprep.subr.bf16.mxu0 %v4259
    %4703 = vmatpush1.bf16.msra.mxu0 %v4258
    %4704 = vmatprep.subr.bf16.mxu0 %v4263
    %4705 = vmatpush1.bf16.msra.mxu0 %v4262
    %4706 = vmatprep.subr.bf16.mxu0 %v4267
    %4707 = vmatpush1.bf16.msra.mxu0 %v4266
    %4708 = vmatprep.subr.bf16.mxu0 %v4271
    %4709 = vmatpush1.bf16.msra.mxu0 %v4270
    %4710 = vmatprep.subr.bf16.mxu0 %v4275
    %4711 = vmatpush1.bf16.msra.mxu0 %v4274
    %4712 = vmatprep.subr.bf16.mxu0 %v4279
    %4713 = vmatpush1.bf16.msra.mxu0 %v4278
    %4714 = vmatprep.subr.bf16.mxu0 %v4283
    %4715 = vmatpush1.bf16.msra.mxu0 %v4282
    %4716 = vmatprep.subr.bf16.mxu0 %v4287
    %4717 = vmatpush1.bf16.msra.mxu0 %v4286
    %4718 = vmatprep.subr.bf16.mxu0 %v4291
    %4719 = vmatpush1.bf16.msra.mxu0 %v4290
    %4720 = vmatprep.subr.bf16.mxu0 %v4295
    %4721 = vmatpush1.bf16.msra.mxu0 %v4294
    %4722 = vmatprep.subr.bf16.mxu0 %v4299
    %4723 = vmatpush1.bf16.msra.mxu0 %v4298
    %4724 = vmatprep.subr.bf16.mxu0 %v4303
    %4725 = vmatpush1.bf16.msra.mxu0 %v4302
    %4726 = vmatprep.subr.bf16.mxu0 %v4307
    %4727 = vmatpush1.bf16.msra.mxu0 %v4306
    %4728 = vmatprep.subr.bf16.mxu0 %v4311
    %4729 = vmatpush1.bf16.msra.mxu0 %v4310
    %4730 = vmatprep.mubr.bf16.mxu0 %v3326
    %4731 = vmatmul.mubr.bf16.gmra.mrb[0].mxu0 %v3325
    %v4732 = vpop.f32.mrb[0].mxu0
    %v4733 = vadd.f32 %v3561, %v4732
    %v4734 = vpop.f32.mrb[0].mxu0
    %v4735 = vadd.f32 %v3565, %v4734
    %v4736 = vpop.f32.mrb[0].mxu0
    %v4737 = vpop.f32.mrb[0].mxu0
    %4738 = vdwg.mxu0
    %4739 = vmatprep.subr.bf16.mxu0 %v4315
    %4740 = vmatpush1.bf16.msra.mxu0 %v4314
    %4741 = vmatprep.subr.bf16.mxu0 %v4319
    %4742 = vmatpush1.bf16.msra.mxu0 %v4318
    %4743 = vmatprep.subr.bf16.mxu0 %v4323
    %4744 = vmatpush1.bf16.msra.mxu0 %v4322
    %4745 = vmatprep.subr.bf16.mxu0 %v4327
    %4746 = vmatpush1.bf16.msra.mxu0 %v4326
    %4747 = vmatprep.subr.bf16.mxu0 %v4331
    %4748 = vmatpush1.bf16.msra.mxu0 %v4330
    %4749 = vmatprep.subr.bf16.mxu0 %v4335
    %4750 = vmatpush1.bf16.msra.mxu0 %v4334
    %4751 = vmatprep.subr.bf16.mxu0 %v4339
    %4752 = vmatpush1.bf16.msra.mxu0 %v4338
    %4753 = vmatprep.subr.bf16.mxu0 %v4343
    %4754 = vmatpush1.bf16.msra.mxu0 %v4342
    %4755 = vmatprep.subr.bf16.mxu0 %v4347
    %4756 = vmatpush1.bf16.msra.mxu0 %v4346
    %4757 = vmatprep.subr.bf16.mxu0 %v4351
    %4758 = vmatpush1.bf16.msra.mxu0 %v4350
    %4759 = vmatprep.subr.bf16.mxu0 %v4355
    %4760 = vmatpush1.bf16.msra.mxu0 %v4354
    %4761 = vmatprep.subr.bf16.mxu0 %v4359
    %4762 = vmatpush1.bf16.msra.mxu0 %v4358
    %4763 = vmatprep.subr.bf16.mxu0 %v4363
    %4764 = vmatpush1.bf16.msra.mxu0 %v4362
    %4765 = vmatprep.subr.bf16.mxu0 %v4367
    %4766 = vmatpush1.bf16.msra.mxu0 %v4366
    %4767 = vmatprep.subr.bf16.mxu0 %v4371
    %4768 = vmatpush1.bf16.msra.mxu0 %v4370
    %4769 = vmatprep.subr.bf16.mxu0 %v4375
    %4770 = vmatpush1.bf16.msra.mxu0 %v4374
    %4771 = vmatprep.mubr.bf16.mxu0 %v3328
    %4772 = vmatmul.mubr.bf16.gmra.mrb[0].mxu0 %v3327
    %v4773 = vpop.f32.mrb[0].mxu0
    %v4774 = vadd.f32 %v4733, %v4773
    %v4775 = vpop.f32.mrb[0].mxu0
    %v4776 = vadd.f32 %v4735, %v4775
    %v4777 = vpop.f32.mrb[0].mxu0
    %v4778 = vpop.f32.mrb[0].mxu0
    %4779 = vdwg.mxu0
    %4780 = vmatprep.subr.bf16.mxu0 %v4379
    %4781 = vmatpush1.bf16.msra.mxu0 %v4378
    %4782 = vmatprep.subr.bf16.mxu0 %v4383
    %4783 = vmatpush1.bf16.msra.mxu0 %v4382
    %4784 = vmatprep.subr.bf16.mxu0 %v4387
    %4785 = vmatpush1.bf16.msra.mxu0 %v4386
    %4786 = vmatprep.subr.bf16.mxu0 %v4391
    %4787 = vmatpush1.bf16.msra.mxu0 %v4390
    %4788 = vmatprep.subr.bf16.mxu0 %v4395
    %4789 = vmatpush1.bf16.msra.mxu0 %v4394
    %4790 = vmatprep.subr.bf16.mxu0 %v4399
    %4791 = vmatpush1.bf16.msra.mxu0 %v4398
    %4792 = vmatprep.subr.bf16.mxu0 %v4403
    %4793 = vmatpush1.bf16.msra.mxu0 %v4402
    %4794 = vmatprep.subr.bf16.mxu0 %v4407
    %4795 = vmatpush1.bf16.msra.mxu0 %v4406
    %4796 = vmatprep.subr.bf16.mxu0 %v4411
    %4797 = vmatpush1.bf16.msra.mxu0 %v4410
    %4798 = vmatprep.subr.bf16.mxu0 %v4415
    %4799 = vmatpush1.bf16.msra.mxu0 %v4414
    %4800 = vmatprep.subr.bf16.mxu0 %v4419
    %4801 = vmatpush1.bf16.msra.mxu0 %v4418
    %4802 = vmatprep.subr.bf16.mxu0 %v4423
    %4803 = vmatpush1.bf16.msra.mxu0 %v4422
    %4804 = vmatprep.subr.bf16.mxu0 %v4427
    %4805 = vmatpush1.bf16.msra.mxu0 %v4426
    %4806 = vmatprep.subr.bf16.mxu0 %v4431
    %4807 = vmatpush1.bf16.msra.mxu0 %v4430
    %4808 = vmatprep.subr.bf16.mxu0 %v4435
    %4809 = vmatpush1.bf16.msra.mxu0 %v4434
    %4810 = vmatprep.subr.bf16.mxu0 %v4439
    %4811 = vmatpush1.bf16.msra.mxu0 %v4438
    %4812 = vmatprep.mubr.bf16.mxu0 %v3330
    %4813 = vmatmul.mubr.bf16.gmra.mrb[0].mxu0 %v3329
    %v4814 = vpop.f32.mrb[0].mxu0
    %v4815 = vadd.f32 %v4774, %v4814
    %v4816 = vpop.f32.mrb[0].mxu0
    %v4817 = vadd.f32 %v4776, %v4816
    %v4818 = vpop.f32.mrb[0].mxu0
    %v4819 = vpop.f32.mrb[0].mxu0
    %4820 = vdwg.mxu0
    %4821 = vmatprep.subr.bf16.mxu0 %v4443
    %4822 = vmatpush1.bf16.msra.mxu0 %v4442
    %4823 = vmatprep.subr.bf16.mxu0 %v4447
    %4824 = vmatpush1.bf16.msra.mxu0 %v4446
    %4825 = vmatprep.subr.bf16.mxu0 %v4451
    %4826 = vmatpush1.bf16.msra.mxu0 %v4450
    %4827 = vmatprep.subr.bf16.mxu0 %v4455
    %4828 = vmatpush1.bf16.msra.mxu0 %v4454
    %4829 = vmatprep.subr.bf16.mxu0 %v4459
    %4830 = vmatpush1.bf16.msra.mxu0 %v4458
    %4831 = vmatprep.subr.bf16.mxu0 %v4463
    %4832 = vmatpush1.bf16.msra.mxu0 %v4462
    %4833 = vmatprep.subr.bf16.mxu0 %v4467
    %4834 = vmatpush1.bf16.msra.mxu0 %v4466
    %4835 = vmatprep.subr.bf16.mxu0 %v4471
    %4836 = vmatpush1.bf16.msra.mxu0 %v4470
    %4837 = vmatprep.subr.bf16.mxu0 0
    %4838 = vmatpush1.bf16.msra.mxu0 0
    %4839 = vmatprep.subr.bf16.mxu0 0
    %4840 = vmatpush1.bf16.msra.mxu0 0
    %4841 = vmatprep.subr.bf16.mxu0 0
    %4842 = vmatpush1.bf16.msra.mxu0 0
    %4843 = vmatprep.subr.bf16.mxu0 0
    %4844 = vmatpush1.bf16.msra.mxu0 0
    %4845 = vmatprep.subr.bf16.mxu0 0
    %4846 = vmatpush1.bf16.msra.mxu0 0
    %4847 = vmatprep.subr.bf16.mxu0 0
    %4848 = vmatpush1.bf16.msra.mxu0 0
    %4849 = vmatprep.subr.bf16.mxu0 0
    %4850 = vmatpush1.bf16.msra.mxu0 0
    %4851 = vmatprep.subr.bf16.mxu0 0
    %4852 = vmatpush1.bf16.msra.mxu0 0
    %4853 = vmatprep.mubr.bf16.mxu0 0
    %4854 = vmatmul.mubr.bf16.gmra.mrb[0].mxu0 %v3331
    %v4855 = vpop.f32.mrb[0].mxu0
    %v4856 = vadd.f32 %v4815, %v4855
    %v4857 = vpop.f32.mrb[0].mxu0
    %v4858 = vadd.f32 %v4817, %v4857
    %v4859 = vpop.f32.mrb[0].mxu0
    %v4860 = vpop.f32.mrb[0].mxu0
    %4861 = vdwg.mxu0
    %4862 = vmatprep.subr.bf16.mxu0 %v4253
    %4863 = vmatpush1.bf16.msra.mxu0 %v4252
    %4864 = vmatprep.subr.bf16.mxu0 %v4257
    %4865 = vmatpush1.bf16.msra.mxu0 %v4256
    %4866 = vmatprep.subr.bf16.mxu0 %v4261
    %4867 = vmatpush1.bf16.msra.mxu0 %v4260
    %4868 = vmatprep.subr.bf16.mxu0 %v4265
    %4869 = vmatpush1.bf16.msra.mxu0 %v4264
    %4870 = vmatprep.subr.bf16.mxu0 %v4269
    %4871 = vmatpush1.bf16.msra.mxu0 %v4268
    %4872 = vmatprep.subr.bf16.mxu0 %v4273
    %4873 = vmatpush1.bf16.msra.mxu0 %v4272
    %4874 = vmatprep.subr.bf16.mxu0 %v4277
    %4875 = vmatpush1.bf16.msra.mxu0 %v4276
    %4876 = vmatprep.subr.bf16.mxu0 %v4281
    %4877 = vmatpush1.bf16.msra.mxu0 %v4280
    %4878 = vmatprep.subr.bf16.mxu0 %v4285
    %4879 = vmatpush1.bf16.msra.mxu0 %v4284
    %4880 = vmatprep.subr.bf16.mxu0 %v4289
    %4881 = vmatpush1.bf16.msra.mxu0 %v4288
    %4882 = vmatprep.subr.bf16.mxu0 %v4293
    %4883 = vmatpush1.bf16.msra.mxu0 %v4292
    %4884 = vmatprep.subr.bf16.mxu0 %v4297
    %4885 = vmatpush1.bf16.msra.mxu0 %v4296
    %4886 = vmatprep.subr.bf16.mxu0 %v4301
    %4887 = vmatpush1.bf16.msra.mxu0 %v4300
    %4888 = vmatprep.subr.bf16.mxu0 %v4305
    %4889 = vmatpush1.bf16.msra.mxu0 %v4304
    %4890 = vmatprep.subr.bf16.mxu0 %v4309
    %4891 = vmatpush1.bf16.msra.mxu0 %v4308
    %4892 = vmatprep.subr.bf16.mxu0 %v4313
    %4893 = vmatpush1.bf16.msra.mxu0 %v4312
    %4894 = vmatprep.mubr.bf16.mxu0 %v3326
    %4895 = vmatmul.mubr.bf16.gmra.mrb[0].mxu0 %v3325
    %v4896 = vpop.f32.mrb[0].mxu0
    %v4897 = vadd.f32 %v3569, %v4896
    %v4898 = vpop.f32.mrb[0].mxu0
    %v4899 = vadd.f32 %v3573, %v4898
    %v4900 = vpop.f32.mrb[0].mxu0
    %v4901 = vpop.f32.mrb[0].mxu0
    %4902 = vdwg.mxu0
    %4903 = vmatprep.subr.bf16.mxu0 %v4317
    %4904 = vmatpush1.bf16.msra.mxu0 %v4316
    %4905 = vmatprep.subr.bf16.mxu0 %v4321
    %4906 = vmatpush1.bf16.msra.mxu0 %v4320
    %4907 = vmatprep.subr.bf16.mxu0 %v4325
    %4908 = vmatpush1.bf16.msra.mxu0 %v4324
    %4909 = vmatprep.subr.bf16.mxu0 %v4329
    %4910 = vmatpush1.bf16.msra.mxu0 %v4328
    %4911 = vmatprep.subr.bf16.mxu0 %v4333
    %4912 = vmatpush1.bf16.msra.mxu0 %v4332
    %4913 = vmatprep.subr.bf16.mxu0 %v4337
    %4914 = vmatpush1.bf16.msra.mxu0 %v4336
    %4915 = vmatprep.subr.bf16.mxu0 %v4341
    %4916 = vmatpush1.bf16.msra.mxu0 %v4340
    %4917 = vmatprep.subr.bf16.mxu0 %v4345
    %4918 = vmatpush1.bf16.msra.mxu0 %v4344
    %4919 = vmatprep.subr.bf16.mxu0 %v4349
    %4920 = vmatpush1.bf16.msra.mxu0 %v4348
    %4921 = vmatprep.subr.bf16.mxu0 %v4353
    %4922 = vmatpush1.bf16.msra.mxu0 %v4352
    %4923 = vmatprep.subr.bf16.mxu0 %v4357
    %4924 = vmatpush1.bf16.msra.mxu0 %v4356
    %4925 = vmatprep.subr.bf16.mxu0 %v4361
    %4926 = vmatpush1.bf16.msra.mxu0 %v4360
    %4927 = vmatprep.subr.bf16.mxu0 %v4365
    %4928 = vmatpush1.bf16.msra.mxu0 %v4364
    %4929 = vmatprep.subr.bf16.mxu0 %v4369
    %4930 = vmatpush1.bf16.msra.mxu0 %v4368
    %4931 = vmatprep.subr.bf16.mxu0 %v4373
    %4932 = vmatpush1.bf16.msra.mxu0 %v4372
    %4933 = vmatprep.subr.bf16.mxu0 %v4377
    %4934 = vmatpush1.bf16.msra.mxu0 %v4376
    %4935 = vmatprep.mubr.bf16.mxu0 %v3328
    %4936 = vmatmul.mubr.bf16.gmra.mrb[0].mxu0 %v3327
    %v4937 = vpop.f32.mrb[0].mxu0
    %v4938 = vadd.f32 %v4897, %v4937
    %v4939 = vpop.f32.mrb[0].mxu0
    %v4940 = vadd.f32 %v4899, %v4939
    %v4941 = vpop.f32.mrb[0].mxu0
    %v4942 = vpop.f32.mrb[0].mxu0
    %4943 = vdwg.mxu0
    %4944 = vmatprep.subr.bf16.mxu0 %v4381
    %4945 = vmatpush1.bf16.msra.mxu0 %v4380
    %4946 = vmatprep.subr.bf16.mxu0 %v4385
    %4947 = vmatpush1.bf16.msra.mxu0 %v4384
    %4948 = vmatprep.subr.bf16.mxu0 %v4389
    %4949 = vmatpush1.bf16.msra.mxu0 %v4388
    %4950 = vmatprep.subr.bf16.mxu0 %v4393
    %4951 = vmatpush1.bf16.msra.mxu0 %v4392
    %4952 = vmatprep.subr.bf16.mxu0 %v4397
    %4953 = vmatpush1.bf16.msra.mxu0 %v4396
    %4954 = vmatprep.subr.bf16.mxu0 %v4401
    %4955 = vmatpush1.bf16.msra.mxu0 %v4400
    %4956 = vmatprep.subr.bf16.mxu0 %v4405
    %4957 = vmatpush1.bf16.msra.mxu0 %v4404
    %4958 = vmatprep.subr.bf16.mxu0 %v4409
    %4959 = vmatpush1.bf16.msra.mxu0 %v4408
    %4960 = vmatprep.subr.bf16.mxu0 %v4413
    %4961 = vmatpush1.bf16.msra.mxu0 %v4412
    %4962 = vmatprep.subr.bf16.mxu0 %v4417
    %4963 = vmatpush1.bf16.msra.mxu0 %v4416
    %4964 = vmatprep.subr.bf16.mxu0 %v4421
    %4965 = vmatpush1.bf16.msra.mxu0 %v4420
    %4966 = vmatprep.subr.bf16.mxu0 %v4425
    %4967 = vmatpush1.bf16.msra.mxu0 %v4424
    %4968 = vmatprep.subr.bf16.mxu0 %v4429
    %4969 = vmatpush1.bf16.msra.mxu0 %v4428
    %4970 = vmatprep.subr.bf16.mxu0 %v4433
    %4971 = vmatpush1.bf16.msra.mxu0 %v4432
    %4972 = vmatprep.subr.bf16.mxu0 %v4437
    %4973 = vmatpush1.bf16.msra.mxu0 %v4436
    %4974 = vmatprep.subr.bf16.mxu0 %v4441
    %4975 = vmatpush1.bf16.msra.mxu0 %v4440
    %4976 = vmatprep.mubr.bf16.mxu0 %v3330
    %4977 = vmatmul.mubr.bf16.gmra.mrb[0].mxu0 %v3329
    %v4978 = vpop.f32.mrb[0].mxu0
    %v4979 = vadd.f32 %v4938, %v4978
    %v4980 = vpop.f32.mrb[0].mxu0
    %v4981 = vadd.f32 %v4940, %v4980
    %v4982 = vpop.f32.mrb[0].mxu0
    %v4983 = vpop.f32.mrb[0].mxu0
    %4984 = vdwg.mxu0
    %4985 = vmatprep.subr.bf16.mxu0 %v4445
    %4986 = vmatpush1.bf16.msra.mxu0 %v4444
    %4987 = vmatprep.subr.bf16.mxu0 %v4449
    %4988 = vmatpush1.bf16.msra.mxu0 %v4448
    %4989 = vmatprep.subr.bf16.mxu0 %v4453
    %4990 = vmatpush1.bf16.msra.mxu0 %v4452
    %4991 = vmatprep.subr.bf16.mxu0 %v4457
    %4992 = vmatpush1.bf16.msra.mxu0 %v4456
    %4993 = vmatprep.subr.bf16.mxu0 %v4461
    %4994 = vmatpush1.bf16.msra.mxu0 %v4460
    %4995 = vmatprep.subr.bf16.mxu0 %v4465
    %4996 = vmatpush1.bf16.msra.mxu0 %v4464
    %4997 = vmatprep.subr.bf16.mxu0 %v4469
    %4998 = vmatpush1.bf16.msra.mxu0 %v4468
    %4999 = vmatprep.subr.bf16.mxu0 %v4473
    %5000 = vmatpush1.bf16.msra.mxu0 %v4472
    %5001 = vmatprep.subr.bf16.mxu0 0
    %5002 = vmatpush1.bf16.msra.mxu0 0
    %5003 = vmatprep.subr.bf16.mxu0 0
    %5004 = vmatpush1.bf16.msra.mxu0 0
    %5005 = vmatprep.subr.bf16.mxu0 0
    %5006 = vmatpush1.bf16.msra.mxu0 0
    %5007 = vmatprep.subr.bf16.mxu0 0
    %5008 = vmatpush1.bf16.msra.mxu0 0
    %5009 = vmatprep.subr.bf16.mxu0 0
    %5010 = vmatpush1.bf16.msra.mxu0 0
    %5011 = vmatprep.subr.bf16.mxu0 0
    %5012 = vmatpush1.bf16.msra.mxu0 0
    %5013 = vmatprep.subr.bf16.mxu0 0
    %5014 = vmatpush1.bf16.msra.mxu0 0
    %5015 = vmatprep.subr.bf16.mxu0 0
    %5016 = vmatpush1.bf16.msra.mxu0 0
    %5017 = vmatprep.mubr.bf16.mxu0 0
    %5018 = vmatmul.mubr.bf16.gmra.mrb[0].mxu0 %v3331
    %v5019 = vpop.f32.mrb[0].mxu0
    %v5020 = vadd.f32 %v4979, %v5019
    %v5021 = vpop.f32.mrb[0].mxu0
    %v5022 = vadd.f32 %v4981, %v5021
    %v5023 = vpop.f32.mrb[0].mxu0
    %v5024 = vpop.f32.mrb[0].mxu0
    %5025 = vdwg.mxu0
    %vm5026 = vcmp.gt.f32.partialorder %v4856, 0.0
    %vm5027 = vcmp.gt.f32.partialorder %v4858, 0.0
    %vm5028 = vcmp.gt.f32.partialorder %v5020, 0.0
    %vm5029 = vcmp.gt.f32.partialorder %v5022, 0.0
    %v5030 = vmul.f32 %v4856, 0.1
    %v5031 = vmul.f32 %v4858, 0.1
    %v5032 = vmul.f32 %v5020, 0.1
    %v5033 = vmul.f32 %v5022, 0.1
    %v5034 = vsel %vm5026, %v4856, %v5030
    %v5035 = vsel %vm5027, %v4858, %v5031
    %v5036 = vsel %vm5028, %v5020, %v5032
    %v5037 = vsel %vm5029, %v5022, %v5033
    %v5038 = vpack.c.bf16 %v5034, %v5034
    %v5039 = vpack.c.bf16 %v5035, %v5035
    %v5040 = vpack.c.bf16 %v5036, %v5036
    %v5041 = vpack.c.bf16 %v5037, %v5037
    %v5042 = vld [vmem:[#allocation14] sm:$0xff]
    %v5043 = vld [vmem:[#allocation14 + $0x8] sm:$0xff]
    %v5044 = vld [vmem:[#allocation14 + $0x10] sm:$0xff]
    %v5045 = vld [vmem:[#allocation14 + $0x18] sm:$0xff]
    %v5046 = vld [vmem:[#allocation14 + $0x20] sm:$0xff]
    %v5047 = vld [vmem:[#allocation14 + $0x28] sm:$0xff]
    %v5048 = vld [vmem:[#allocation14 + $0x30] sm:$0xff]
    %v5049 = vld [vmem:[#allocation14 + $0x38] sm:$0xff]
    %v5050 = vld [vmem:[#allocation14 + $0x40] sm:$0xff]
    %v5051 = vld [vmem:[#allocation14 + $0x48] sm:$0xff]
    %v5052 = vld [vmem:[#allocation14 + $0x50] sm:$0xff]
    %v5053 = vld [vmem:[#allocation14 + $0x58] sm:$0xff]
    %v5054 = vld [vmem:[#allocation14 + $0x60] sm:$0xff]
    %v5055 = vld [vmem:[#allocation14 + $0x68] sm:$0xff]
    %v5056 = vld [vmem:[#allocation14 + $0x70] sm:$0xff]
    %v5057 = vld [vmem:[#allocation14 + $0x78] sm:$0xff]
    %v5058 = vld [vmem:[#allocation14 + $0x80] sm:$0xff]
    %v5059 = vld [vmem:[#allocation14 + $0x88] sm:$0xff]
    %v5060 = vld [vmem:[#allocation14 + $0x90] sm:$0xff]
    %v5061 = vld [vmem:[#allocation14 + $0x98] sm:$0xff]
    %v5062 = vld [vmem:[#allocation14 + $0xa0] sm:$0xff]
    %v5063 = vld [vmem:[#allocation14 + $0xa8] sm:$0xff]
    %v5064 = vld [vmem:[#allocation14 + $0xb0] sm:$0xff]
    %v5065 = vld [vmem:[#allocation14 + $0xb8] sm:$0xff]
    %v5066 = vld [vmem:[#allocation14 + $0xc0] sm:$0xff]
    %v5067 = vld [vmem:[#allocation14 + $0xc8] sm:$0xff]
    %v5068 = vld [vmem:[#allocation14 + $0xd0] sm:$0xff]
    %v5069 = vld [vmem:[#allocation14 + $0xd8] sm:$0xff]
    %v5070 = vld [vmem:[#allocation14 + $0xe0] sm:$0xff]
    %v5071 = vld [vmem:[#allocation14 + $0xe8] sm:$0xff]
    %v5072 = vld [vmem:[#allocation14 + $0xf0] sm:$0xff]
    %v5073 = vld [vmem:[#allocation14 + $0xf8] sm:$0xff]
    %v5074 = vld [vmem:[#allocation14 + $0x100] sm:$0xff]
    %v5075 = vld [vmem:[#allocation14 + $0x108] sm:$0xff]
    %v5076 = vld [vmem:[#allocation14 + $0x110] sm:$0xff]
    %v5077 = vld [vmem:[#allocation14 + $0x118] sm:$0xff]
    %v5078 = vld [vmem:[#allocation14 + $0x120] sm:$0xff]
    %v5079 = vld [vmem:[#allocation14 + $0x128] sm:$0xff]
    %v5080 = vld [vmem:[#allocation14 + $0x130] sm:$0xff]
    %v5081 = vld [vmem:[#allocation14 + $0x138] sm:$0xff]
    %v5082 = vld [vmem:[#allocation14 + $0x140] sm:$0xff]
    %v5083 = vld [vmem:[#allocation14 + $0x148] sm:$0xff]
    %v5084 = vld [vmem:[#allocation14 + $0x150] sm:$0xff]
    %v5085 = vld [vmem:[#allocation14 + $0x158] sm:$0xff]
    %v5086 = vld [vmem:[#allocation14 + $0x160] sm:$0xff]
    %v5087 = vld [vmem:[#allocation14 + $0x168] sm:$0xff]
    %v5088 = vld [vmem:[#allocation14 + $0x170] sm:$0xff]
    %v5089 = vld [vmem:[#allocation14 + $0x178] sm:$0xff]
    %v5090 = vld [vmem:[#allocation14 + $0x180] sm:$0xff]
    %v5091 = vld [vmem:[#allocation14 + $0x188] sm:$0xff]
    %v5092 = vld [vmem:[#allocation14 + $0x190] sm:$0xff]
    %v5093 = vld [vmem:[#allocation14 + $0x198] sm:$0xff]
    %v5094 = vld [vmem:[#allocation14 + $0x1a0] sm:$0xff]
    %v5095 = vld [vmem:[#allocation14 + $0x1a8] sm:$0xff]
    %v5096 = vld [vmem:[#allocation14 + $0x1b0] sm:$0xff]
    %v5097 = vld [vmem:[#allocation14 + $0x1b8] sm:$0xff]
    %v5098 = vld [vmem:[#allocation14 + $0x1c0] sm:$0xff]
    %v5099 = vld [vmem:[#allocation14 + $0x1c8] sm:$0xff]
    %v5100 = vld [vmem:[#allocation14 + $0x1d0] sm:$0xff]
    %v5101 = vld [vmem:[#allocation14 + $0x1d8] sm:$0xff]
    %v5102 = vld [vmem:[#allocation14 + $0x1e0] sm:$0xff]
    %v5103 = vld [vmem:[#allocation14 + $0x1e8] sm:$0xff]
    %v5104 = vld [vmem:[#allocation14 + $0x1f0] sm:$0xff]
    %v5105 = vld [vmem:[#allocation14 + $0x1f8] sm:$0xff]
    %v5106 = vld [vmem:[#allocation16] sm:$0x3]
    %v5108 = vlaneseq
    %v5109 = vshrl.u32 %v5108, 7
    %v5110 = vsub.s32 0, %v5109
    %v5111 = vrot.slane %v5106, %v5110
    %v5112 = vlaneseq
    %v5113 = vshrl.u32 %v5112, 7
    %v5114 = vsub.s32 1, %v5113
    %v5115 = vrot.slane %v5106, %v5114
    %v5182 = vunpack.c.l.b16 %v5042
    %v5183 = vunpack.c.h.b16 %v5042
    %v5184 = vunpack.c.l.b16 %v5043
    %v5185 = vunpack.c.h.b16 %v5043
    %v5186 = vunpack.c.l.b16 %v5044
    %v5187 = vunpack.c.h.b16 %v5044
    %v5188 = vunpack.c.l.b16 %v5045
    %v5189 = vunpack.c.h.b16 %v5045
    %v5190 = vunpack.c.l.b16 %v5046
    %v5191 = vunpack.c.h.b16 %v5046
    %v5192 = vunpack.c.l.b16 %v5047
    %v5193 = vunpack.c.h.b16 %v5047
    %v5194 = vunpack.c.l.b16 %v5048
    %v5195 = vunpack.c.h.b16 %v5048
    %v5196 = vunpack.c.l.b16 %v5049
    %v5197 = vunpack.c.h.b16 %v5049
    %v5198 = vunpack.c.l.b16 %v5050
    %v5199 = vunpack.c.h.b16 %v5050
    %v5200 = vunpack.c.l.b16 %v5051
    %v5201 = vunpack.c.h.b16 %v5051
    %v5202 = vunpack.c.l.b16 %v5052
    %v5203 = vunpack.c.h.b16 %v5052
    %v5204 = vunpack.c.l.b16 %v5053
    %v5205 = vunpack.c.h.b16 %v5053
    %v5206 = vunpack.c.l.b16 %v5054
    %v5207 = vunpack.c.h.b16 %v5054
    %v5208 = vunpack.c.l.b16 %v5055
    %v5209 = vunpack.c.h.b16 %v5055
    %v5210 = vunpack.c.l.b16 %v5056
    %v5211 = vunpack.c.h.b16 %v5056
    %v5212 = vunpack.c.l.b16 %v5057
    %v5213 = vunpack.c.h.b16 %v5057
    %v5214 = vunpack.c.l.b16 %v5058
    %v5215 = vunpack.c.h.b16 %v5058
    %v5216 = vunpack.c.l.b16 %v5059
    %v5217 = vunpack.c.h.b16 %v5059
    %v5218 = vunpack.c.l.b16 %v5060
    %v5219 = vunpack.c.h.b16 %v5060
    %v5220 = vunpack.c.l.b16 %v5061
    %v5221 = vunpack.c.h.b16 %v5061
    %v5222 = vunpack.c.l.b16 %v5062
    %v5223 = vunpack.c.h.b16 %v5062
    %v5224 = vunpack.c.l.b16 %v5063
    %v5225 = vunpack.c.h.b16 %v5063
    %v5226 = vunpack.c.l.b16 %v5064
    %v5227 = vunpack.c.h.b16 %v5064
    %v5228 = vunpack.c.l.b16 %v5065
    %v5229 = vunpack.c.h.b16 %v5065
    %v5230 = vunpack.c.l.b16 %v5066
    %v5231 = vunpack.c.h.b16 %v5066
    %v5232 = vunpack.c.l.b16 %v5067
    %v5233 = vunpack.c.h.b16 %v5067
    %v5234 = vunpack.c.l.b16 %v5068
    %v5235 = vunpack.c.h.b16 %v5068
    %v5236 = vunpack.c.l.b16 %v5069
    %v5237 = vunpack.c.h.b16 %v5069
    %v5238 = vunpack.c.l.b16 %v5070
    %v5239 = vunpack.c.h.b16 %v5070
    %v5240 = vunpack.c.l.b16 %v5071
    %v5241 = vunpack.c.h.b16 %v5071
    %v5242 = vunpack.c.l.b16 %v5072
    %v5243 = vunpack.c.h.b16 %v5072
    %v5244 = vunpack.c.l.b16 %v5073
    %v5245 = vunpack.c.h.b16 %v5073
    %v5246 = vunpack.c.l.b16 %v5074
    %v5247 = vunpack.c.h.b16 %v5074
    %v5248 = vunpack.c.l.b16 %v5075
    %v5249 = vunpack.c.h.b16 %v5075
    %v5250 = vunpack.c.l.b16 %v5076
    %v5251 = vunpack.c.h.b16 %v5076
    %v5252 = vunpack.c.l.b16 %v5077
    %v5253 = vunpack.c.h.b16 %v5077
    %v5254 = vunpack.c.l.b16 %v5078
    %v5255 = vunpack.c.h.b16 %v5078
    %v5256 = vunpack.c.l.b16 %v5079
    %v5257 = vunpack.c.h.b16 %v5079
    %v5258 = vunpack.c.l.b16 %v5080
    %v5259 = vunpack.c.h.b16 %v5080
    %v5260 = vunpack.c.l.b16 %v5081
    %v5261 = vunpack.c.h.b16 %v5081
    %v5262 = vunpack.c.l.b16 %v5082
    %v5263 = vunpack.c.h.b16 %v5082
    %v5264 = vunpack.c.l.b16 %v5083
    %v5265 = vunpack.c.h.b16 %v5083
    %v5266 = vunpack.c.l.b16 %v5084
    %v5267 = vunpack.c.h.b16 %v5084
    %v5268 = vunpack.c.l.b16 %v5085
    %v5269 = vunpack.c.h.b16 %v5085
    %v5270 = vunpack.c.l.b16 %v5086
    %v5271 = vunpack.c.h.b16 %v5086
    %v5272 = vunpack.c.l.b16 %v5087
    %v5273 = vunpack.c.h.b16 %v5087
    %v5274 = vunpack.c.l.b16 %v5088
    %v5275 = vunpack.c.h.b16 %v5088
    %v5276 = vunpack.c.l.b16 %v5089
    %v5277 = vunpack.c.h.b16 %v5089
    %v5278 = vunpack.c.l.b16 %v5090
    %v5279 = vunpack.c.h.b16 %v5090
    %v5280 = vunpack.c.l.b16 %v5091
    %v5281 = vunpack.c.h.b16 %v5091
    %v5282 = vunpack.c.l.b16 %v5092
    %v5283 = vunpack.c.h.b16 %v5092
    %v5284 = vunpack.c.l.b16 %v5093
    %v5285 = vunpack.c.h.b16 %v5093
    %v5286 = vunpack.c.l.b16 %v5094
    %v5287 = vunpack.c.h.b16 %v5094
    %v5288 = vunpack.c.l.b16 %v5095
    %v5289 = vunpack.c.h.b16 %v5095
    %v5290 = vunpack.c.l.b16 %v5096
    %v5291 = vunpack.c.h.b16 %v5096
    %v5292 = vunpack.c.l.b16 %v5097
    %v5293 = vunpack.c.h.b16 %v5097
    %v5294 = vunpack.c.l.b16 %v5098
    %v5295 = vunpack.c.h.b16 %v5098
    %v5296 = vunpack.c.l.b16 %v5099
    %v5297 = vunpack.c.h.b16 %v5099
    %v5298 = vunpack.c.l.b16 %v5100
    %v5299 = vunpack.c.h.b16 %v5100
    %v5300 = vunpack.c.l.b16 %v5101
    %v5301 = vunpack.c.h.b16 %v5101
    %v5302 = vunpack.c.l.b16 %v5102
    %v5303 = vunpack.c.h.b16 %v5102
    %v5304 = vunpack.c.l.b16 %v5103
    %v5305 = vunpack.c.h.b16 %v5103
    %v5306 = vunpack.c.l.b16 %v5104
    %v5307 = vunpack.c.h.b16 %v5104
    %v5308 = vunpack.c.l.b16 %v5105
    %v5309 = vunpack.c.h.b16 %v5105
    %v5310 = vpack.c.b16 %v5184, %v5182
    %v5311 = vpack.c.b16 %v5185, %v5183
    %v5312 = vpack.c.b16 %v5188, %v5186
    %v5313 = vpack.c.b16 %v5189, %v5187
    %v5314 = vpack.c.b16 %v5192, %v5190
    %v5315 = vpack.c.b16 %v5193, %v5191
    %v5316 = vpack.c.b16 %v5196, %v5194
    %v5317 = vpack.c.b16 %v5197, %v5195
    %v5318 = vpack.c.b16 %v5200, %v5198
    %v5319 = vpack.c.b16 %v5201, %v5199
    %v5320 = vpack.c.b16 %v5204, %v5202
    %v5321 = vpack.c.b16 %v5205, %v5203
    %v5322 = vpack.c.b16 %v5208, %v5206
    %v5323 = vpack.c.b16 %v5209, %v5207
    %v5324 = vpack.c.b16 %v5212, %v5210
    %v5325 = vpack.c.b16 %v5213, %v5211
    %v5326 = vpack.c.b16 %v5216, %v5214
    %v5327 = vpack.c.b16 %v5217, %v5215
    %v5328 = vpack.c.b16 %v5220, %v5218
    %v5329 = vpack.c.b16 %v5221, %v5219
    %v5330 = vpack.c.b16 %v5224, %v5222
    %v5331 = vpack.c.b16 %v5225, %v5223
    %v5332 = vpack.c.b16 %v5228, %v5226
    %v5333 = vpack.c.b16 %v5229, %v5227
    %v5334 = vpack.c.b16 %v5232, %v5230
    %v5335 = vpack.c.b16 %v5233, %v5231
    %v5336 = vpack.c.b16 %v5236, %v5234
    %v5337 = vpack.c.b16 %v5237, %v5235
    %v5338 = vpack.c.b16 %v5240, %v5238
    %v5339 = vpack.c.b16 %v5241, %v5239
    %v5340 = vpack.c.b16 %v5244, %v5242
    %v5341 = vpack.c.b16 %v5245, %v5243
    %v5342 = vpack.c.b16 %v5248, %v5246
    %v5343 = vpack.c.b16 %v5249, %v5247
    %v5344 = vpack.c.b16 %v5252, %v5250
    %v5345 = vpack.c.b16 %v5253, %v5251
    %v5346 = vpack.c.b16 %v5256, %v5254
    %v5347 = vpack.c.b16 %v5257, %v5255
    %v5348 = vpack.c.b16 %v5260, %v5258
    %v5349 = vpack.c.b16 %v5261, %v5259
    %v5350 = vpack.c.b16 %v5264, %v5262
    %v5351 = vpack.c.b16 %v5265, %v5263
    %v5352 = vpack.c.b16 %v5268, %v5266
    %v5353 = vpack.c.b16 %v5269, %v5267
    %v5354 = vpack.c.b16 %v5272, %v5270
    %v5355 = vpack.c.b16 %v5273, %v5271
    %v5356 = vpack.c.b16 %v5276, %v5274
    %v5357 = vpack.c.b16 %v5277, %v5275
    %v5358 = vpack.c.b16 %v5280, %v5278
    %v5359 = vpack.c.b16 %v5281, %v5279
    %v5360 = vpack.c.b16 %v5284, %v5282
    %v5361 = vpack.c.b16 %v5285, %v5283
    %v5362 = vpack.c.b16 %v5288, %v5286
    %v5363 = vpack.c.b16 %v5289, %v5287
    %v5364 = vpack.c.b16 %v5292, %v5290
    %v5365 = vpack.c.b16 %v5293, %v5291
    %v5366 = vpack.c.b16 %v5296, %v5294
    %v5367 = vpack.c.b16 %v5297, %v5295
    %v5368 = vpack.c.b16 %v5300, %v5298
    %v5369 = vpack.c.b16 %v5301, %v5299
    %v5370 = vpack.c.b16 %v5304, %v5302
    %v5371 = vpack.c.b16 %v5305, %v5303
    %v5372 = vpack.c.b16 %v5308, %v5306
    %v5373 = vpack.c.b16 %v5309, %v5307
    %5438 = vmatprep.subr.bf16.mxu0 %v5311
    %5439 = vmatpush1.bf16.msra.mxu0 %v5310
    %5440 = vmatprep.subr.bf16.mxu0 %v5313
    %5441 = vmatpush1.bf16.msra.mxu0 %v5312
    %5442 = vmatprep.subr.bf16.mxu0 %v5315
    %5443 = vmatpush1.bf16.msra.mxu0 %v5314
    %5444 = vmatprep.subr.bf16.mxu0 %v5317
    %5445 = vmatpush1.bf16.msra.mxu0 %v5316
    %5446 = vmatprep.subr.bf16.mxu0 %v5319
    %5447 = vmatpush1.bf16.msra.mxu0 %v5318
    %5448 = vmatprep.subr.bf16.mxu0 %v5321
    %5449 = vmatpush1.bf16.msra.mxu0 %v5320
    %5450 = vmatprep.subr.bf16.mxu0 %v5323
    %5451 = vmatpush1.bf16.msra.mxu0 %v5322
    %5452 = vmatprep.subr.bf16.mxu0 %v5325
    %5453 = vmatpush1.bf16.msra.mxu0 %v5324
    %5454 = vmatprep.subr.bf16.mxu0 %v5327
    %5455 = vmatpush1.bf16.msra.mxu0 %v5326
    %5456 = vmatprep.subr.bf16.mxu0 %v5329
    %5457 = vmatpush1.bf16.msra.mxu0 %v5328
    %5458 = vmatprep.subr.bf16.mxu0 %v5331
    %5459 = vmatpush1.bf16.msra.mxu0 %v5330
    %5460 = vmatprep.subr.bf16.mxu0 %v5333
    %5461 = vmatpush1.bf16.msra.mxu0 %v5332
    %5462 = vmatprep.subr.bf16.mxu0 %v5335
    %5463 = vmatpush1.bf16.msra.mxu0 %v5334
    %5464 = vmatprep.subr.bf16.mxu0 %v5337
    %5465 = vmatpush1.bf16.msra.mxu0 %v5336
    %5466 = vmatprep.subr.bf16.mxu0 %v5339
    %5467 = vmatpush1.bf16.msra.mxu0 %v5338
    %5468 = vmatprep.subr.bf16.mxu0 %v5341
    %5469 = vmatpush1.bf16.msra.mxu0 %v5340
    %5470 = vmatprep.mubr.bf16.mxu0 %v5039
    %5471 = vmatmul.mubr.bf16.gmra.mrb[0].mxu0 %v5038
    %v5472 = vpop.f32.mrb[0].mxu0
    %v5473 = vadd.f32 %v5111, %v5472
    %v5474 = vpop.f32.mrb[0].mxu0
    %v5475 = vadd.f32 %v5115, %v5474
    %v5476 = vpop.f32.mrb[0].mxu0
    %v5477 = vpop.f32.mrb[0].mxu0
    %5478 = vdwg.mxu0
    %5479 = vmatprep.subr.bf16.mxu0 %v5343
    %5480 = vmatpush1.bf16.msra.mxu0 %v5342
    %5481 = vmatprep.subr.bf16.mxu0 %v5345
    %5482 = vmatpush1.bf16.msra.mxu0 %v5344
    %5483 = vmatprep.subr.bf16.mxu0 %v5347
    %5484 = vmatpush1.bf16.msra.mxu0 %v5346
    %5485 = vmatprep.subr.bf16.mxu0 %v5349
    %5486 = vmatpush1.bf16.msra.mxu0 %v5348
    %5487 = vmatprep.subr.bf16.mxu0 %v5351
    %5488 = vmatpush1.bf16.msra.mxu0 %v5350
    %5489 = vmatprep.subr.bf16.mxu0 %v5353
    %5490 = vmatpush1.bf16.msra.mxu0 %v5352
    %5491 = vmatprep.subr.bf16.mxu0 %v5355
    %5492 = vmatpush1.bf16.msra.mxu0 %v5354
    %5493 = vmatprep.subr.bf16.mxu0 %v5357
    %5494 = vmatpush1.bf16.msra.mxu0 %v5356
    %5495 = vmatprep.subr.bf16.mxu0 %v5359
    %5496 = vmatpush1.bf16.msra.mxu0 %v5358
    %5497 = vmatprep.subr.bf16.mxu0 %v5361
    %5498 = vmatpush1.bf16.msra.mxu0 %v5360
    %5499 = vmatprep.subr.bf16.mxu0 %v5363
    %5500 = vmatpush1.bf16.msra.mxu0 %v5362
    %5501 = vmatprep.subr.bf16.mxu0 %v5365
    %5502 = vmatpush1.bf16.msra.mxu0 %v5364
    %5503 = vmatprep.subr.bf16.mxu0 %v5367
    %5504 = vmatpush1.bf16.msra.mxu0 %v5366
    %5505 = vmatprep.subr.bf16.mxu0 %v5369
    %5506 = vmatpush1.bf16.msra.mxu0 %v5368
    %5507 = vmatprep.subr.bf16.mxu0 %v5371
    %5508 = vmatpush1.bf16.msra.mxu0 %v5370
    %5509 = vmatprep.subr.bf16.mxu0 %v5373
    %5510 = vmatpush1.bf16.msra.mxu0 %v5372
    %5511 = vmatprep.mubr.bf16.mxu0 %v5041
    %5512 = vmatmul.mubr.bf16.gmra.mrb[0].mxu0 %v5040
    %v5513 = vpop.f32.mrb[0].mxu0
    %v5514 = vadd.f32 %v5473, %v5513
    %v5515 = vpop.f32.mrb[0].mxu0
    %v5516 = vadd.f32 %v5475, %v5515
    %v5517 = vpop.f32.mrb[0].mxu0
    %v5518 = vpop.f32.mrb[0].mxu0
    %5519 = vdwg.mxu0
    %vm5520 = vcmp.gt.f32.partialorder %v5514, 0.0
    %vm5521 = vcmp.gt.f32.partialorder %v5516, 0.0
    %v5522 = vmul.f32 %v5514, 0.1
    %v5523 = vmul.f32 %v5516, 0.1
    %v5524 = vsel %vm5520, %v5514, %v5522
    %v5525 = vsel %vm5521, %v5516, %v5523
    %v5526 = vpack.c.bf16 %v5524, %v5524
    %v5527 = vpack.c.bf16 %v5525, %v5525
    %v5528 = vld [vmem:[#allocation17] sm:$0xf]
    %v5529 = vld [vmem:[#allocation17 + $0x4] sm:$0xf]
    %v5530 = vld [vmem:[#allocation17 + $0x8] sm:$0xf]
    %v5531 = vld [vmem:[#allocation17 + $0xc] sm:$0xf]
    %v5532 = vld [vmem:[#allocation17 + $0x10] sm:$0xf]
    %v5533 = vld [vmem:[#allocation17 + $0x14] sm:$0xf]
    %v5534 = vld [vmem:[#allocation17 + $0x18] sm:$0xf]
    %v5535 = vld [vmem:[#allocation17 + $0x1c] sm:$0xf]
    %v5536 = vld [vmem:[#allocation17 + $0x20] sm:$0xf]
    %v5537 = vld [vmem:[#allocation17 + $0x24] sm:$0xf]
    %v5538 = vld [vmem:[#allocation17 + $0x28] sm:$0xf]
    %v5539 = vld [vmem:[#allocation17 + $0x2c] sm:$0xf]
    %v5540 = vld [vmem:[#allocation17 + $0x30] sm:$0xf]
    %v5541 = vld [vmem:[#allocation17 + $0x34] sm:$0xf]
    %v5542 = vld [vmem:[#allocation17 + $0x38] sm:$0xf]
    %v5543 = vld [vmem:[#allocation17 + $0x3c] sm:$0xf]
    %v5544 = vld [vmem:[#allocation17 + $0x40] sm:$0xf]
    %v5545 = vld [vmem:[#allocation17 + $0x44] sm:$0xf]
    %v5546 = vld [vmem:[#allocation17 + $0x48] sm:$0xf]
    %v5547 = vld [vmem:[#allocation17 + $0x4c] sm:$0xf]
    %v5548 = vld [vmem:[#allocation17 + $0x50] sm:$0xf]
    %v5549 = vld [vmem:[#allocation17 + $0x54] sm:$0xf]
    %v5550 = vld [vmem:[#allocation17 + $0x58] sm:$0xf]
    %v5551 = vld [vmem:[#allocation17 + $0x5c] sm:$0xf]
    %v5552 = vld [vmem:[#allocation17 + $0x60] sm:$0xf]
    %v5553 = vld [vmem:[#allocation17 + $0x64] sm:$0xf]
    %v5554 = vld [vmem:[#allocation17 + $0x68] sm:$0xf]
    %v5555 = vld [vmem:[#allocation17 + $0x6c] sm:$0xf]
    %v5556 = vld [vmem:[#allocation17 + $0x70] sm:$0xf]
    %v5557 = vld [vmem:[#allocation17 + $0x74] sm:$0xf]
    %v5558 = vld [vmem:[#allocation17 + $0x78] sm:$0xf]
    %v5559 = vld [vmem:[#allocation17 + $0x7c] sm:$0xf]
    %v5560 = vld [vmem:[#allocation19] sm:$0x1]
    %v5562 = vlaneseq
    %v5563 = vshrl.u32 %v5562, 7
    %v5564 = vsub.s32 0, %v5563
    %v5565 = vrot.slane %v5560, %v5564
    %v5599 = vunpack.c.l.b16 %v5528
    %v5600 = vunpack.c.l.b16 %v5529
    %v5601 = vunpack.c.l.b16 %v5530
    %v5602 = vunpack.c.l.b16 %v5531
    %v5603 = vunpack.c.l.b16 %v5532
    %v5604 = vunpack.c.l.b16 %v5533
    %v5605 = vunpack.c.l.b16 %v5534
    %v5606 = vunpack.c.l.b16 %v5535
    %v5607 = vunpack.c.l.b16 %v5536
    %v5608 = vunpack.c.l.b16 %v5537
    %v5609 = vunpack.c.l.b16 %v5538
    %v5610 = vunpack.c.l.b16 %v5539
    %v5611 = vunpack.c.l.b16 %v5540
    %v5612 = vunpack.c.l.b16 %v5541
    %v5613 = vunpack.c.l.b16 %v5542
    %v5614 = vunpack.c.l.b16 %v5543
    %v5615 = vunpack.c.l.b16 %v5544
    %v5616 = vunpack.c.l.b16 %v5545
    %v5617 = vunpack.c.l.b16 %v5546
    %v5618 = vunpack.c.l.b16 %v5547
    %v5619 = vunpack.c.l.b16 %v5548
    %v5620 = vunpack.c.l.b16 %v5549
    %v5621 = vunpack.c.l.b16 %v5550
    %v5622 = vunpack.c.l.b16 %v5551
    %v5623 = vunpack.c.l.b16 %v5552
    %v5624 = vunpack.c.l.b16 %v5553
    %v5625 = vunpack.c.l.b16 %v5554
    %v5626 = vunpack.c.l.b16 %v5555
    %v5627 = vunpack.c.l.b16 %v5556
    %v5628 = vunpack.c.l.b16 %v5557
    %v5629 = vunpack.c.l.b16 %v5558
    %v5630 = vunpack.c.l.b16 %v5559
    %v5631 = vpack.c.b16 %v5600, %v5599
    %v5632 = vpack.c.b16 %v5602, %v5601
    %v5633 = vpack.c.b16 %v5604, %v5603
    %v5634 = vpack.c.b16 %v5606, %v5605
    %v5635 = vpack.c.b16 %v5608, %v5607
    %v5636 = vpack.c.b16 %v5610, %v5609
    %v5637 = vpack.c.b16 %v5612, %v5611
    %v5638 = vpack.c.b16 %v5614, %v5613
    %v5639 = vpack.c.b16 %v5616, %v5615
    %v5640 = vpack.c.b16 %v5618, %v5617
    %v5641 = vpack.c.b16 %v5620, %v5619
    %v5642 = vpack.c.b16 %v5622, %v5621
    %v5643 = vpack.c.b16 %v5624, %v5623
    %v5644 = vpack.c.b16 %v5626, %v5625
    %v5645 = vpack.c.b16 %v5628, %v5627
    %v5646 = vpack.c.b16 %v5630, %v5629
    %5663 = vmatprep.subr.bf16.mxu0 0
    %5664 = vmatpush1.bf16.msra.mxu0 %v5631
    %5665 = vmatprep.subr.bf16.mxu0 0
    %5666 = vmatpush1.bf16.msra.mxu0 %v5632
    %5667 = vmatprep.subr.bf16.mxu0 0
    %5668 = vmatpush1.bf16.msra.mxu0 %v5633
    %5669 = vmatprep.subr.bf16.mxu0 0
    %5670 = vmatpush1.bf16.msra.mxu0 %v5634
    %5671 = vmatprep.subr.bf16.mxu0 0
    %5672 = vmatpush1.bf16.msra.mxu0 %v5635
    %5673 = vmatprep.subr.bf16.mxu0 0
    %5674 = vmatpush1.bf16.msra.mxu0 %v5636
    %5675 = vmatprep.subr.bf16.mxu0 0
    %5676 = vmatpush1.bf16.msra.mxu0 %v5637
    %5677 = vmatprep.subr.bf16.mxu0 0
    %5678 = vmatpush1.bf16.msra.mxu0 %v5638
    %5679 = vmatprep.subr.bf16.mxu0 0
    %5680 = vmatpush1.bf16.msra.mxu0 %v5639
    %5681 = vmatprep.subr.bf16.mxu0 0
    %5682 = vmatpush1.bf16.msra.mxu0 %v5640
    %5683 = vmatprep.subr.bf16.mxu0 0
    %5684 = vmatpush1.bf16.msra.mxu0 %v5641
    %5685 = vmatprep.subr.bf16.mxu0 0
    %5686 = vmatpush1.bf16.msra.mxu0 %v5642
    %5687 = vmatprep.subr.bf16.mxu0 0
    %5688 = vmatpush1.bf16.msra.mxu0 %v5643
    %5689 = vmatprep.subr.bf16.mxu0 0
    %5690 = vmatpush1.bf16.msra.mxu0 %v5644
    %5691 = vmatprep.subr.bf16.mxu0 0
    %5692 = vmatpush1.bf16.msra.mxu0 %v5645
    %5693 = vmatprep.subr.bf16.mxu0 0
    %5694 = vmatpush1.bf16.msra.mxu0 %v5646
    %5695 = vmatprep.mubr.bf16.mxu0 %v5527
    %5696 = vmatmul.mubr.bf16.gmra.mrb[0].mxu0 %v5526
    %v5697 = vpop.f32.mrb[0].mxu0
    %v5698 = vadd.f32 %v5565, %v5697
    %v5699 = vpop.f32.mrb[0].mxu0
    %v5700 = vpop.f32.mrb[0].mxu0
    %v5701 = vpop.f32.mrb[0].mxu0
    %5702 = vdwg.mxu0
    %5703 = vst [vmem:[#allocation20] sm:$0xff] %v5698
    // Predicated region
    $region90: #{tpu_custom_call.1} parent=1 // pred_check
      _
    $region91: #{tpu_custom_call.1} parent=1 // pred_check_branch
      %5705 = sbr.rel (0) target = $region93
    $region92: #{tpu_custom_call.1} parent=1 // pred_region
      %s5707 = ssub.s32 128, 128
      %5708 = vsyncadd [#allocation4], %s5707
      %s5710 = sshll.u32 [#allocation20], 4
      %s5711 = int_to_ptr.vmem [resolvable:$true] %s5710
      %5713 = dma.vmem_to_hbm [thread:$0]  %s5711, 128, %s11, [#allocation4]
    $region93: #{tpu_custom_call.1} parent=1 // pred_fallthru
      _
    // Predicated region
    $region94: #{tpu_custom_call.1} parent=1 // pred_check
      _
    $region95: #{tpu_custom_call.1} parent=1 // pred_check_branch
      %5715 = sbr.rel (0) target = $region97
    $region96: #{tpu_custom_call.1} parent=1 // pred_region
      %5716 = dma.done [#allocation4], 128
    $region97: #{tpu_custom_call.1} parent=1 // pred_fallthru
      _
    %5717 = vsyncpa [#allocation3], 1
    %5718 = vsyncpa [#allocation6], 1
    %5719 = vsyncpa [#allocation9], 1
    %5720 = vsyncpa [#allocation12], 1
    %5721 = vsyncpa [#allocation15], 1
    %5722 = vsyncpa [#allocation18], 1
    %5723 = vsyncpa [#allocation4], 1

</llo_original>
